<compile_context>
chip_gen: v7x
topology: tpu7x:2x2x1
jax: 0.10.0
libtpu: 0.0.40
codegen_flags: <defaults>
</compile_context>

<pallas_src>
import jax
import jax.numpy as jnp
from jax.experimental import pallas as pl
from jax.experimental.pallas import tpu as pltpu

# ---------------- model dimensions (small, consistent with the module) -------
B = 2          # batch
L = 128        # sequence length == max_length (MaxPool1d kernel size)
D = 32         # "bert_dim"
H = 32         # hidden_dim
VOCAB = 64
NEG_SLOPE = 0.01  # nn.LeakyReLU default


def _leaky(x):
    return jnp.where(x >= 0, x, NEG_SLOPE * x)


def _masked_softmax_kernel(scores, mask_row):
    """sp_model.masked_softmax semantics: softmax(scores * mask) * mask,
    renormalized with +1e-13 (mask-by-multiplication, not -inf masking)."""
    m = scores * mask_row
    m = m - jnp.max(m, axis=-1, keepdims=True)
    e = jnp.exp(m)
    p = e * pl.reciprocal(jnp.sum(e, axis=-1, keepdims=True), approx=True)
    p = p * mask_row
    return p * pl.reciprocal(jnp.sum(p, axis=-1, keepdims=True) + 1e-13, approx=True)


def _masked_softmax_ref(scores, mask_row):
    m = scores * mask_row
    m = m - jnp.max(m, axis=-1, keepdims=True)
    e = jnp.exp(m)
    p = e / jnp.sum(e, axis=-1, keepdims=True)
    p = p * mask_row
    return p / (jnp.sum(p, axis=-1, keepdims=True) + 1e-13)


# ------------------------------- Pallas kernel -------------------------------
def sf_kernel(qlen_ref, clen_ref,            # scalar prefetch (SMEM), shape (B,)
              ques_ref, ctx_ref,             # (BB, L, D) f32 blocks
              wproj_ref,                     # (2, 4D, H) f32 = [wq, wc]
              wcls_ref,                      # (3, 4H, 4H) f32, zero-padded w1/w2/w3
              bias_ref,                      # (5, 4H) f32: bq, bc, b1, b2, b3 (padded)
              out_ref):                      # (BB, 1, 4H) f32, logits in [..., :2]
    BB = ques_ref.shape[0]                   # examples per grid step (trace-time)
    base = pl.program_id(0) * BB             # index into the full (B,) length arrays

    lane_idx = jax.lax.broadcasted_iota(jnp.int32, (1, L), 1)   # (1, L)
    sub_idx = jax.lax.broadcasted_iota(jnp.int32, (L, 1), 0)    # (L, 1)

    enh_q_list, enh_c_list = [], []
    for b in range(BB):                      # unrolled at trace time
        ques = ques_ref[b]                   # (L, D) f32
        ctx = ctx_ref[b]                     # (L, D) f32
        q_len = qlen_ref[base + b]
        c_len = clen_ref[base + b]
        qm_row = (lane_idx < q_len).astype(jnp.float32)   # (1, L)
        cm_row = (lane_idx < c_len).astype(jnp.float32)
        qm_col = (sub_idx < q_len).astype(jnp.float32)    # (L, 1)
        cm_col = (sub_idx < c_len).astype(jnp.float32)

        q_bf = ques.astype(jnp.bfloat16)
        c_bf = ctx.astype(jnp.bfloat16)

        # Similarity once on the MXU; its transpose comes from the (idle) XLU.
        dnums = (((1,), (1,)), ((), ()))
        sim_qc = jax.lax.dot_general(q_bf, c_bf, dnums,
                                     preferred_element_type=jnp.float32)  # (Lq, Lc)
        sim_cq = sim_qc.T                                                  # (Lc, Lq)

        attn_qc = _masked_softmax_kernel(sim_qc, cm_row)   # softmax over ctx
        attn_cq = _masked_softmax_kernel(sim_cq, qm_row)   # softmax over ques

        # De-fused weighted sums (two plain (L,L)@(L,D) dots, offset-0 results).
        ques_attn = jnp.dot(attn_qc.astype(jnp.bfloat16), c_bf,
                            preferred_element_type=jnp.float32) * qm_col   # (L, D)
        ctx_attn = jnp.dot(attn_cq.astype(jnp.bfloat16), q_bf,
                           preferred_element_type=jnp.float32) * cm_col    # (L, D)

        # Enhanced features: cast each 32-lane piece to bf16 BEFORE the concat.
        enh_q_list.append(jnp.concatenate(
            [q_bf, ques_attn.astype(jnp.bfloat16),
             (ques - ques_attn).astype(jnp.bfloat16),
             (ques * ques_attn).astype(jnp.bfloat16)], axis=-1))           # (L, 4D) bf16
        enh_c_list.append(jnp.concatenate(
            [c_bf, ctx_attn.astype(jnp.bfloat16),
             (ctx - ctx_attn).astype(jnp.bfloat16),
             (ctx * ctx_attn).astype(jnp.bfloat16)], axis=-1))

    # Separate ques / ctx projection streams (no lane-offset output slices).
    enh_q_all = enh_q_list[0] if BB == 1 else jnp.concatenate(enh_q_list, axis=0)
    enh_c_all = enh_c_list[0] if BB == 1 else jnp.concatenate(enh_c_list, axis=0)
    wq = wproj_ref[0].astype(jnp.bfloat16)                                  # (4D, H)
    wc = wproj_ref[1].astype(jnp.bfloat16)
    bq = bias_ref[0:1, 0:H]                                                 # (1, H)
    bc = bias_ref[1:2, 0:H]
    q_proj = _leaky(jnp.dot(enh_q_all, wq,
                            preferred_element_type=jnp.float32) + bq)       # (BB*L, H)
    c_proj = _leaky(jnp.dot(enh_c_all, wc,
                            preferred_element_type=jnp.float32) + bc)       # (BB*L, H)

    pooled_rows = []
    for b in range(BB):
        qp = q_proj[b * L:(b + 1) * L]                                      # (L, H)
        cp = c_proj[b * L:(b + 1) * L]                                      # (L, H)
        feats = jnp.concatenate([cp, qp, cp - qp, cp * qp], axis=-1)        # (L, 4H)
        pooled_rows.append(jnp.max(feats, axis=0, keepdims=True))           # (1, 4H)
    h = pooled_rows[0] if BB == 1 else jnp.concatenate(pooled_rows, axis=0)  # (BB, 4H)

    # Classifier MLP with weights zero-padded to 4H=128 lanes: the padded
    # columns stay exactly 0 through LeakyReLU, so out[..., :2] are the logits.
    for layer in range(3):
        w = wcls_ref[layer].astype(jnp.bfloat16)                            # (4H, 4H)
        bvec = bias_ref[layer + 2:layer + 3, :]                             # (1, 4H)
        h = _leaky(jnp.dot(h.astype(jnp.bfloat16), w,
                           preferred_element_type=jnp.float32) + bvec)
    out_ref[...] = h[:, None, :]                                            # (BB, 1, 4H)


def _tensorcores_per_device():
    """Best-effort TC-per-chip query: v5e/v6e -> 1, v7x -> 2. Safe fallback 1."""
    try:
        kind = str(getattr(jax.devices()[0], "device_kind", "")).lower()
        if "7" in kind:
            return 2
    except Exception:
        pass
    return 1


def supporting_fact_forward(ques_emb, ctx_emb, ques_len, ctx_len, params):
    """ques_emb/ctx_emb: (B, L, D) f32; ques_len/ctx_len: (B,) int32 valid lengths.
    Returns logits (B, 2)."""
    wq, bq, wc, bc, w1, b1, w2, b2, w3, b3 = params

    def pad2(a, rows, cols):
        return jnp.pad(a, ((0, rows - a.shape[0]), (0, cols - a.shape[1])))

    # Pack the 10 small parameter arrays into 3 lane-dense VMEM inputs.
    w_proj = jnp.stack([wq, wc])                                            # (2, 4D, H)
    wcls = jnp.stack([pad2(w1, 4 * H, 4 * H),
                      pad2(w2, 4 * H, 4 * H),
                      pad2(w3, 4 * H, 4 * H)])                              # (3, 4H, 4H)
    bias_pack = jnp.concatenate(
        [pad2(bq, 1, 4 * H), pad2(bc, 1, 4 * H),
         pad2(b1, 1, 4 * H), pad2(b2, 1, 4 * H), pad2(b3, 1, 4 * H)],
        axis=0)                                                             # (5, 4H)

    # v7x: split batch across the two TensorCores. v5e/v6e: one grid step.
    split = _tensorcores_per_device() > 1
    BB = 1 if split else B
    grid = (B // BB,)
    dim_sem = ("parallel",) if split else ("arbitrary",)

    grid_spec = pltpu.PrefetchScalarGridSpec(
        num_scalar_prefetch=2,
        grid=grid,
        in_specs=[
            pl.BlockSpec((BB, L, D), lambda i, ql, cl: (i, 0, 0)),          # ques_emb
            pl.BlockSpec((BB, L, D), lambda i, ql, cl: (i, 0, 0)),          # ctx_emb
            pl.BlockSpec((2, 4 * D, H), lambda i, ql, cl: (0, 0, 0)),       # w_proj
            pl.BlockSpec((3, 4 * H, 4 * H), lambda i, ql, cl: (0, 0, 0)),   # wcls
            pl.BlockSpec((5, 4 * H), lambda i, ql, cl: (0, 0)),             # bias_pack
        ],
        out_specs=pl.BlockSpec((BB, 1, 4 * H), lambda i, ql, cl: (i, 0, 0)),
    )
    out = pl.pallas_call(
        sf_kernel,
        out_shape=jax.ShapeDtypeStruct((B, 1, 4 * H), jnp.float32),
        grid_spec=grid_spec,
        compiler_params=pltpu.CompilerParams(dimension_semantics=dim_sem),
    )(ques_len.astype(jnp.int32), ctx_len.astype(jnp.int32),
      ques_emb, ctx_emb, w_proj, wcls, bias_pack)
    return out[:, 0, :2]


# ----------------------------- pure-JAX reference -----------------------------
def reference_forward(ques_emb, ctx_emb, ques_mask, ctx_mask, params,
                      match_bf16=False):
    """match_bf16=True mirrors the kernel's bf16 MXU-operand casts (f32 accum)."""
    wq, bq, wc, bc, w1, b1, w2, b2, w3, b3 = params
    c = (lambda x: x.astype(jnp.bfloat16)) if match_bf16 else (lambda x: x)
    f32 = jnp.float32

    sim = jnp.einsum("bqd,bkd->bqk", c(ques_emb), c(ctx_emb),
                     preferred_element_type=f32)
    attn_qc = _masked_softmax_ref(sim, ctx_mask[:, None, :])
    attn_cq = _masked_softmax_ref(jnp.swapaxes(sim, 1, 2), ques_mask[:, None, :])
    ques_attn = jnp.einsum("bqk,bkd->bqd", c(attn_qc), c(ctx_emb),
                           preferred_element_type=f32) * ques_mask[:, :, None]
    ctx_attn = jnp.einsum("bkq,bqd->bkd", c(attn_cq), c(ques_emb),
                          preferred_element_type=f32) * ctx_mask[:, :, None]
    enh_q = jnp.concatenate(
        [ques_emb, ques_attn, ques_emb - ques_attn, ques_emb * ques_attn], axis=-1)
    enh_c = jnp.concatenate(
        [ctx_emb, ctx_attn, ctx_emb - ctx_attn, ctx_emb * ctx_attn], axis=-1)
    q_proj = _leaky(jnp.einsum("bld,dh->blh", c(enh_q), c(wq),
                               preferred_element_type=f32) + bq)
    c_proj = _leaky(jnp.einsum("bld,dh->blh", c(enh_c), c(wc),
                               preferred_element_type=f32) + bc)
    feats = jnp.concatenate(
        [c_proj, q_proj, c_proj - q_proj, c_proj * q_proj], axis=-1)
    pooled = jnp.max(feats, axis=1, keepdims=True)
    h = _leaky(jnp.einsum("blh,hk->blk", c(pooled), c(w1),
                          preferred_element_type=f32) + b1)
    h = _leaky(jnp.einsum("blh,hk->blk", c(h), c(w2),
                          preferred_element_type=f32) + b2)
    h = _leaky(jnp.einsum("blh,hk->blk", c(h), c(w3),
                          preferred_element_type=f32) + b3)
    return h[:, 0, :]


# ------------------------------------ main ------------------------------------
if __name__ == "__main__":
    key = jax.random.PRNGKey(0)
    keys = jax.random.split(key, 16)

    # deterministic "BERT" embedding tables (stand-in for the two encoders)
    q_table = jax.random.normal(keys[0], (VOCAB, D), jnp.float32) * 0.1
    c_table = jax.random.normal(keys[1], (VOCAB, D), jnp.float32) * 0.1

    def init_linear(k, fan_in, fan_out):
        kw, kb = jax.random.split(k)
        w = jax.random.normal(kw, (fan_in, fan_out), jnp.float32) * (1.0 / jnp.sqrt(fan_in))
        b = jax.random.normal(kb, (1, fan_out), jnp.float32) * 0.01
        return w, b

    wq, bq = init_linear(keys[2], 4 * D, H)
    wc, bc = init_linear(keys[3], 4 * D, H)
    w1, b1 = init_linear(keys[4], 4 * H, 2 * H)
    w2, b2 = init_linear(keys[5], 2 * H, H)
    w3, b3 = init_linear(keys[6], H, 2)
    params = (wq, bq, wc, bc, w1, b1, w2, b2, w3, b3)

    # inputs: token ids + valid lengths (masks have trailing padding)
    ctx_ids = jax.random.randint(keys[7], (B, L), 0, VOCAB)
    ques_ids = jax.random.randint(keys[8], (B, L), 0, VOCAB)
    ctx_lens = jnp.array([L, 120], jnp.int32)
    ques_lens = jnp.array([100, 80], jnp.int32)
    pos = jnp.arange(L)[None, :]
    ctx_mask = (pos < ctx_lens[:, None]).astype(jnp.float32)
    ques_mask = (pos < ques_lens[:, None]).astype(jnp.float32)

    # glue: encoder stand-in (see TODO(synk) above)
    ctx_emb = c_table[ctx_ids]
    ques_emb = q_table[ques_ids]

    out = supporting_fact_forward(ques_emb, ctx_emb, ques_lens, ctx_lens, params)
    out = jax.block_until_ready(out)
    assert out.shape == (B, 2)

    ref_match = reference_forward(ques_emb, ctx_emb, ques_mask, ctx_mask, params,
                                  match_bf16=True)
    ref_f32 = reference_forward(ques_emb, ctx_emb, ques_mask, ctx_mask, params,
                                match_bf16=False)
    assert jnp.allclose(out, ref_match, atol=1e-2, rtol=1e-2), (out, ref_match)
    assert jnp.allclose(out, ref_f32, atol=5e-2, rtol=5e-2), (out, ref_f32)

    print("KERNEL_OK")
</pallas_src>

<mosaic_0001>
module attributes {stable_mosaic.version = 11 : i64} {
  func.func @sf_kernel(%arg0: i32, %arg1: memref<2xi32, #tpu.memory_space<smem>>, %arg2: memref<2xi32, #tpu.memory_space<smem>>, %arg3: memref<2x128x32xf32, #tpu.memory_space<vmem>>, %arg4: memref<2x128x32xf32, #tpu.memory_space<vmem>>, %arg5: memref<2x128x32xf32, #tpu.memory_space<vmem>>, %arg6: memref<3x128x128xf32, #tpu.memory_space<vmem>>, %arg7: memref<5x128xf32, #tpu.memory_space<vmem>>, %arg8: memref<2x1x128xf32, #tpu.memory_space<vmem>>) attributes {dimension_semantics = [#tpu.dimension_semantics<arbitrary>], iteration_bounds = array<i64: 1>, scalar_prefetch = 2 : i64, scratch_operands = 0 : i64, tpu.core_type = #tpu.core_type<tc>, window_params = [{transform_indices = @transform_0, window_bounds = array<i64: 2, 128, 32>}, {transform_indices = @transform_1, window_bounds = array<i64: 2, 128, 32>}, {pipeline_mode = #tpu.pipeline_mode<synchronous>, transform_indices = @transform_2, window_bounds = array<i64: 2, 128, 32>}, {pipeline_mode = #tpu.pipeline_mode<synchronous>, transform_indices = @transform_3, window_bounds = array<i64: 3, 128, 128>}, {pipeline_mode = #tpu.pipeline_mode<synchronous>, transform_indices = @transform_4, window_bounds = array<i64: 5, 128>}, {transform_indices = @transform_5, window_bounds = array<i64: 2, 1, 128>}]} {
    %c2_i32 = arith.constant 2 : i32
    %0 = arith.muli %arg0, %c2_i32 : i32
    %1 = tpu.iota {dimensions = array<i32: 1>} : vector<1x128xi32>
    %2 = tpu.iota {dimensions = array<i32: 0>} : vector<128x1xi32>
    %c0 = arith.constant 0 : index
    %c0_0 = arith.constant 0 : index
    %c0_1 = arith.constant 0 : index
    %3 = vector.load %arg3[%c0, %c0_0, %c0_1] : memref<2x128x32xf32, #tpu.memory_space<vmem>>, vector<1x128x32xf32>
    %4 = vector.shape_cast %3 : vector<1x128x32xf32> to vector<128x32xf32>
    %c0_2 = arith.constant 0 : index
    %c0_3 = arith.constant 0 : index
    %c0_4 = arith.constant 0 : index
    %5 = vector.load %arg4[%c0_2, %c0_3, %c0_4] : memref<2x128x32xf32, #tpu.memory_space<vmem>>, vector<1x128x32xf32>
    %6 = vector.shape_cast %5 : vector<1x128x32xf32> to vector<128x32xf32>
    %c0_i32 = arith.constant 0 : i32
    %7 = arith.addi %0, %c0_i32 : i32
    %8 = arith.index_cast %7 : i32 to index
    %9 = memref.load %arg1[%8] : memref<2xi32, #tpu.memory_space<smem>>
    %c0_i32_5 = arith.constant 0 : i32
    %10 = arith.addi %0, %c0_i32_5 : i32
    %11 = arith.index_cast %10 : i32 to index
    %12 = memref.load %arg2[%11] : memref<2xi32, #tpu.memory_space<smem>>
    %13 = vector.broadcast %9 : i32 to vector<1x128xi32>
    %14 = arith.cmpi slt, %1, %13 : vector<1x128xi32>
    %15 = arith.extui %14 : vector<1x128xi1> to vector<1x128xi32>
    %16 = arith.sitofp %15 : vector<1x128xi32> to vector<1x128xf32>
    %17 = vector.broadcast %12 : i32 to vector<1x128xi32>
    %18 = arith.cmpi slt, %1, %17 : vector<1x128xi32>
    %19 = arith.extui %18 : vector<1x128xi1> to vector<1x128xi32>
    %20 = arith.sitofp %19 : vector<1x128xi32> to vector<1x128xf32>
    %21 = vector.broadcast %9 : i32 to vector<128x1xi32>
    %22 = arith.cmpi slt, %2, %21 : vector<128x1xi32>
    %23 = arith.extui %22 : vector<128x1xi1> to vector<128x1xi32>
    %24 = arith.sitofp %23 : vector<128x1xi32> to vector<128x1xf32>
    %25 = vector.broadcast %12 : i32 to vector<128x1xi32>
    %26 = arith.cmpi slt, %2, %25 : vector<128x1xi32>
    %27 = arith.extui %26 : vector<128x1xi1> to vector<128x1xi32>
    %28 = arith.sitofp %27 : vector<128x1xi32> to vector<128x1xf32>
    %29 = arith.truncf %4 : vector<128x32xf32> to vector<128x32xbf16>
    %30 = arith.truncf %6 : vector<128x32xf32> to vector<128x32xbf16>
    %cst = arith.constant dense<0.000000e+00> : vector<128x128xf32>
    %31 = tpu.matmul %29, %30, %cst {dimension_numbers = #tpu.dot_dimension_numbers<[1], [1], [0], [0], [0, 0, 1, 0], [], []>} : vector<128x32xbf16>, vector<128x32xbf16>, vector<128x128xf32> -> vector<128x128xf32>
    %32 = tpu.transpose %31, [1, 0] : vector<128x128xf32> -> vector<128x128xf32>
    %33 = vector.broadcast %20 : vector<1x128xf32> to vector<128x128xf32>
    %34 = arith.mulf %31, %33 : vector<128x128xf32>
    %cst_6 = arith.constant dense<0xFF800000> : vector<128xf32>
    %35 = vector.multi_reduction <maximumf>, %34, %cst_6 [1] : vector<128x128xf32> to vector<128xf32>
    %36 = vector.shape_cast %35 : vector<128xf32> to vector<128x1xf32>
    %37 = vector.broadcast %36 : vector<128x1xf32> to vector<128x128xf32>
    %38 = arith.subf %34, %37 : vector<128x128xf32>
    %39 = math.exp %38 : vector<128x128xf32>
    %cst_7 = arith.constant dense<0.000000e+00> : vector<128xf32>
    %40 = vector.multi_reduction <add>, %39, %cst_7 [1] : vector<128x128xf32> to vector<128xf32>
    %41 = vector.shape_cast %40 : vector<128xf32> to vector<128x1xf32>
    %42 = tpu.reciprocal %41 {approx = true} : vector<128x1xf32> -> vector<128x1xf32>
    %43 = vector.broadcast %42 : vector<128x1xf32> to vector<128x128xf32>
    %44 = arith.mulf %39, %43 : vector<128x128xf32>
    %45 = vector.broadcast %20 : vector<1x128xf32> to vector<128x128xf32>
    %46 = arith.mulf %44, %45 : vector<128x128xf32>
    %cst_8 = arith.constant dense<0.000000e+00> : vector<128xf32>
    %47 = vector.multi_reduction <add>, %46, %cst_8 [1] : vector<128x128xf32> to vector<128xf32>
    %48 = vector.shape_cast %47 : vector<128xf32> to vector<128x1xf32>
    %cst_9 = arith.constant 9.99999982E-14 : f32
    %49 = vector.broadcast %cst_9 : f32 to vector<128x1xf32>
    %50 = arith.addf %48, %49 : vector<128x1xf32>
    %51 = tpu.reciprocal %50 {approx = true} : vector<128x1xf32> -> vector<128x1xf32>
    %52 = vector.broadcast %51 : vector<128x1xf32> to vector<128x128xf32>
    %53 = arith.mulf %46, %52 : vector<128x128xf32>
    %54 = vector.broadcast %16 : vector<1x128xf32> to vector<128x128xf32>
    %55 = arith.mulf %32, %54 : vector<128x128xf32>
    %cst_10 = arith.constant dense<0xFF800000> : vector<128xf32>
    %56 = vector.multi_reduction <maximumf>, %55, %cst_10 [1] : vector<128x128xf32> to vector<128xf32>
    %57 = vector.shape_cast %56 : vector<128xf32> to vector<128x1xf32>
    %58 = vector.broadcast %57 : vector<128x1xf32> to vector<128x128xf32>
    %59 = arith.subf %55, %58 : vector<128x128xf32>
    %60 = math.exp %59 : vector<128x128xf32>
    %cst_11 = arith.constant dense<0.000000e+00> : vector<128xf32>
    %61 = vector.multi_reduction <add>, %60, %cst_11 [1] : vector<128x128xf32> to vector<128xf32>
    %62 = vector.shape_cast %61 : vector<128xf32> to vector<128x1xf32>
    %63 = tpu.reciprocal %62 {approx = true} : vector<128x1xf32> -> vector<128x1xf32>
    %64 = vector.broadcast %63 : vector<128x1xf32> to vector<128x128xf32>
    %65 = arith.mulf %60, %64 : vector<128x128xf32>
    %66 = vector.broadcast %16 : vector<1x128xf32> to vector<128x128xf32>
    %67 = arith.mulf %65, %66 : vector<128x128xf32>
    %cst_12 = arith.constant dense<0.000000e+00> : vector<128xf32>
    %68 = vector.multi_reduction <add>, %67, %cst_12 [1] : vector<128x128xf32> to vector<128xf32>
    %69 = vector.shape_cast %68 : vector<128xf32> to vector<128x1xf32>
    %cst_13 = arith.constant 9.99999982E-14 : f32
    %70 = vector.broadcast %cst_13 : f32 to vector<128x1xf32>
    %71 = arith.addf %69, %70 : vector<128x1xf32>
    %72 = tpu.reciprocal %71 {approx = true} : vector<128x1xf32> -> vector<128x1xf32>
    %73 = vector.broadcast %72 : vector<128x1xf32> to vector<128x128xf32>
    %74 = arith.mulf %67, %73 : vector<128x128xf32>
    %75 = arith.truncf %53 : vector<128x128xf32> to vector<128x128xbf16>
    %cst_14 = arith.constant dense<0.000000e+00> : vector<128x32xf32>
    %76 = tpu.matmul %75, %30, %cst_14 {dimension_numbers = #tpu.dot_dimension_numbers<[1], [0], [0], [1], [0, 0, 1, 1], [], []>} : vector<128x128xbf16>, vector<128x32xbf16>, vector<128x32xf32> -> vector<128x32xf32>
    %77 = vector.broadcast %24 : vector<128x1xf32> to vector<128x32xf32>
    %78 = arith.mulf %76, %77 : vector<128x32xf32>
    %79 = arith.truncf %74 : vector<128x128xf32> to vector<128x128xbf16>
    %cst_15 = arith.constant dense<0.000000e+00> : vector<128x32xf32>
    %80 = tpu.matmul %79, %29, %cst_15 {dimension_numbers = #tpu.dot_dimension_numbers<[1], [0], [0], [1], [0, 0, 1, 1], [], []>} : vector<128x128xbf16>, vector<128x32xbf16>, vector<128x32xf32> -> vector<128x32xf32>
    %81 = vector.broadcast %28 : vector<128x1xf32> to vector<128x32xf32>
    %82 = arith.mulf %80, %81 : vector<128x32xf32>
    %83 = arith.truncf %78 : vector<128x32xf32> to vector<128x32xbf16>
    %84 = arith.subf %4, %78 : vector<128x32xf32>
    %85 = arith.truncf %84 : vector<128x32xf32> to vector<128x32xbf16>
    %86 = arith.mulf %4, %78 : vector<128x32xf32>
    %87 = arith.truncf %86 : vector<128x32xf32> to vector<128x32xbf16>
    %88 = tpu.concatenate %29, %83, %85, %87 in 1 : vector<128x32xbf16>, vector<128x32xbf16>, vector<128x32xbf16>, vector<128x32xbf16> -> vector<128x128xbf16>
    %89 = arith.truncf %82 : vector<128x32xf32> to vector<128x32xbf16>
    %90 = arith.subf %6, %82 : vector<128x32xf32>
    %91 = arith.truncf %90 : vector<128x32xf32> to vector<128x32xbf16>
    %92 = arith.mulf %6, %82 : vector<128x32xf32>
    %93 = arith.truncf %92 : vector<128x32xf32> to vector<128x32xbf16>
    %94 = tpu.concatenate %30, %89, %91, %93 in 1 : vector<128x32xbf16>, vector<128x32xbf16>, vector<128x32xbf16>, vector<128x32xbf16> -> vector<128x128xbf16>
    %c1 = arith.constant 1 : index
    %c0_16 = arith.constant 0 : index
    %c0_17 = arith.constant 0 : index
    %95 = vector.load %arg3[%c1, %c0_16, %c0_17] : memref<2x128x32xf32, #tpu.memory_space<vmem>>, vector<1x128x32xf32>
    %96 = vector.shape_cast %95 : vector<1x128x32xf32> to vector<128x32xf32>
    %c1_18 = arith.constant 1 : index
    %c0_19 = arith.constant 0 : index
    %c0_20 = arith.constant 0 : index
    %97 = vector.load %arg4[%c1_18, %c0_19, %c0_20] : memref<2x128x32xf32, #tpu.memory_space<vmem>>, vector<1x128x32xf32>
    %98 = vector.shape_cast %97 : vector<1x128x32xf32> to vector<128x32xf32>
    %c1_i32 = arith.constant 1 : i32
    %99 = arith.addi %0, %c1_i32 : i32
    %100 = arith.index_cast %99 : i32 to index
    %101 = memref.load %arg1[%100] : memref<2xi32, #tpu.memory_space<smem>>
    %c1_i32_21 = arith.constant 1 : i32
    %102 = arith.addi %0, %c1_i32_21 : i32
    %103 = arith.index_cast %102 : i32 to index
    %104 = memref.load %arg2[%103] : memref<2xi32, #tpu.memory_space<smem>>
    %105 = vector.broadcast %101 : i32 to vector<1x128xi32>
    %106 = arith.cmpi slt, %1, %105 : vector<1x128xi32>
    %107 = arith.extui %106 : vector<1x128xi1> to vector<1x128xi32>
    %108 = arith.sitofp %107 : vector<1x128xi32> to vector<1x128xf32>
    %109 = vector.broadcast %104 : i32 to vector<1x128xi32>
    %110 = arith.cmpi slt, %1, %109 : vector<1x128xi32>
    %111 = arith.extui %110 : vector<1x128xi1> to vector<1x128xi32>
    %112 = arith.sitofp %111 : vector<1x128xi32> to vector<1x128xf32>
    %113 = vector.broadcast %101 : i32 to vector<128x1xi32>
    %114 = arith.cmpi slt, %2, %113 : vector<128x1xi32>
    %115 = arith.extui %114 : vector<128x1xi1> to vector<128x1xi32>
    %116 = arith.sitofp %115 : vector<128x1xi32> to vector<128x1xf32>
    %117 = vector.broadcast %104 : i32 to vector<128x1xi32>
    %118 = arith.cmpi slt, %2, %117 : vector<128x1xi32>
    %119 = arith.extui %118 : vector<128x1xi1> to vector<128x1xi32>
    %120 = arith.sitofp %119 : vector<128x1xi32> to vector<128x1xf32>
    %121 = arith.truncf %96 : vector<128x32xf32> to vector<128x32xbf16>
    %122 = arith.truncf %98 : vector<128x32xf32> to vector<128x32xbf16>
    %cst_22 = arith.constant dense<0.000000e+00> : vector<128x128xf32>
    %123 = tpu.matmul %121, %122, %cst_22 {dimension_numbers = #tpu.dot_dimension_numbers<[1], [1], [0], [0], [0, 0, 1, 0], [], []>} : vector<128x32xbf16>, vector<128x32xbf16>, vector<128x128xf32> -> vector<128x128xf32>
    %124 = tpu.transpose %123, [1, 0] : vector<128x128xf32> -> vector<128x128xf32>
    %125 = vector.broadcast %112 : vector<1x128xf32> to vector<128x128xf32>
    %126 = arith.mulf %123, %125 : vector<128x128xf32>
    %cst_23 = arith.constant dense<0xFF800000> : vector<128xf32>
    %127 = vector.multi_reduction <maximumf>, %126, %cst_23 [1] : vector<128x128xf32> to vector<128xf32>
    %128 = vector.shape_cast %127 : vector<128xf32> to vector<128x1xf32>
    %129 = vector.broadcast %128 : vector<128x1xf32> to vector<128x128xf32>
    %130 = arith.subf %126, %129 : vector<128x128xf32>
    %131 = math.exp %130 : vector<128x128xf32>
    %cst_24 = arith.constant dense<0.000000e+00> : vector<128xf32>
    %132 = vector.multi_reduction <add>, %131, %cst_24 [1] : vector<128x128xf32> to vector<128xf32>
    %133 = vector.shape_cast %132 : vector<128xf32> to vector<128x1xf32>
    %134 = tpu.reciprocal %133 {approx = true} : vector<128x1xf32> -> vector<128x1xf32>
    %135 = vector.broadcast %134 : vector<128x1xf32> to vector<128x128xf32>
    %136 = arith.mulf %131, %135 : vector<128x128xf32>
    %137 = vector.broadcast %112 : vector<1x128xf32> to vector<128x128xf32>
    %138 = arith.mulf %136, %137 : vector<128x128xf32>
    %cst_25 = arith.constant dense<0.000000e+00> : vector<128xf32>
    %139 = vector.multi_reduction <add>, %138, %cst_25 [1] : vector<128x128xf32> to vector<128xf32>
    %140 = vector.shape_cast %139 : vector<128xf32> to vector<128x1xf32>
    %cst_26 = arith.constant 9.99999982E-14 : f32
    %141 = vector.broadcast %cst_26 : f32 to vector<128x1xf32>
    %142 = arith.addf %140, %141 : vector<128x1xf32>
    %143 = tpu.reciprocal %142 {approx = true} : vector<128x1xf32> -> vector<128x1xf32>
    %144 = vector.broadcast %143 : vector<128x1xf32> to vector<128x128xf32>
    %145 = arith.mulf %138, %144 : vector<128x128xf32>
    %146 = vector.broadcast %108 : vector<1x128xf32> to vector<128x128xf32>
    %147 = arith.mulf %124, %146 : vector<128x128xf32>
    %cst_27 = arith.constant dense<0xFF800000> : vector<128xf32>
    %148 = vector.multi_reduction <maximumf>, %147, %cst_27 [1] : vector<128x128xf32> to vector<128xf32>
    %149 = vector.shape_cast %148 : vector<128xf32> to vector<128x1xf32>
    %150 = vector.broadcast %149 : vector<128x1xf32> to vector<128x128xf32>
    %151 = arith.subf %147, %150 : vector<128x128xf32>
    %152 = math.exp %151 : vector<128x128xf32>
    %cst_28 = arith.constant dense<0.000000e+00> : vector<128xf32>
    %153 = vector.multi_reduction <add>, %152, %cst_28 [1] : vector<128x128xf32> to vector<128xf32>
    %154 = vector.shape_cast %153 : vector<128xf32> to vector<128x1xf32>
    %155 = tpu.reciprocal %154 {approx = true} : vector<128x1xf32> -> vector<128x1xf32>
    %156 = vector.broadcast %155 : vector<128x1xf32> to vector<128x128xf32>
    %157 = arith.mulf %152, %156 : vector<128x128xf32>
    %158 = vector.broadcast %108 : vector<1x128xf32> to vector<128x128xf32>
    %159 = arith.mulf %157, %158 : vector<128x128xf32>
    %cst_29 = arith.constant dense<0.000000e+00> : vector<128xf32>
    %160 = vector.multi_reduction <add>, %159, %cst_29 [1] : vector<128x128xf32> to vector<128xf32>
    %161 = vector.shape_cast %160 : vector<128xf32> to vector<128x1xf32>
    %cst_30 = arith.constant 9.99999982E-14 : f32
    %162 = vector.broadcast %cst_30 : f32 to vector<128x1xf32>
    %163 = arith.addf %161, %162 : vector<128x1xf32>
    %164 = tpu.reciprocal %163 {approx = true} : vector<128x1xf32> -> vector<128x1xf32>
    %165 = vector.broadcast %164 : vector<128x1xf32> to vector<128x128xf32>
    %166 = arith.mulf %159, %165 : vector<128x128xf32>
    %167 = arith.truncf %145 : vector<128x128xf32> to vector<128x128xbf16>
    %cst_31 = arith.constant dense<0.000000e+00> : vector<128x32xf32>
    %168 = tpu.matmul %167, %122, %cst_31 {dimension_numbers = #tpu.dot_dimension_numbers<[1], [0], [0], [1], [0, 0, 1, 1], [], []>} : vector<128x128xbf16>, vector<128x32xbf16>, vector<128x32xf32> -> vector<128x32xf32>
    %169 = vector.broadcast %116 : vector<128x1xf32> to vector<128x32xf32>
    %170 = arith.mulf %168, %169 : vector<128x32xf32>
    %171 = arith.truncf %166 : vector<128x128xf32> to vector<128x128xbf16>
    %cst_32 = arith.constant dense<0.000000e+00> : vector<128x32xf32>
    %172 = tpu.matmul %171, %121, %cst_32 {dimension_numbers = #tpu.dot_dimension_numbers<[1], [0], [0], [1], [0, 0, 1, 1], [], []>} : vector<128x128xbf16>, vector<128x32xbf16>, vector<128x32xf32> -> vector<128x32xf32>
    %173 = vector.broadcast %120 : vector<128x1xf32> to vector<128x32xf32>
    %174 = arith.mulf %172, %173 : vector<128x32xf32>
    %175 = arith.truncf %170 : vector<128x32xf32> to vector<128x32xbf16>
    %176 = arith.subf %96, %170 : vector<128x32xf32>
    %177 = arith.truncf %176 : vector<128x32xf32> to vector<128x32xbf16>
    %178 = arith.mulf %96, %170 : vector<128x32xf32>
    %179 = arith.truncf %178 : vector<128x32xf32> to vector<128x32xbf16>
    %180 = tpu.concatenate %121, %175, %177, %179 in 1 : vector<128x32xbf16>, vector<128x32xbf16>, vector<128x32xbf16>, vector<128x32xbf16> -> vector<128x128xbf16>
    %181 = arith.truncf %174 : vector<128x32xf32> to vector<128x32xbf16>
    %182 = arith.subf %98, %174 : vector<128x32xf32>
    %183 = arith.truncf %182 : vector<128x32xf32> to vector<128x32xbf16>
    %184 = arith.mulf %98, %174 : vector<128x32xf32>
    %185 = arith.truncf %184 : vector<128x32xf32> to vector<128x32xbf16>
    %186 = tpu.concatenate %122, %181, %183, %185 in 1 : vector<128x32xbf16>, vector<128x32xbf16>, vector<128x32xbf16>, vector<128x32xbf16> -> vector<128x128xbf16>
    %187 = tpu.concatenate %88, %180 in 0 : vector<128x128xbf16>, vector<128x128xbf16> -> vector<256x128xbf16>
    %188 = tpu.concatenate %94, %186 in 0 : vector<128x128xbf16>, vector<128x128xbf16> -> vector<256x128xbf16>
    %c0_33 = arith.constant 0 : index
    %c0_34 = arith.constant 0 : index
    %c0_35 = arith.constant 0 : index
    %189 = vector.load %arg5[%c0_33, %c0_34, %c0_35] : memref<2x128x32xf32, #tpu.memory_space<vmem>>, vector<1x128x32xf32>
    %190 = vector.shape_cast %189 : vector<1x128x32xf32> to vector<128x32xf32>
    %191 = arith.truncf %190 : vector<128x32xf32> to vector<128x32xbf16>
    %c1_36 = arith.constant 1 : index
    %c0_37 = arith.constant 0 : index
    %c0_38 = arith.constant 0 : index
    %192 = vector.load %arg5[%c1_36, %c0_37, %c0_38] : memref<2x128x32xf32, #tpu.memory_space<vmem>>, vector<1x128x32xf32>
    %193 = vector.shape_cast %192 : vector<1x128x32xf32> to vector<128x32xf32>
    %194 = arith.truncf %193 : vector<128x32xf32> to vector<128x32xbf16>
    %c0_39 = arith.constant 0 : index
    %c0_40 = arith.constant 0 : index
    %195 = vector.load %arg7[%c0_39, %c0_40] : memref<5x128xf32, #tpu.memory_space<vmem>>, vector<1x32xf32>
    %c1_41 = arith.constant 1 : index
    %c0_42 = arith.constant 0 : index
    %196 = vector.load %arg7[%c1_41, %c0_42] : memref<5x128xf32, #tpu.memory_space<vmem>>, vector<1x32xf32>
    %cst_43 = arith.constant dense<0.000000e+00> : vector<256x32xf32>
    %197 = tpu.matmul %187, %191, %cst_43 {dimension_numbers = #tpu.dot_dimension_numbers<[1], [0], [0], [1], [0, 0, 1, 1], [], []>} : vector<256x128xbf16>, vector<128x32xbf16>, vector<256x32xf32> -> vector<256x32xf32>
    %198 = vector.broadcast %195 : vector<1x32xf32> to vector<256x32xf32>
    %199 = arith.addf %197, %198 : vector<256x32xf32>
    %cst_44 = arith.constant 0.000000e+00 : f32
    %200 = vector.broadcast %cst_44 : f32 to vector<256x32xf32>
    %201 = arith.cmpf oge, %199, %200 : vector<256x32xf32>
    %cst_45 = arith.constant 0.00999999977 : f32
    %202 = vector.broadcast %cst_45 : f32 to vector<256x32xf32>
    %203 = arith.mulf %202, %199 : vector<256x32xf32>
    %204 = arith.select %201, %199, %203 : vector<256x32xi1>, vector<256x32xf32>
    %cst_46 = arith.constant dense<0.000000e+00> : vector<256x32xf32>
    %205 = tpu.matmul %188, %194, %cst_46 {dimension_numbers = #tpu.dot_dimension_numbers<[1], [0], [0], [1], [0, 0, 1, 1], [], []>} : vector<256x128xbf16>, vector<128x32xbf16>, vector<256x32xf32> -> vector<256x32xf32>
    %206 = vector.broadcast %196 : vector<1x32xf32> to vector<256x32xf32>
    %207 = arith.addf %205, %206 : vector<256x32xf32>
    %cst_47 = arith.constant 0.000000e+00 : f32
    %208 = vector.broadcast %cst_47 : f32 to vector<256x32xf32>
    %209 = arith.cmpf oge, %207, %208 : vector<256x32xf32>
    %cst_48 = arith.constant 0.00999999977 : f32
    %210 = vector.broadcast %cst_48 : f32 to vector<256x32xf32>
    %211 = arith.mulf %210, %207 : vector<256x32xf32>
    %212 = arith.select %209, %207, %211 : vector<256x32xi1>, vector<256x32xf32>
    %213 = vector.extract_strided_slice %204 {offsets = [0, 0], sizes = [128, 32], strides = [1, 1]} : vector<256x32xf32> to vector<128x32xf32>
    %214 = vector.extract_strided_slice %212 {offsets = [0, 0], sizes = [128, 32], strides = [1, 1]} : vector<256x32xf32> to vector<128x32xf32>
    %215 = arith.subf %214, %213 : vector<128x32xf32>
    %216 = arith.mulf %214, %213 : vector<128x32xf32>
    %217 = tpu.concatenate %214, %213, %215, %216 in 1 : vector<128x32xf32>, vector<128x32xf32>, vector<128x32xf32>, vector<128x32xf32> -> vector<128x128xf32>
    %cst_49 = arith.constant dense<0xFF800000> : vector<128xf32>
    %218 = vector.multi_reduction <maximumf>, %217, %cst_49 [0] : vector<128x128xf32> to vector<128xf32>
    %219 = vector.shape_cast %218 : vector<128xf32> to vector<1x128xf32>
    %220 = vector.extract_strided_slice %204 {offsets = [128, 0], sizes = [128, 32], strides = [1, 1]} : vector<256x32xf32> to vector<128x32xf32>
    %221 = vector.extract_strided_slice %212 {offsets = [128, 0], sizes = [128, 32], strides = [1, 1]} : vector<256x32xf32> to vector<128x32xf32>
    %222 = arith.subf %221, %220 : vector<128x32xf32>
    %223 = arith.mulf %221, %220 : vector<128x32xf32>
    %224 = tpu.concatenate %221, %220, %222, %223 in 1 : vector<128x32xf32>, vector<128x32xf32>, vector<128x32xf32>, vector<128x32xf32> -> vector<128x128xf32>
    %cst_50 = arith.constant dense<0xFF800000> : vector<128xf32>
    %225 = vector.multi_reduction <maximumf>, %224, %cst_50 [0] : vector<128x128xf32> to vector<128xf32>
    %226 = vector.shape_cast %225 : vector<128xf32> to vector<1x128xf32>
    %227 = tpu.concatenate %219, %226 in 0 : vector<1x128xf32>, vector<1x128xf32> -> vector<2x128xf32>
    %c0_51 = arith.constant 0 : index
    %c0_52 = arith.constant 0 : index
    %c0_53 = arith.constant 0 : index
    %228 = vector.load %arg6[%c0_51, %c0_52, %c0_53] : memref<3x128x128xf32, #tpu.memory_space<vmem>>, vector<1x128x128xf32>
    %229 = vector.shape_cast %228 : vector<1x128x128xf32> to vector<128x128xf32>
    %230 = arith.truncf %229 : vector<128x128xf32> to vector<128x128xbf16>
    %c2 = arith.constant 2 : index
    %c0_54 = arith.constant 0 : index
    %231 = vector.load %arg7[%c2, %c0_54] : memref<5x128xf32, #tpu.memory_space<vmem>>, vector<1x128xf32>
    %232 = arith.truncf %227 : vector<2x128xf32> to vector<2x128xbf16>
    %cst_55 = arith.constant dense<0.000000e+00> : vector<2x128xf32>
    %233 = tpu.matmul %232, %230, %cst_55 {dimension_numbers = #tpu.dot_dimension_numbers<[1], [0], [0], [1], [0, 0, 1, 1], [], []>} : vector<2x128xbf16>, vector<128x128xbf16>, vector<2x128xf32> -> vector<2x128xf32>
    %234 = vector.broadcast %231 : vector<1x128xf32> to vector<2x128xf32>
    %235 = arith.addf %233, %234 : vector<2x128xf32>
    %cst_56 = arith.constant 0.000000e+00 : f32
    %236 = vector.broadcast %cst_56 : f32 to vector<2x128xf32>
    %237 = arith.cmpf oge, %235, %236 : vector<2x128xf32>
    %cst_57 = arith.constant 0.00999999977 : f32
    %238 = vector.broadcast %cst_57 : f32 to vector<2x128xf32>
    %239 = arith.mulf %238, %235 : vector<2x128xf32>
    %240 = arith.select %237, %235, %239 : vector<2x128xi1>, vector<2x128xf32>
    %c1_58 = arith.constant 1 : index
    %c0_59 = arith.constant 0 : index
    %c0_60 = arith.constant 0 : index
    %241 = vector.load %arg6[%c1_58, %c0_59, %c0_60] : memref<3x128x128xf32, #tpu.memory_space<vmem>>, vector<1x128x128xf32>
    %242 = vector.shape_cast %241 : vector<1x128x128xf32> to vector<128x128xf32>
    %243 = arith.truncf %242 : vector<128x128xf32> to vector<128x128xbf16>
    %c3 = arith.constant 3 : index
    %c0_61 = arith.constant 0 : index
    %244 = vector.load %arg7[%c3, %c0_61] : memref<5x128xf32, #tpu.memory_space<vmem>>, vector<1x128xf32>
    %245 = arith.truncf %240 : vector<2x128xf32> to vector<2x128xbf16>
    %cst_62 = arith.constant dense<0.000000e+00> : vector<2x128xf32>
    %246 = tpu.matmul %245, %243, %cst_62 {dimension_numbers = #tpu.dot_dimension_numbers<[1], [0], [0], [1], [0, 0, 1, 1], [], []>} : vector<2x128xbf16>, vector<128x128xbf16>, vector<2x128xf32> -> vector<2x128xf32>
    %247 = vector.broadcast %244 : vector<1x128xf32> to vector<2x128xf32>
    %248 = arith.addf %246, %247 : vector<2x128xf32>
    %cst_63 = arith.constant 0.000000e+00 : f32
    %249 = vector.broadcast %cst_63 : f32 to vector<2x128xf32>
    %250 = arith.cmpf oge, %248, %249 : vector<2x128xf32>
    %cst_64 = arith.constant 0.00999999977 : f32
    %251 = vector.broadcast %cst_64 : f32 to vector<2x128xf32>
    %252 = arith.mulf %251, %248 : vector<2x128xf32>
    %253 = arith.select %250, %248, %252 : vector<2x128xi1>, vector<2x128xf32>
    %c2_65 = arith.constant 2 : index
    %c0_66 = arith.constant 0 : index
    %c0_67 = arith.constant 0 : index
    %254 = vector.load %arg6[%c2_65, %c0_66, %c0_67] : memref<3x128x128xf32, #tpu.memory_space<vmem>>, vector<1x128x128xf32>
    %255 = vector.shape_cast %254 : vector<1x128x128xf32> to vector<128x128xf32>
    %256 = arith.truncf %255 : vector<128x128xf32> to vector<128x128xbf16>
    %c4 = arith.constant 4 : index
    %c0_68 = arith.constant 0 : index
    %257 = vector.load %arg7[%c4, %c0_68] : memref<5x128xf32, #tpu.memory_space<vmem>>, vector<1x128xf32>
    %258 = arith.truncf %253 : vector<2x128xf32> to vector<2x128xbf16>
    %cst_69 = arith.constant dense<0.000000e+00> : vector<2x128xf32>
    %259 = tpu.matmul %258, %256, %cst_69 {dimension_numbers = #tpu.dot_dimension_numbers<[1], [0], [0], [1], [0, 0, 1, 1], [], []>} : vector<2x128xbf16>, vector<128x128xbf16>, vector<2x128xf32> -> vector<2x128xf32>
    %260 = vector.broadcast %257 : vector<1x128xf32> to vector<2x128xf32>
    %261 = arith.addf %259, %260 : vector<2x128xf32>
    %cst_70 = arith.constant 0.000000e+00 : f32
    %262 = vector.broadcast %cst_70 : f32 to vector<2x128xf32>
    %263 = arith.cmpf oge, %261, %262 : vector<2x128xf32>
    %cst_71 = arith.constant 0.00999999977 : f32
    %264 = vector.broadcast %cst_71 : f32 to vector<2x128xf32>
    %265 = arith.mulf %264, %261 : vector<2x128xf32>
    %266 = arith.select %263, %261, %265 : vector<2x128xi1>, vector<2x128xf32>
    %267 = vector.shape_cast %266 : vector<2x128xf32> to vector<2x1x128xf32>
    %c0_72 = arith.constant 0 : index
    %c0_73 = arith.constant 0 : index
    %c0_74 = arith.constant 0 : index
    %268 = vector.load %arg8[%c0_72, %c0_73, %c0_74] : memref<2x1x128xf32, #tpu.memory_space<vmem>>, vector<2x1x128xf32>
    tpu.vector_store %arg8[%c0_72, %c0_73, %c0_74], %267 {strides = array<i32>} : memref<2x1x128xf32, #tpu.memory_space<vmem>>, vector<2x1x128xf32>,
    return
  }
  func.func @transform_0(%arg0: i32, %arg1: memref<2xi32, #tpu.memory_space<smem>>, %arg2: memref<2xi32, #tpu.memory_space<smem>>) -> (i32, i32, i32) {
    %c0_i32 = arith.constant 0 : i32
    %c0_i32_0 = arith.constant 0 : i32
    %c0_i32_1 = arith.constant 0 : i32
    return %arg0, %c0_i32, %c0_i32_0 : i32, i32, i32
  }
  func.func @transform_1(%arg0: i32, %arg1: memref<2xi32, #tpu.memory_space<smem>>, %arg2: memref<2xi32, #tpu.memory_space<smem>>) -> (i32, i32, i32) {
    %c0_i32 = arith.constant 0 : i32
    %c0_i32_0 = arith.constant 0 : i32
    %c0_i32_1 = arith.constant 0 : i32
    return %arg0, %c0_i32, %c0_i32_0 : i32, i32, i32
  }
  func.func @transform_2(%arg0: i32, %arg1: memref<2xi32, #tpu.memory_space<smem>>, %arg2: memref<2xi32, #tpu.memory_space<smem>>) -> (i32, i32, i32) {
    %c0_i32 = arith.constant 0 : i32
    %c0_i32_0 = arith.constant 0 : i32
    %c0_i32_1 = arith.constant 0 : i32
    %c0_i32_2 = arith.constant 0 : i32
    return %c0_i32, %c0_i32_0, %c0_i32_1 : i32, i32, i32
  }
  func.func @transform_3(%arg0: i32, %arg1: memref<2xi32, #tpu.memory_space<smem>>, %arg2: memref<2xi32, #tpu.memory_space<smem>>) -> (i32, i32, i32) {
    %c0_i32 = arith.constant 0 : i32
    %c0_i32_0 = arith.constant 0 : i32
    %c0_i32_1 = arith.constant 0 : i32
    %c0_i32_2 = arith.constant 0 : i32
    return %c0_i32, %c0_i32_0, %c0_i32_1 : i32, i32, i32
  }
  func.func @transform_4(%arg0: i32, %arg1: memref<2xi32, #tpu.memory_space<smem>>, %arg2: memref<2xi32, #tpu.memory_space<smem>>) -> (i32, i32) {
    %c0_i32 = arith.constant 0 : i32
    %c0_i32_0 = arith.constant 0 : i32
    %c0_i32_1 = arith.constant 0 : i32
    return %c0_i32, %c0_i32_0 : i32, i32
  }
  func.func @transform_5(%arg0: i32, %arg1: memref<2xi32, #tpu.memory_space<smem>>, %arg2: memref<2xi32, #tpu.memory_space<smem>>) -> (i32, i32, i32) {
    %c0_i32 = arith.constant 0 : i32
    %c0_i32_0 = arith.constant 0 : i32
    %c0_i32_1 = arith.constant 0 : i32
    return %arg0, %c0_i32, %c0_i32_0 : i32, i32, i32
  }
}

</mosaic_0001>

<llo_original>
// kernel: tpu_custom_call.1
$region0: #{tpu_custom_call.1}
  #allocation0 [shape = 'u32[]', space=smem, size = 0x4, offset = 0x4, fixed_abs, tag = 'smem constant byte address 0x4 - core index']
  #allocation1 [shape = 'u32[144,128]{1,0:T(1,128)}', space=vmem, size = 0x12000, scoped, tag = 'internal scratch']
  #allocation2 [shape = 's32[1]{0}', space=sflag, size = 0x4, scoped, tag = 'scoped memory for tpu_custom_call.1']
  #allocation3 [shape = 'u8[512]{0}', space=smem, size = 0x200, scoped, tag = 'prefetched SMEM operand 0']
  #allocation4 [shape = 'u8[512]{0}', space=smem, size = 0x200, scoped, tag = 'prefetched SMEM operand 1']
  %s0 = inlined_call_operand.vmem [shape: s32[2], index: 0, kind: input, shape index: {}]
  %s1 = inlined_call_operand.vmem [shape: s32[2], index: 1, kind: input, shape index: {}]
  %s2 = inlined_call_operand.vmem [shape: f32[2,128,32], index: 2, kind: input, shape index: {}]
  %s3 = inlined_call_operand.vmem [shape: f32[2,128,32], index: 3, kind: input, shape index: {}]
  %s4 = inlined_call_operand.vmem [shape: f32[2,128,32], index: 4, kind: input, shape index: {}]
  %s5 = inlined_call_operand.vmem [shape: f32[3,128,128], index: 5, kind: input, shape index: {}]
  %s6 = inlined_call_operand.vmem [shape: f32[5,128], index: 6, kind: input, shape index: {}]
  %s7 = inlined_call_operand.hbm [shape: f32[2,1,128], index: 7, kind: output, shape index: {}]
  %s8 = sld [smem:[#allocation0]]
  $region30: #{tpu_custom_call.1} parent=0
    _
  %s10 = ssub.s32 1, %s8
  %s11 = scalar_select 0, %s10, %s8
  %s12 = sshll.u32 %s0, 4
  %s13 = int_to_ptr.vmem [resolvable:$true] %s12
  %15 = dma.vmem_to_smem %s13, 16, [#allocation3], [#allocation2]
  %s16 = sshll.u32 %s1, 4
  %s17 = int_to_ptr.vmem [resolvable:$true] %s16
  %19 = dma.vmem_to_smem %s17, 16, [#allocation4], [#allocation2]
  %20 = dma.done [#allocation2], 32
  %21 = sfence
  $region1: #{tpu_custom_call.1} parent=0
    #allocation5 [shape = 'u8[1024]{0}', space=vmem, size = 0x400, scoped, tag = 'output window, operand 0, single buffered']
    #allocation6 [shape = 's32[1]{0}', space=sflag, size = 0x4, scoped, tag = 'scoped memory for tpu_custom_call.1']
    %22 = vsyncpa [#allocation6], 0
    // Predicated region
    $region2: #{tpu_custom_call.1} parent=1 // pred_check
      _
    $region3: #{tpu_custom_call.1} parent=1 // pred_check_branch
      %24 = sbr.rel (0) target = $region5
    $region4: #{tpu_custom_call.1} parent=1 // pred_region
      _
    $region5: #{tpu_custom_call.1} parent=1 // pred_fallthru
      _
    // Predicated region
    $region6: #{tpu_custom_call.1} parent=1 // pred_check
      _
    $region7: #{tpu_custom_call.1} parent=1 // pred_check_branch
      %26 = sbr.rel (0) target = $region9
    $region8: #{tpu_custom_call.1} parent=1 // pred_region
      _
    $region9: #{tpu_custom_call.1} parent=1 // pred_fallthru
      _
    // Predicated region
    $region10: #{tpu_custom_call.1} parent=1 // pred_check
      _
    $region11: #{tpu_custom_call.1} parent=1 // pred_check_branch
      %28 = sbr.rel (0) target = $region13
    $region12: #{tpu_custom_call.1} parent=1 // pred_region
      _
    $region13: #{tpu_custom_call.1} parent=1 // pred_fallthru
      _
    // Predicated region
    $region14: #{tpu_custom_call.1} parent=1 // pred_check
      _
    $region15: #{tpu_custom_call.1} parent=1 // pred_check_branch
      %30 = sbr.rel (0) target = $region17
    $region16: #{tpu_custom_call.1} parent=1 // pred_region
      _
    $region17: #{tpu_custom_call.1} parent=1 // pred_fallthru
      _
    // Predicated region
    $region18: #{tpu_custom_call.1} parent=1 // pred_check
      _
    $region19: #{tpu_custom_call.1} parent=1 // pred_check_branch
      %32 = sbr.rel (0) target = $region21
    $region20: #{tpu_custom_call.1} parent=1 // pred_region
      _
    $region21: #{tpu_custom_call.1} parent=1 // pred_fallthru
      _
    %s34 = smul.u32 0, 2
    %v35 = vlaneseq
    %v36 = vand.u32 %v35, 127
    %v37 = vlaneseq
    %v38 = vshrl.u32 %v37, 7
    %v39 = vadd.s32 %v38, 8
    %v40 = vadd.s32 %v38, 16
    %v41 = vadd.s32 %v38, 24
    %v42 = vadd.s32 %v38, 32
    %v43 = vadd.s32 %v38, 40
    %v44 = vadd.s32 %v38, 48
    %v45 = vadd.s32 %v38, 56
    %v46 = vadd.s32 %v38, 64
    %v47 = vadd.s32 %v38, 72
    %v48 = vadd.s32 %v38, 80
    %v49 = vadd.s32 %v38, 88
    %v50 = vadd.s32 %v38, 96
    %v51 = vadd.s32 %v38, 104
    %v52 = vadd.s32 %v38, 112
    %v53 = vadd.s32 %v38, 120
    %v54 = vld [vmem:[%s2] sm:$0xff]
    %v55 = vld [vmem:[%s2 + $0x8] sm:$0xff]
    %v56 = vld [vmem:[%s2 + $0x10] sm:$0xff]
    %v57 = vld [vmem:[%s2 + $0x18] sm:$0xff]
    %v58 = vld [vmem:[%s2 + $0x20] sm:$0xff]
    %v59 = vld [vmem:[%s2 + $0x28] sm:$0xff]
    %v60 = vld [vmem:[%s2 + $0x30] sm:$0xff]
    %v61 = vld [vmem:[%s2 + $0x38] sm:$0xff]
    %v62 = vld [vmem:[%s2 + $0x40] sm:$0xff]
    %v63 = vld [vmem:[%s2 + $0x48] sm:$0xff]
    %v64 = vld [vmem:[%s2 + $0x50] sm:$0xff]
    %v65 = vld [vmem:[%s2 + $0x58] sm:$0xff]
    %v66 = vld [vmem:[%s2 + $0x60] sm:$0xff]
    %v67 = vld [vmem:[%s2 + $0x68] sm:$0xff]
    %v68 = vld [vmem:[%s2 + $0x70] sm:$0xff]
    %v69 = vld [vmem:[%s2 + $0x78] sm:$0xff]
    %v70 = vld [vmem:[%s3] sm:$0xff]
    %v71 = vld [vmem:[%s3 + $0x8] sm:$0xff]
    %v72 = vld [vmem:[%s3 + $0x10] sm:$0xff]
    %v73 = vld [vmem:[%s3 + $0x18] sm:$0xff]
    %v74 = vld [vmem:[%s3 + $0x20] sm:$0xff]
    %v75 = vld [vmem:[%s3 + $0x28] sm:$0xff]
    %v76 = vld [vmem:[%s3 + $0x30] sm:$0xff]
    %v77 = vld [vmem:[%s3 + $0x38] sm:$0xff]
    %v78 = vld [vmem:[%s3 + $0x40] sm:$0xff]
    %v79 = vld [vmem:[%s3 + $0x48] sm:$0xff]
    %v80 = vld [vmem:[%s3 + $0x50] sm:$0xff]
    %v81 = vld [vmem:[%s3 + $0x58] sm:$0xff]
    %v82 = vld [vmem:[%s3 + $0x60] sm:$0xff]
    %v83 = vld [vmem:[%s3 + $0x68] sm:$0xff]
    %v84 = vld [vmem:[%s3 + $0x70] sm:$0xff]
    %v85 = vld [vmem:[%s3 + $0x78] sm:$0xff]
    %s86 = sld [smem:[#allocation3 + %s34]]
    %s87 = sld [smem:[#allocation4 + %s34]]
    %v88 = vstv %s86
    %vm89 = vcmp.lt.s32.totalorder %v36, %v88
    %v90 = vsel %vm89, 1, 0
    %v91 = vcvt.s32.f32 %v90
    %v92 = vstv %s87
    %vm93 = vcmp.lt.s32.totalorder %v36, %v92
    %v94 = vsel %vm93, 1, 0
    %v95 = vcvt.s32.f32 %v94
    %vm96 = vcmp.lt.s32.totalorder %v38, %v88
    %vm97 = vcmp.lt.s32.totalorder %v39, %v88
    %vm98 = vcmp.lt.s32.totalorder %v40, %v88
    %vm99 = vcmp.lt.s32.totalorder %v41, %v88
    %vm100 = vcmp.lt.s32.totalorder %v42, %v88
    %vm101 = vcmp.lt.s32.totalorder %v43, %v88
    %vm102 = vcmp.lt.s32.totalorder %v44, %v88
    %vm103 = vcmp.lt.s32.totalorder %v45, %v88
    %vm104 = vcmp.lt.s32.totalorder %v46, %v88
    %vm105 = vcmp.lt.s32.totalorder %v47, %v88
    %vm106 = vcmp.lt.s32.totalorder %v48, %v88
    %vm107 = vcmp.lt.s32.totalorder %v49, %v88
    %vm108 = vcmp.lt.s32.totalorder %v50, %v88
    %vm109 = vcmp.lt.s32.totalorder %v51, %v88
    %vm110 = vcmp.lt.s32.totalorder %v52, %v88
    %vm111 = vcmp.lt.s32.totalorder %v53, %v88
    %v112 = vsel %vm96, 1, 0
    %v113 = vsel %vm97, 1, 0
    %v114 = vsel %vm98, 1, 0
    %v115 = vsel %vm99, 1, 0
    %v116 = vsel %vm100, 1, 0
    %v117 = vsel %vm101, 1, 0
    %v118 = vsel %vm102, 1, 0
    %v119 = vsel %vm103, 1, 0
    %v120 = vsel %vm104, 1, 0
    %v121 = vsel %vm105, 1, 0
    %v122 = vsel %vm106, 1, 0
    %v123 = vsel %vm107, 1, 0
    %v124 = vsel %vm108, 1, 0
    %v125 = vsel %vm109, 1, 0
    %v126 = vsel %vm110, 1, 0
    %v127 = vsel %vm111, 1, 0
    %v128 = vcvt.s32.f32 %v112
    %v129 = vcvt.s32.f32 %v113
    %v130 = vcvt.s32.f32 %v114
    %v131 = vcvt.s32.f32 %v115
    %v132 = vcvt.s32.f32 %v116
    %v133 = vcvt.s32.f32 %v117
    %v134 = vcvt.s32.f32 %v118
    %v135 = vcvt.s32.f32 %v119
    %v136 = vcvt.s32.f32 %v120
    %v137 = vcvt.s32.f32 %v121
    %v138 = vcvt.s32.f32 %v122
    %v139 = vcvt.s32.f32 %v123
    %v140 = vcvt.s32.f32 %v124
    %v141 = vcvt.s32.f32 %v125
    %v142 = vcvt.s32.f32 %v126
    %v143 = vcvt.s32.f32 %v127
    %vm144 = vcmp.lt.s32.totalorder %v38, %v92
    %vm145 = vcmp.lt.s32.totalorder %v39, %v92
    %vm146 = vcmp.lt.s32.totalorder %v40, %v92
    %vm147 = vcmp.lt.s32.totalorder %v41, %v92
    %vm148 = vcmp.lt.s32.totalorder %v42, %v92
    %vm149 = vcmp.lt.s32.totalorder %v43, %v92
    %vm150 = vcmp.lt.s32.totalorder %v44, %v92
    %vm151 = vcmp.lt.s32.totalorder %v45, %v92
    %vm152 = vcmp.lt.s32.totalorder %v46, %v92
    %vm153 = vcmp.lt.s32.totalorder %v47, %v92
    %vm154 = vcmp.lt.s32.totalorder %v48, %v92
    %vm155 = vcmp.lt.s32.totalorder %v49, %v92
    %vm156 = vcmp.lt.s32.totalorder %v50, %v92
    %vm157 = vcmp.lt.s32.totalorder %v51, %v92
    %vm158 = vcmp.lt.s32.totalorder %v52, %v92
    %vm159 = vcmp.lt.s32.totalorder %v53, %v92
    %v160 = vsel %vm144, 1, 0
    %v161 = vsel %vm145, 1, 0
    %v162 = vsel %vm146, 1, 0
    %v163 = vsel %vm147, 1, 0
    %v164 = vsel %vm148, 1, 0
    %v165 = vsel %vm149, 1, 0
    %v166 = vsel %vm150, 1, 0
    %v167 = vsel %vm151, 1, 0
    %v168 = vsel %vm152, 1, 0
    %v169 = vsel %vm153, 1, 0
    %v170 = vsel %vm154, 1, 0
    %v171 = vsel %vm155, 1, 0
    %v172 = vsel %vm156, 1, 0
    %v173 = vsel %vm157, 1, 0
    %v174 = vsel %vm158, 1, 0
    %v175 = vsel %vm159, 1, 0
    %v176 = vcvt.s32.f32 %v160
    %v177 = vcvt.s32.f32 %v161
    %v178 = vcvt.s32.f32 %v162
    %v179 = vcvt.s32.f32 %v163
    %v180 = vcvt.s32.f32 %v164
    %v181 = vcvt.s32.f32 %v165
    %v182 = vcvt.s32.f32 %v166
    %v183 = vcvt.s32.f32 %v167
    %v184 = vcvt.s32.f32 %v168
    %v185 = vcvt.s32.f32 %v169
    %v186 = vcvt.s32.f32 %v170
    %v187 = vcvt.s32.f32 %v171
    %v188 = vcvt.s32.f32 %v172
    %v189 = vcvt.s32.f32 %v173
    %v190 = vcvt.s32.f32 %v174
    %v191 = vcvt.s32.f32 %v175
    %v192 = vpack.c.bf16 %v55, %v54
    %v193 = vpack.c.bf16 %v57, %v56
    %v194 = vpack.c.bf16 %v59, %v58
    %v195 = vpack.c.bf16 %v61, %v60
    %v196 = vpack.c.bf16 %v63, %v62
    %v197 = vpack.c.bf16 %v65, %v64
    %v198 = vpack.c.bf16 %v67, %v66
    %v199 = vpack.c.bf16 %v69, %v68
    %v200 = vpack.c.bf16 %v71, %v70
    %v201 = vpack.c.bf16 %v73, %v72
    %v202 = vpack.c.bf16 %v75, %v74
    %v203 = vpack.c.bf16 %v77, %v76
    %v204 = vpack.c.bf16 %v79, %v78
    %v205 = vpack.c.bf16 %v81, %v80
    %v206 = vpack.c.bf16 %v83, %v82
    %v207 = vpack.c.bf16 %v85, %v84
    %vm208 = vcmask 261120
    %v210 = vsel %vm208, %v192, 0
    %v213 = vsel %vm208, %v193, 0
    %v216 = vsel %vm208, %v194, 0
    %v219 = vsel %vm208, %v195, 0
    %v222 = vsel %vm208, %v196, 0
    %v225 = vsel %vm208, %v197, 0
    %v228 = vsel %vm208, %v198, 0
    %v231 = vsel %vm208, %v199, 0
    %v234 = vsel %vm208, %v200, 0
    %v237 = vsel %vm208, %v201, 0
    %v240 = vsel %vm208, %v202, 0
    %v243 = vsel %vm208, %v203, 0
    %v246 = vsel %vm208, %v204, 0
    %v249 = vsel %vm208, %v205, 0
    %v252 = vsel %vm208, %v206, 0
    %v255 = vsel %vm208, %v207, 0
    %257 = vmatprep.subr.bf16.mxu0 0
    %258 = vmatpush1.bf16.xpose.msra.mxu0 %v234
    %259 = vmatprep.subr.bf16.mxu0 0
    %260 = vmatpush1.bf16.xpose.msra.mxu0 %v237
    %261 = vmatprep.subr.bf16.mxu0 0
    %262 = vmatpush1.bf16.xpose.msra.mxu0 %v240
    %263 = vmatprep.subr.bf16.mxu0 0
    %264 = vmatpush1.bf16.xpose.msra.mxu0 %v243
    %265 = vmatprep.subr.bf16.mxu0 0
    %266 = vmatpush1.bf16.xpose.msra.mxu0 %v246
    %267 = vmatprep.subr.bf16.mxu0 0
    %268 = vmatpush1.bf16.xpose.msra.mxu0 %v249
    %269 = vmatprep.subr.bf16.mxu0 0
    %270 = vmatpush1.bf16.xpose.msra.mxu0 %v252
    %271 = vmatprep.subr.bf16.mxu0 0
    %272 = vmatpush1.bf16.xpose.msra.mxu0 %v255
    %273 = vmatprep.subr.bf16.mxu0 0
    %274 = vmatpush1.bf16.xpose.msra.mxu0 0
    %275 = vmatprep.subr.bf16.mxu0 0
    %276 = vmatpush1.bf16.xpose.msra.mxu0 0
    %277 = vmatprep.subr.bf16.mxu0 0
    %278 = vmatpush1.bf16.xpose.msra.mxu0 0
    %279 = vmatprep.subr.bf16.mxu0 0
    %280 = vmatpush1.bf16.xpose.msra.mxu0 0
    %281 = vmatprep.subr.bf16.mxu0 0
    %282 = vmatpush1.bf16.xpose.msra.mxu0 0
    %283 = vmatprep.subr.bf16.mxu0 0
    %284 = vmatpush1.bf16.xpose.msra.mxu0 0
    %285 = vmatprep.subr.bf16.mxu0 0
    %286 = vmatpush1.bf16.xpose.msra.mxu0 0
    %287 = vmatprep.subr.bf16.mxu0 0
    %288 = vmatpush1.bf16.xpose.msra.mxu0 0
    %289 = vmatprep.mubr.bf16.mxu0 0
    %290 = vmatmul.mubr.bf16.gmra.mrb[0].mxu0 %v210
    %v291 = vpop.f32.mrb[0].mxu0
    %v292 = vadd.f32 0.0, %v291
    %v293 = vpop.f32.mrb[0].mxu0
    %v294 = vpop.f32.mrb[0].mxu0
    %v295 = vadd.f32 0.0, %v294
    %v296 = vpop.f32.mrb[0].mxu0
    %297 = vmatprep.mubr.bf16.mxu0 0
    %298 = vmatmul.mubr.bf16.gmra.mrb[0].mxu0 %v213
    %v299 = vpop.f32.mrb[0].mxu0
    %v300 = vadd.f32 0.0, %v299
    %v301 = vpop.f32.mrb[0].mxu0
    %v302 = vpop.f32.mrb[0].mxu0
    %v303 = vadd.f32 0.0, %v302
    %v304 = vpop.f32.mrb[0].mxu0
    %305 = vmatprep.mubr.bf16.mxu0 0
    %306 = vmatmul.mubr.bf16.gmra.mrb[0].mxu0 %v216
    %v307 = vpop.f32.mrb[0].mxu0
    %v308 = vadd.f32 0.0, %v307
    %v309 = vpop.f32.mrb[0].mxu0
    %v310 = vpop.f32.mrb[0].mxu0
    %v311 = vadd.f32 0.0, %v310
    %v312 = vpop.f32.mrb[0].mxu0
    %313 = vmatprep.mubr.bf16.mxu0 0
    %314 = vmatmul.mubr.bf16.gmra.mrb[0].mxu0 %v219
    %v315 = vpop.f32.mrb[0].mxu0
    %v316 = vadd.f32 0.0, %v315
    %v317 = vpop.f32.mrb[0].mxu0
    %v318 = vpop.f32.mrb[0].mxu0
    %v319 = vadd.f32 0.0, %v318
    %v320 = vpop.f32.mrb[0].mxu0
    %321 = vmatprep.mubr.bf16.mxu0 0
    %322 = vmatmul.mubr.bf16.gmra.mrb[0].mxu0 %v222
    %v323 = vpop.f32.mrb[0].mxu0
    %v324 = vadd.f32 0.0, %v323
    %v325 = vpop.f32.mrb[0].mxu0
    %v326 = vpop.f32.mrb[0].mxu0
    %v327 = vadd.f32 0.0, %v326
    %v328 = vpop.f32.mrb[0].mxu0
    %329 = vmatprep.mubr.bf16.mxu0 0
    %330 = vmatmul.mubr.bf16.gmra.mrb[0].mxu0 %v225
    %v331 = vpop.f32.mrb[0].mxu0
    %v332 = vadd.f32 0.0, %v331
    %v333 = vpop.f32.mrb[0].mxu0
    %v334 = vpop.f32.mrb[0].mxu0
    %v335 = vadd.f32 0.0, %v334
    %v336 = vpop.f32.mrb[0].mxu0
    %337 = vmatprep.mubr.bf16.mxu0 0
    %338 = vmatmul.mubr.bf16.gmra.mrb[0].mxu0 %v228
    %v339 = vpop.f32.mrb[0].mxu0
    %v340 = vadd.f32 0.0, %v339
    %v341 = vpop.f32.mrb[0].mxu0
    %v342 = vpop.f32.mrb[0].mxu0
    %v343 = vadd.f32 0.0, %v342
    %v344 = vpop.f32.mrb[0].mxu0
    %345 = vmatprep.mubr.bf16.mxu0 0
    %346 = vmatmul.mubr.bf16.gmra.mrb[0].mxu0 %v231
    %v347 = vpop.f32.mrb[0].mxu0
    %v348 = vadd.f32 0.0, %v347
    %v349 = vpop.f32.mrb[0].mxu0
    %v350 = vpop.f32.mrb[0].mxu0
    %v351 = vadd.f32 0.0, %v350
    %v352 = vpop.f32.mrb[0].mxu0
    %353 = vdwg.mxu0
    %354 = vxpose.xlu0.b32.start [1/16] %v292, 128
    %355 = vxpose.xlu0.b32.cont [2/16] %v295, 128
    %356 = vxpose.xlu0.b32.cont [3/16] %v300, 128
    %357 = vxpose.xlu0.b32.cont [4/16] %v303, 128
    %358 = vxpose.xlu0.b32.cont [5/16] %v308, 128
    %359 = vxpose.xlu0.b32.cont [6/16] %v311, 128
    %360 = vxpose.xlu0.b32.cont [7/16] %v316, 128
    %361 = vxpose.xlu0.b32.cont [8/16] %v319, 128
    %362 = vxpose.xlu0.b32.cont [9/16] %v324, 128
    %363 = vxpose.xlu0.b32.cont [10/16] %v327, 128
    %364 = vxpose.xlu0.b32.cont [11/16] %v332, 128
    %365 = vxpose.xlu0.b32.cont [12/16] %v335, 128
    %366 = vxpose.xlu0.b32.cont [13/16] %v340, 128
    %367 = vxpose.xlu0.b32.cont [14/16] %v343, 128
    %368 = vxpose.xlu0.b32.cont [15/16] %v348, 128
    %369 = vxpose.xlu0.b32.end [16/16] %v351, 128
    %v370 = vpop.trf.xlu0
    %v371 = vpop.trf.xlu0
    %v372 = vpop.trf.xlu0
    %v373 = vpop.trf.xlu0
    %v374 = vpop.trf.xlu0
    %v375 = vpop.trf.xlu0
    %v376 = vpop.trf.xlu0
    %v377 = vpop.trf.xlu0
    %v378 = vpop.trf.xlu0
    %v379 = vpop.trf.xlu0
    %v380 = vpop.trf.xlu0
    %v381 = vpop.trf.xlu0
    %v382 = vpop.trf.xlu0
    %v383 = vpop.trf.xlu0
    %v384 = vpop.trf.xlu0
    %v385 = vpop.trf.xlu0
    %v386 = vmul.f32 %v292, %v95
    %v387 = vmul.f32 %v295, %v95
    %v388 = vmul.f32 %v300, %v95
    %v389 = vmul.f32 %v303, %v95
    %v390 = vmul.f32 %v308, %v95
    %v391 = vmul.f32 %v311, %v95
    %v392 = vmul.f32 %v316, %v95
    %v393 = vmul.f32 %v319, %v95
    %v394 = vmul.f32 %v324, %v95
    %v395 = vmul.f32 %v327, %v95
    %v396 = vmul.f32 %v332, %v95
    %v397 = vmul.f32 %v335, %v95
    %v398 = vmul.f32 %v340, %v95
    %v399 = vmul.f32 %v343, %v95
    %v400 = vmul.f32 %v348, %v95
    %v401 = vmul.f32 %v351, %v95
    %402 = vmax.xlane.f32.xlu0 %v386
    %v403 = vpop.xlane.xlu0 %402
    %404 = vmax.xlane.f32.xlu0 %v387
    %v405 = vpop.xlane.xlu0 %404
    %406 = vmax.xlane.f32.xlu0 %v388
    %v407 = vpop.xlane.xlu0 %406
    %408 = vmax.xlane.f32.xlu0 %v389
    %v409 = vpop.xlane.xlu0 %408
    %410 = vmax.xlane.f32.xlu0 %v390
    %v411 = vpop.xlane.xlu0 %410
    %412 = vmax.xlane.f32.xlu0 %v391
    %v413 = vpop.xlane.xlu0 %412
    %414 = vmax.xlane.f32.xlu0 %v392
    %v415 = vpop.xlane.xlu0 %414
    %416 = vmax.xlane.f32.xlu0 %v393
    %v417 = vpop.xlane.xlu0 %416
    %418 = vmax.xlane.f32.xlu0 %v394
    %v419 = vpop.xlane.xlu0 %418
    %420 = vmax.xlane.f32.xlu0 %v395
    %v421 = vpop.xlane.xlu0 %420
    %422 = vmax.xlane.f32.xlu0 %v396
    %v423 = vpop.xlane.xlu0 %422
    %424 = vmax.xlane.f32.xlu0 %v397
    %v425 = vpop.xlane.xlu0 %424
    %426 = vmax.xlane.f32.xlu0 %v398
    %v427 = vpop.xlane.xlu0 %426
    %428 = vmax.xlane.f32.xlu0 %v399
    %v429 = vpop.xlane.xlu0 %428
    %430 = vmax.xlane.f32.xlu0 %v400
    %v431 = vpop.xlane.xlu0 %430
    %432 = vmax.xlane.f32.xlu0 %v401
    %v433 = vpop.xlane.xlu0 %432
    %v434 = vsub.f32 %v386, %v403
    %v435 = vsub.f32 %v387, %v405
    %v436 = vsub.f32 %v388, %v407
    %v437 = vsub.f32 %v389, %v409
    %v438 = vsub.f32 %v390, %v411
    %v439 = vsub.f32 %v391, %v413
    %v440 = vsub.f32 %v392, %v415
    %v441 = vsub.f32 %v393, %v417
    %v442 = vsub.f32 %v394, %v419
    %v443 = vsub.f32 %v395, %v421
    %v444 = vsub.f32 %v396, %v423
    %v445 = vsub.f32 %v397, %v425
    %v446 = vsub.f32 %v398, %v427
    %v447 = vsub.f32 %v399, %v429
    %v448 = vsub.f32 %v400, %v431
    %v449 = vsub.f32 %v401, %v433
    %v450 = vmul.f32 %v434, 1.442695
    %v451 = vpow.pop %v450
    %v452 = vmul.f32 %v435, 1.442695
    %v453 = vpow.pop %v452
    %v454 = vmul.f32 %v436, 1.442695
    %v455 = vpow.pop %v454
    %v456 = vmul.f32 %v437, 1.442695
    %v457 = vpow.pop %v456
    %v458 = vmul.f32 %v438, 1.442695
    %v459 = vpow.pop %v458
    %v460 = vmul.f32 %v439, 1.442695
    %v461 = vpow.pop %v460
    %v462 = vmul.f32 %v440, 1.442695
    %v463 = vpow.pop %v462
    %v464 = vmul.f32 %v441, 1.442695
    %v465 = vpow.pop %v464
    %v466 = vmul.f32 %v442, 1.442695
    %v467 = vpow.pop %v466
    %v468 = vmul.f32 %v443, 1.442695
    %v469 = vpow.pop %v468
    %v470 = vmul.f32 %v444, 1.442695
    %v471 = vpow.pop %v470
    %v472 = vmul.f32 %v445, 1.442695
    %v473 = vpow.pop %v472
    %v474 = vmul.f32 %v446, 1.442695
    %v475 = vpow.pop %v474
    %v476 = vmul.f32 %v447, 1.442695
    %v477 = vpow.pop %v476
    %v478 = vmul.f32 %v448, 1.442695
    %v479 = vpow.pop %v478
    %v480 = vmul.f32 %v449, 1.442695
    %v481 = vpow.pop %v480
    %482 = vadd.xlane.f32.xlu0 %v451
    %v483 = vpop.xlane.xlu0 %482
    %484 = vadd.xlane.f32.xlu0 %v453
    %v485 = vpop.xlane.xlu0 %484
    %486 = vadd.xlane.f32.xlu0 %v455
    %v487 = vpop.xlane.xlu0 %486
    %488 = vadd.xlane.f32.xlu0 %v457
    %v489 = vpop.xlane.xlu0 %488
    %490 = vadd.xlane.f32.xlu0 %v459
    %v491 = vpop.xlane.xlu0 %490
    %492 = vadd.xlane.f32.xlu0 %v461
    %v493 = vpop.xlane.xlu0 %492
    %494 = vadd.xlane.f32.xlu0 %v463
    %v495 = vpop.xlane.xlu0 %494
    %496 = vadd.xlane.f32.xlu0 %v465
    %v497 = vpop.xlane.xlu0 %496
    %498 = vadd.xlane.f32.xlu0 %v467
    %v499 = vpop.xlane.xlu0 %498
    %500 = vadd.xlane.f32.xlu0 %v469
    %v501 = vpop.xlane.xlu0 %500
    %502 = vadd.xlane.f32.xlu0 %v471
    %v503 = vpop.xlane.xlu0 %502
    %504 = vadd.xlane.f32.xlu0 %v473
    %v505 = vpop.xlane.xlu0 %504
    %506 = vadd.xlane.f32.xlu0 %v475
    %v507 = vpop.xlane.xlu0 %506
    %508 = vadd.xlane.f32.xlu0 %v477
    %v509 = vpop.xlane.xlu0 %508
    %510 = vadd.xlane.f32.xlu0 %v479
    %v511 = vpop.xlane.xlu0 %510
    %512 = vadd.xlane.f32.xlu0 %v481
    %v513 = vpop.xlane.xlu0 %512
    %v514 = vrcp.pop %v483
    %v515 = vrcp.pop %v485
    %v516 = vrcp.pop %v487
    %v517 = vrcp.pop %v489
    %v518 = vrcp.pop %v491
    %v519 = vrcp.pop %v493
    %v520 = vrcp.pop %v495
    %v521 = vrcp.pop %v497
    %v522 = vrcp.pop %v499
    %v523 = vrcp.pop %v501
    %v524 = vrcp.pop %v503
    %v525 = vrcp.pop %v505
    %v526 = vrcp.pop %v507
    %v527 = vrcp.pop %v509
    %v528 = vrcp.pop %v511
    %v529 = vrcp.pop %v513
    %v530 = vmul.f32 %v451, %v514
    %v531 = vmul.f32 %v453, %v515
    %v532 = vmul.f32 %v455, %v516
    %v533 = vmul.f32 %v457, %v517
    %v534 = vmul.f32 %v459, %v518
    %v535 = vmul.f32 %v461, %v519
    %v536 = vmul.f32 %v463, %v520
    %v537 = vmul.f32 %v465, %v521
    %v538 = vmul.f32 %v467, %v522
    %v539 = vmul.f32 %v469, %v523
    %v540 = vmul.f32 %v471, %v524
    %v541 = vmul.f32 %v473, %v525
    %v542 = vmul.f32 %v475, %v526
    %v543 = vmul.f32 %v477, %v527
    %v544 = vmul.f32 %v479, %v528
    %v545 = vmul.f32 %v481, %v529
    %v546 = vmul.f32 %v530, %v95
    %v547 = vmul.f32 %v531, %v95
    %v548 = vmul.f32 %v532, %v95
    %v549 = vmul.f32 %v533, %v95
    %v550 = vmul.f32 %v534, %v95
    %v551 = vmul.f32 %v535, %v95
    %v552 = vmul.f32 %v536, %v95
    %v553 = vmul.f32 %v537, %v95
    %v554 = vmul.f32 %v538, %v95
    %v555 = vmul.f32 %v539, %v95
    %v556 = vmul.f32 %v540, %v95
    %v557 = vmul.f32 %v541, %v95
    %v558 = vmul.f32 %v542, %v95
    %v559 = vmul.f32 %v543, %v95
    %v560 = vmul.f32 %v544, %v95
    %v561 = vmul.f32 %v545, %v95
    %562 = vadd.xlane.f32.xlu0 %v546
    %v563 = vpop.xlane.xlu0 %562
    %564 = vadd.xlane.f32.xlu0 %v547
    %v565 = vpop.xlane.xlu0 %564
    %566 = vadd.xlane.f32.xlu0 %v548
    %v567 = vpop.xlane.xlu0 %566
    %568 = vadd.xlane.f32.xlu0 %v549
    %v569 = vpop.xlane.xlu0 %568
    %570 = vadd.xlane.f32.xlu0 %v550
    %v571 = vpop.xlane.xlu0 %570
    %572 = vadd.xlane.f32.xlu0 %v551
    %v573 = vpop.xlane.xlu0 %572
    %574 = vadd.xlane.f32.xlu0 %v552
    %v575 = vpop.xlane.xlu0 %574
    %576 = vadd.xlane.f32.xlu0 %v553
    %v577 = vpop.xlane.xlu0 %576
    %578 = vadd.xlane.f32.xlu0 %v554
    %v579 = vpop.xlane.xlu0 %578
    %580 = vadd.xlane.f32.xlu0 %v555
    %v581 = vpop.xlane.xlu0 %580
    %582 = vadd.xlane.f32.xlu0 %v556
    %v583 = vpop.xlane.xlu0 %582
    %584 = vadd.xlane.f32.xlu0 %v557
    %v585 = vpop.xlane.xlu0 %584
    %586 = vadd.xlane.f32.xlu0 %v558
    %v587 = vpop.xlane.xlu0 %586
    %588 = vadd.xlane.f32.xlu0 %v559
    %v589 = vpop.xlane.xlu0 %588
    %590 = vadd.xlane.f32.xlu0 %v560
    %v591 = vpop.xlane.xlu0 %590
    %592 = vadd.xlane.f32.xlu0 %v561
    %v593 = vpop.xlane.xlu0 %592
    %v594 = vadd.f32 %v563, 1e-13
    %v595 = vadd.f32 %v565, 1e-13
    %v596 = vadd.f32 %v567, 1e-13
    %v597 = vadd.f32 %v569, 1e-13
    %v598 = vadd.f32 %v571, 1e-13
    %v599 = vadd.f32 %v573, 1e-13
    %v600 = vadd.f32 %v575, 1e-13
    %v601 = vadd.f32 %v577, 1e-13
    %v602 = vadd.f32 %v579, 1e-13
    %v603 = vadd.f32 %v581, 1e-13
    %v604 = vadd.f32 %v583, 1e-13
    %v605 = vadd.f32 %v585, 1e-13
    %v606 = vadd.f32 %v587, 1e-13
    %v607 = vadd.f32 %v589, 1e-13
    %v608 = vadd.f32 %v591, 1e-13
    %v609 = vadd.f32 %v593, 1e-13
    %v610 = vrcp.pop %v594
    %v611 = vrcp.pop %v595
    %v612 = vrcp.pop %v596
    %v613 = vrcp.pop %v597
    %v614 = vrcp.pop %v598
    %v615 = vrcp.pop %v599
    %v616 = vrcp.pop %v600
    %v617 = vrcp.pop %v601
    %v618 = vrcp.pop %v602
    %v619 = vrcp.pop %v603
    %v620 = vrcp.pop %v604
    %v621 = vrcp.pop %v605
    %v622 = vrcp.pop %v606
    %v623 = vrcp.pop %v607
    %v624 = vrcp.pop %v608
    %v625 = vrcp.pop %v609
    %v626 = vmul.f32 %v546, %v610
    %v627 = vmul.f32 %v547, %v611
    %v628 = vmul.f32 %v548, %v612
    %v629 = vmul.f32 %v549, %v613
    %v630 = vmul.f32 %v550, %v614
    %v631 = vmul.f32 %v551, %v615
    %v632 = vmul.f32 %v552, %v616
    %v633 = vmul.f32 %v553, %v617
    %v634 = vmul.f32 %v554, %v618
    %v635 = vmul.f32 %v555, %v619
    %v636 = vmul.f32 %v556, %v620
    %v637 = vmul.f32 %v557, %v621
    %v638 = vmul.f32 %v558, %v622
    %v639 = vmul.f32 %v559, %v623
    %v640 = vmul.f32 %v560, %v624
    %v641 = vmul.f32 %v561, %v625
    %v642 = vmul.f32 %v370, %v91
    %v643 = vmul.f32 %v371, %v91
    %v644 = vmul.f32 %v372, %v91
    %v645 = vmul.f32 %v373, %v91
    %v646 = vmul.f32 %v374, %v91
    %v647 = vmul.f32 %v375, %v91
    %v648 = vmul.f32 %v376, %v91
    %v649 = vmul.f32 %v377, %v91
    %v650 = vmul.f32 %v378, %v91
    %v651 = vmul.f32 %v379, %v91
    %v652 = vmul.f32 %v380, %v91
    %v653 = vmul.f32 %v381, %v91
    %v654 = vmul.f32 %v382, %v91
    %v655 = vmul.f32 %v383, %v91
    %v656 = vmul.f32 %v384, %v91
    %v657 = vmul.f32 %v385, %v91
    %658 = vmax.xlane.f32.xlu0 %v642
    %v659 = vpop.xlane.xlu0 %658
    %660 = vmax.xlane.f32.xlu0 %v643
    %v661 = vpop.xlane.xlu0 %660
    %662 = vmax.xlane.f32.xlu0 %v644
    %v663 = vpop.xlane.xlu0 %662
    %664 = vmax.xlane.f32.xlu0 %v645
    %v665 = vpop.xlane.xlu0 %664
    %666 = vmax.xlane.f32.xlu0 %v646
    %v667 = vpop.xlane.xlu0 %666
    %668 = vmax.xlane.f32.xlu0 %v647
    %v669 = vpop.xlane.xlu0 %668
    %670 = vmax.xlane.f32.xlu0 %v648
    %v671 = vpop.xlane.xlu0 %670
    %672 = vmax.xlane.f32.xlu0 %v649
    %v673 = vpop.xlane.xlu0 %672
    %674 = vmax.xlane.f32.xlu0 %v650
    %v675 = vpop.xlane.xlu0 %674
    %676 = vmax.xlane.f32.xlu0 %v651
    %v677 = vpop.xlane.xlu0 %676
    %678 = vmax.xlane.f32.xlu0 %v652
    %v679 = vpop.xlane.xlu0 %678
    %680 = vmax.xlane.f32.xlu0 %v653
    %v681 = vpop.xlane.xlu0 %680
    %682 = vmax.xlane.f32.xlu0 %v654
    %v683 = vpop.xlane.xlu0 %682
    %684 = vmax.xlane.f32.xlu0 %v655
    %v685 = vpop.xlane.xlu0 %684
    %686 = vmax.xlane.f32.xlu0 %v656
    %v687 = vpop.xlane.xlu0 %686
    %688 = vmax.xlane.f32.xlu0 %v657
    %v689 = vpop.xlane.xlu0 %688
    %v690 = vsub.f32 %v642, %v659
    %v691 = vsub.f32 %v643, %v661
    %v692 = vsub.f32 %v644, %v663
    %v693 = vsub.f32 %v645, %v665
    %v694 = vsub.f32 %v646, %v667
    %v695 = vsub.f32 %v647, %v669
    %v696 = vsub.f32 %v648, %v671
    %v697 = vsub.f32 %v649, %v673
    %v698 = vsub.f32 %v650, %v675
    %v699 = vsub.f32 %v651, %v677
    %v700 = vsub.f32 %v652, %v679
    %v701 = vsub.f32 %v653, %v681
    %v702 = vsub.f32 %v654, %v683
    %v703 = vsub.f32 %v655, %v685
    %v704 = vsub.f32 %v656, %v687
    %v705 = vsub.f32 %v657, %v689
    %v706 = vmul.f32 %v690, 1.442695
    %v707 = vpow.pop %v706
    %v708 = vmul.f32 %v691, 1.442695
    %v709 = vpow.pop %v708
    %v710 = vmul.f32 %v692, 1.442695
    %v711 = vpow.pop %v710
    %v712 = vmul.f32 %v693, 1.442695
    %v713 = vpow.pop %v712
    %v714 = vmul.f32 %v694, 1.442695
    %v715 = vpow.pop %v714
    %v716 = vmul.f32 %v695, 1.442695
    %v717 = vpow.pop %v716
    %v718 = vmul.f32 %v696, 1.442695
    %v719 = vpow.pop %v718
    %v720 = vmul.f32 %v697, 1.442695
    %v721 = vpow.pop %v720
    %v722 = vmul.f32 %v698, 1.442695
    %v723 = vpow.pop %v722
    %v724 = vmul.f32 %v699, 1.442695
    %v725 = vpow.pop %v724
    %v726 = vmul.f32 %v700, 1.442695
    %v727 = vpow.pop %v726
    %v728 = vmul.f32 %v701, 1.442695
    %v729 = vpow.pop %v728
    %v730 = vmul.f32 %v702, 1.442695
    %v731 = vpow.pop %v730
    %v732 = vmul.f32 %v703, 1.442695
    %v733 = vpow.pop %v732
    %v734 = vmul.f32 %v704, 1.442695
    %v735 = vpow.pop %v734
    %v736 = vmul.f32 %v705, 1.442695
    %v737 = vpow.pop %v736
    %738 = vadd.xlane.f32.xlu0 %v707
    %v739 = vpop.xlane.xlu0 %738
    %740 = vadd.xlane.f32.xlu0 %v709
    %v741 = vpop.xlane.xlu0 %740
    %742 = vadd.xlane.f32.xlu0 %v711
    %v743 = vpop.xlane.xlu0 %742
    %744 = vadd.xlane.f32.xlu0 %v713
    %v745 = vpop.xlane.xlu0 %744
    %746 = vadd.xlane.f32.xlu0 %v715
    %v747 = vpop.xlane.xlu0 %746
    %748 = vadd.xlane.f32.xlu0 %v717
    %v749 = vpop.xlane.xlu0 %748
    %750 = vadd.xlane.f32.xlu0 %v719
    %v751 = vpop.xlane.xlu0 %750
    %752 = vadd.xlane.f32.xlu0 %v721
    %v753 = vpop.xlane.xlu0 %752
    %754 = vadd.xlane.f32.xlu0 %v723
    %v755 = vpop.xlane.xlu0 %754
    %756 = vadd.xlane.f32.xlu0 %v725
    %v757 = vpop.xlane.xlu0 %756
    %758 = vadd.xlane.f32.xlu0 %v727
    %v759 = vpop.xlane.xlu0 %758
    %760 = vadd.xlane.f32.xlu0 %v729
    %v761 = vpop.xlane.xlu0 %760
    %762 = vadd.xlane.f32.xlu0 %v731
    %v763 = vpop.xlane.xlu0 %762
    %764 = vadd.xlane.f32.xlu0 %v733
    %v765 = vpop.xlane.xlu0 %764
    %766 = vadd.xlane.f32.xlu0 %v735
    %v767 = vpop.xlane.xlu0 %766
    %768 = vadd.xlane.f32.xlu0 %v737
    %v769 = vpop.xlane.xlu0 %768
    %v770 = vrcp.pop %v739
    %v771 = vrcp.pop %v741
    %v772 = vrcp.pop %v743
    %v773 = vrcp.pop %v745
    %v774 = vrcp.pop %v747
    %v775 = vrcp.pop %v749
    %v776 = vrcp.pop %v751
    %v777 = vrcp.pop %v753
    %v778 = vrcp.pop %v755
    %v779 = vrcp.pop %v757
    %v780 = vrcp.pop %v759
    %v781 = vrcp.pop %v761
    %v782 = vrcp.pop %v763
    %v783 = vrcp.pop %v765
    %v784 = vrcp.pop %v767
    %v785 = vrcp.pop %v769
    %v786 = vmul.f32 %v707, %v770
    %v787 = vmul.f32 %v709, %v771
    %v788 = vmul.f32 %v711, %v772
    %v789 = vmul.f32 %v713, %v773
    %v790 = vmul.f32 %v715, %v774
    %v791 = vmul.f32 %v717, %v775
    %v792 = vmul.f32 %v719, %v776
    %v793 = vmul.f32 %v721, %v777
    %v794 = vmul.f32 %v723, %v778
    %v795 = vmul.f32 %v725, %v779
    %v796 = vmul.f32 %v727, %v780
    %v797 = vmul.f32 %v729, %v781
    %v798 = vmul.f32 %v731, %v782
    %v799 = vmul.f32 %v733, %v783
    %v800 = vmul.f32 %v735, %v784
    %v801 = vmul.f32 %v737, %v785
    %v802 = vmul.f32 %v786, %v91
    %v803 = vmul.f32 %v787, %v91
    %v804 = vmul.f32 %v788, %v91
    %v805 = vmul.f32 %v789, %v91
    %v806 = vmul.f32 %v790, %v91
    %v807 = vmul.f32 %v791, %v91
    %v808 = vmul.f32 %v792, %v91
    %v809 = vmul.f32 %v793, %v91
    %v810 = vmul.f32 %v794, %v91
    %v811 = vmul.f32 %v795, %v91
    %v812 = vmul.f32 %v796, %v91
    %v813 = vmul.f32 %v797, %v91
    %v814 = vmul.f32 %v798, %v91
    %v815 = vmul.f32 %v799, %v91
    %v816 = vmul.f32 %v800, %v91
    %v817 = vmul.f32 %v801, %v91
    %818 = vadd.xlane.f32.xlu0 %v802
    %v819 = vpop.xlane.xlu0 %818
    %820 = vadd.xlane.f32.xlu0 %v803
    %v821 = vpop.xlane.xlu0 %820
    %822 = vadd.xlane.f32.xlu0 %v804
    %v823 = vpop.xlane.xlu0 %822
    %824 = vadd.xlane.f32.xlu0 %v805
    %v825 = vpop.xlane.xlu0 %824
    %826 = vadd.xlane.f32.xlu0 %v806
    %v827 = vpop.xlane.xlu0 %826
    %828 = vadd.xlane.f32.xlu0 %v807
    %v829 = vpop.xlane.xlu0 %828
    %830 = vadd.xlane.f32.xlu0 %v808
    %v831 = vpop.xlane.xlu0 %830
    %832 = vadd.xlane.f32.xlu0 %v809
    %v833 = vpop.xlane.xlu0 %832
    %834 = vadd.xlane.f32.xlu0 %v810
    %v835 = vpop.xlane.xlu0 %834
    %836 = vadd.xlane.f32.xlu0 %v811
    %v837 = vpop.xlane.xlu0 %836
    %838 = vadd.xlane.f32.xlu0 %v812
    %v839 = vpop.xlane.xlu0 %838
    %840 = vadd.xlane.f32.xlu0 %v813
    %v841 = vpop.xlane.xlu0 %840
    %842 = vadd.xlane.f32.xlu0 %v814
    %v843 = vpop.xlane.xlu0 %842
    %844 = vadd.xlane.f32.xlu0 %v815
    %v845 = vpop.xlane.xlu0 %844
    %846 = vadd.xlane.f32.xlu0 %v816
    %v847 = vpop.xlane.xlu0 %846
    %848 = vadd.xlane.f32.xlu0 %v817
    %v849 = vpop.xlane.xlu0 %848
    %v850 = vadd.f32 %v819, 1e-13
    %v851 = vadd.f32 %v821, 1e-13
    %v852 = vadd.f32 %v823, 1e-13
    %v853 = vadd.f32 %v825, 1e-13
    %v854 = vadd.f32 %v827, 1e-13
    %v855 = vadd.f32 %v829, 1e-13
    %v856 = vadd.f32 %v831, 1e-13
    %v857 = vadd.f32 %v833, 1e-13
    %v858 = vadd.f32 %v835, 1e-13
    %v859 = vadd.f32 %v837, 1e-13
    %v860 = vadd.f32 %v839, 1e-13
    %v861 = vadd.f32 %v841, 1e-13
    %v862 = vadd.f32 %v843, 1e-13
    %v863 = vadd.f32 %v845, 1e-13
    %v864 = vadd.f32 %v847, 1e-13
    %v865 = vadd.f32 %v849, 1e-13
    %v866 = vrcp.pop %v850
    %v867 = vrcp.pop %v851
    %v868 = vrcp.pop %v852
    %v869 = vrcp.pop %v853
    %v870 = vrcp.pop %v854
    %v871 = vrcp.pop %v855
    %v872 = vrcp.pop %v856
    %v873 = vrcp.pop %v857
    %v874 = vrcp.pop %v858
    %v875 = vrcp.pop %v859
    %v876 = vrcp.pop %v860
    %v877 = vrcp.pop %v861
    %v878 = vrcp.pop %v862
    %v879 = vrcp.pop %v863
    %v880 = vrcp.pop %v864
    %v881 = vrcp.pop %v865
    %v882 = vmul.f32 %v802, %v866
    %v883 = vmul.f32 %v803, %v867
    %v884 = vmul.f32 %v804, %v868
    %v885 = vmul.f32 %v805, %v869
    %v886 = vmul.f32 %v806, %v870
    %v887 = vmul.f32 %v807, %v871
    %v888 = vmul.f32 %v808, %v872
    %v889 = vmul.f32 %v809, %v873
    %v890 = vmul.f32 %v810, %v874
    %v891 = vmul.f32 %v811, %v875
    %v892 = vmul.f32 %v812, %v876
    %v893 = vmul.f32 %v813, %v877
    %v894 = vmul.f32 %v814, %v878
    %v895 = vmul.f32 %v815, %v879
    %v896 = vmul.f32 %v816, %v880
    %v897 = vmul.f32 %v817, %v881
    %v898 = vpack.c.bf16 %v627, %v626
    %v899 = vpack.c.bf16 %v629, %v628
    %v900 = vpack.c.bf16 %v631, %v630
    %v901 = vpack.c.bf16 %v633, %v632
    %v902 = vpack.c.bf16 %v635, %v634
    %v903 = vpack.c.bf16 %v637, %v636
    %v904 = vpack.c.bf16 %v639, %v638
    %v905 = vpack.c.bf16 %v641, %v640
    %906 = vmatprep.subr.bf16.mxu0 0
    %907 = vmatpush1.bf16.msra.mxu0 %v200
    %908 = vmatprep.subr.bf16.mxu0 0
    %909 = vmatpush1.bf16.msra.mxu0 %v201
    %910 = vmatprep.subr.bf16.mxu0 0
    %911 = vmatpush1.bf16.msra.mxu0 %v202
    %912 = vmatprep.subr.bf16.mxu0 0
    %913 = vmatpush1.bf16.msra.mxu0 %v203
    %914 = vmatprep.subr.bf16.mxu0 0
    %915 = vmatpush1.bf16.msra.mxu0 %v204
    %916 = vmatprep.subr.bf16.mxu0 0
    %917 = vmatpush1.bf16.msra.mxu0 %v205
    %918 = vmatprep.subr.bf16.mxu0 0
    %919 = vmatpush1.bf16.msra.mxu0 %v206
    %920 = vmatprep.subr.bf16.mxu0 0
    %921 = vmatpush1.bf16.msra.mxu0 %v207
    %922 = vmatprep.subr.bf16.mxu0 0
    %923 = vmatpush1.bf16.msra.mxu0 0
    %924 = vmatprep.subr.bf16.mxu0 0
    %925 = vmatpush1.bf16.msra.mxu0 0
    %926 = vmatprep.subr.bf16.mxu0 0
    %927 = vmatpush1.bf16.msra.mxu0 0
    %928 = vmatprep.subr.bf16.mxu0 0
    %929 = vmatpush1.bf16.msra.mxu0 0
    %930 = vmatprep.subr.bf16.mxu0 0
    %931 = vmatpush1.bf16.msra.mxu0 0
    %932 = vmatprep.subr.bf16.mxu0 0
    %933 = vmatpush1.bf16.msra.mxu0 0
    %934 = vmatprep.subr.bf16.mxu0 0
    %935 = vmatpush1.bf16.msra.mxu0 0
    %936 = vmatprep.subr.bf16.mxu0 0
    %937 = vmatpush1.bf16.msra.mxu0 0
    %938 = vmatprep.mubr.bf16.mxu0 0
    %939 = vmatmul.mubr.bf16.gmra.mrb[0].mxu0 %v898
    %v940 = vpop.f32.mrb[0].mxu0
    %v941 = vadd.f32 0.0, %v940
    %v942 = vpop.f32.mrb[0].mxu0
    %v943 = vpop.f32.mrb[0].mxu0
    %v944 = vadd.f32 0.0, %v943
    %v945 = vpop.f32.mrb[0].mxu0
    %946 = vmatprep.mubr.bf16.mxu0 0
    %947 = vmatmul.mubr.bf16.gmra.mrb[0].mxu0 %v899
    %v948 = vpop.f32.mrb[0].mxu0
    %v949 = vadd.f32 0.0, %v948
    %v950 = vpop.f32.mrb[0].mxu0
    %v951 = vpop.f32.mrb[0].mxu0
    %v952 = vadd.f32 0.0, %v951
    %v953 = vpop.f32.mrb[0].mxu0
    %954 = vmatprep.mubr.bf16.mxu0 0
    %955 = vmatmul.mubr.bf16.gmra.mrb[0].mxu0 %v900
    %v956 = vpop.f32.mrb[0].mxu0
    %v957 = vadd.f32 0.0, %v956
    %v958 = vpop.f32.mrb[0].mxu0
    %v959 = vpop.f32.mrb[0].mxu0
    %v960 = vadd.f32 0.0, %v959
    %v961 = vpop.f32.mrb[0].mxu0
    %962 = vmatprep.mubr.bf16.mxu0 0
    %963 = vmatmul.mubr.bf16.gmra.mrb[0].mxu0 %v901
    %v964 = vpop.f32.mrb[0].mxu0
    %v965 = vadd.f32 0.0, %v964
    %v966 = vpop.f32.mrb[0].mxu0
    %v967 = vpop.f32.mrb[0].mxu0
    %v968 = vadd.f32 0.0, %v967
    %v969 = vpop.f32.mrb[0].mxu0
    %970 = vmatprep.mubr.bf16.mxu0 0
    %971 = vmatmul.mubr.bf16.gmra.mrb[0].mxu0 %v902
    %v972 = vpop.f32.mrb[0].mxu0
    %v973 = vadd.f32 0.0, %v972
    %v974 = vpop.f32.mrb[0].mxu0
    %v975 = vpop.f32.mrb[0].mxu0
    %v976 = vadd.f32 0.0, %v975
    %v977 = vpop.f32.mrb[0].mxu0
    %978 = vmatprep.mubr.bf16.mxu0 0
    %979 = vmatmul.mubr.bf16.gmra.mrb[0].mxu0 %v903
    %v980 = vpop.f32.mrb[0].mxu0
    %v981 = vadd.f32 0.0, %v980
    %v982 = vpop.f32.mrb[0].mxu0
    %v983 = vpop.f32.mrb[0].mxu0
    %v984 = vadd.f32 0.0, %v983
    %v985 = vpop.f32.mrb[0].mxu0
    %986 = vmatprep.mubr.bf16.mxu0 0
    %987 = vmatmul.mubr.bf16.gmra.mrb[0].mxu0 %v904
    %v988 = vpop.f32.mrb[0].mxu0
    %v989 = vadd.f32 0.0, %v988
    %v990 = vpop.f32.mrb[0].mxu0
    %v991 = vpop.f32.mrb[0].mxu0
    %v992 = vadd.f32 0.0, %v991
    %v993 = vpop.f32.mrb[0].mxu0
    %994 = vmatprep.mubr.bf16.mxu0 0
    %995 = vmatmul.mubr.bf16.gmra.mrb[0].mxu0 %v905
    %v996 = vpop.f32.mrb[0].mxu0
    %v997 = vadd.f32 0.0, %v996
    %v998 = vpop.f32.mrb[0].mxu0
    %v999 = vpop.f32.mrb[0].mxu0
    %v1000 = vadd.f32 0.0, %v999
    %v1001 = vpop.f32.mrb[0].mxu0
    %1002 = vdwg.mxu0
    %v1003 = vmul.f32 %v941, %v128
    %v1004 = vmul.f32 %v944, %v129
    %v1005 = vmul.f32 %v949, %v130
    %v1006 = vmul.f32 %v952, %v131
    %v1007 = vmul.f32 %v957, %v132
    %v1008 = vmul.f32 %v960, %v133
    %v1009 = vmul.f32 %v965, %v134
    %v1010 = vmul.f32 %v968, %v135
    %v1011 = vmul.f32 %v973, %v136
    %v1012 = vmul.f32 %v976, %v137
    %v1013 = vmul.f32 %v981, %v138
    %v1014 = vmul.f32 %v984, %v139
    %v1015 = vmul.f32 %v989, %v140
    %v1016 = vmul.f32 %v992, %v141
    %v1017 = vmul.f32 %v997, %v142
    %v1018 = vmul.f32 %v1000, %v143
    %v1019 = vpack.c.bf16 %v883, %v882
    %v1020 = vpack.c.bf16 %v885, %v884
    %v1021 = vpack.c.bf16 %v887, %v886
    %v1022 = vpack.c.bf16 %v889, %v888
    %v1023 = vpack.c.bf16 %v891, %v890
    %v1024 = vpack.c.bf16 %v893, %v892
    %v1025 = vpack.c.bf16 %v895, %v894
    %v1026 = vpack.c.bf16 %v897, %v896
    %1027 = vmatprep.subr.bf16.mxu0 0
    %1028 = vmatpush1.bf16.msra.mxu0 %v192
    %1029 = vmatprep.subr.bf16.mxu0 0
    %1030 = vmatpush1.bf16.msra.mxu0 %v193
    %1031 = vmatprep.subr.bf16.mxu0 0
    %1032 = vmatpush1.bf16.msra.mxu0 %v194
    %1033 = vmatprep.subr.bf16.mxu0 0
    %1034 = vmatpush1.bf16.msra.mxu0 %v195
    %1035 = vmatprep.subr.bf16.mxu0 0
    %1036 = vmatpush1.bf16.msra.mxu0 %v196
    %1037 = vmatprep.subr.bf16.mxu0 0
    %1038 = vmatpush1.bf16.msra.mxu0 %v197
    %1039 = vmatprep.subr.bf16.mxu0 0
    %1040 = vmatpush1.bf16.msra.mxu0 %v198
    %1041 = vmatprep.subr.bf16.mxu0 0
    %1042 = vmatpush1.bf16.msra.mxu0 %v199
    %1043 = vmatprep.subr.bf16.mxu0 0
    %1044 = vmatpush1.bf16.msra.mxu0 0
    %1045 = vmatprep.subr.bf16.mxu0 0
    %1046 = vmatpush1.bf16.msra.mxu0 0
    %1047 = vmatprep.subr.bf16.mxu0 0
    %1048 = vmatpush1.bf16.msra.mxu0 0
    %1049 = vmatprep.subr.bf16.mxu0 0
    %1050 = vmatpush1.bf16.msra.mxu0 0
    %1051 = vmatprep.subr.bf16.mxu0 0
    %1052 = vmatpush1.bf16.msra.mxu0 0
    %1053 = vmatprep.subr.bf16.mxu0 0
    %1054 = vmatpush1.bf16.msra.mxu0 0
    %1055 = vmatprep.subr.bf16.mxu0 0
    %1056 = vmatpush1.bf16.msra.mxu0 0
    %1057 = vmatprep.subr.bf16.mxu0 0
    %1058 = vmatpush1.bf16.msra.mxu0 0
    %1059 = vmatprep.mubr.bf16.mxu0 0
    %1060 = vmatmul.mubr.bf16.gmra.mrb[0].mxu0 %v1019
    %v1061 = vpop.f32.mrb[0].mxu0
    %v1062 = vadd.f32 0.0, %v1061
    %v1063 = vpop.f32.mrb[0].mxu0
    %v1064 = vpop.f32.mrb[0].mxu0
    %v1065 = vadd.f32 0.0, %v1064
    %v1066 = vpop.f32.mrb[0].mxu0
    %1067 = vmatprep.mubr.bf16.mxu0 0
    %1068 = vmatmul.mubr.bf16.gmra.mrb[0].mxu0 %v1020
    %v1069 = vpop.f32.mrb[0].mxu0
    %v1070 = vadd.f32 0.0, %v1069
    %v1071 = vpop.f32.mrb[0].mxu0
    %v1072 = vpop.f32.mrb[0].mxu0
    %v1073 = vadd.f32 0.0, %v1072
    %v1074 = vpop.f32.mrb[0].mxu0
    %1075 = vmatprep.mubr.bf16.mxu0 0
    %1076 = vmatmul.mubr.bf16.gmra.mrb[0].mxu0 %v1021
    %v1077 = vpop.f32.mrb[0].mxu0
    %v1078 = vadd.f32 0.0, %v1077
    %v1079 = vpop.f32.mrb[0].mxu0
    %v1080 = vpop.f32.mrb[0].mxu0
    %v1081 = vadd.f32 0.0, %v1080
    %v1082 = vpop.f32.mrb[0].mxu0
    %1083 = vmatprep.mubr.bf16.mxu0 0
    %1084 = vmatmul.mubr.bf16.gmra.mrb[0].mxu0 %v1022
    %v1085 = vpop.f32.mrb[0].mxu0
    %v1086 = vadd.f32 0.0, %v1085
    %v1087 = vpop.f32.mrb[0].mxu0
    %v1088 = vpop.f32.mrb[0].mxu0
    %v1089 = vadd.f32 0.0, %v1088
    %v1090 = vpop.f32.mrb[0].mxu0
    %1091 = vmatprep.mubr.bf16.mxu0 0
    %1092 = vmatmul.mubr.bf16.gmra.mrb[0].mxu0 %v1023
    %v1093 = vpop.f32.mrb[0].mxu0
    %v1094 = vadd.f32 0.0, %v1093
    %v1095 = vpop.f32.mrb[0].mxu0
    %v1096 = vpop.f32.mrb[0].mxu0
    %v1097 = vadd.f32 0.0, %v1096
    %v1098 = vpop.f32.mrb[0].mxu0
    %1099 = vmatprep.mubr.bf16.mxu0 0
    %1100 = vmatmul.mubr.bf16.gmra.mrb[0].mxu0 %v1024
    %v1101 = vpop.f32.mrb[0].mxu0
    %v1102 = vadd.f32 0.0, %v1101
    %v1103 = vpop.f32.mrb[0].mxu0
    %v1104 = vpop.f32.mrb[0].mxu0
    %v1105 = vadd.f32 0.0, %v1104
    %v1106 = vpop.f32.mrb[0].mxu0
    %1107 = vmatprep.mubr.bf16.mxu0 0
    %1108 = vmatmul.mubr.bf16.gmra.mrb[0].mxu0 %v1025
    %v1109 = vpop.f32.mrb[0].mxu0
    %v1110 = vadd.f32 0.0, %v1109
    %v1111 = vpop.f32.mrb[0].mxu0
    %v1112 = vpop.f32.mrb[0].mxu0
    %v1113 = vadd.f32 0.0, %v1112
    %v1114 = vpop.f32.mrb[0].mxu0
    %1115 = vmatprep.mubr.bf16.mxu0 0
    %1116 = vmatmul.mubr.bf16.gmra.mrb[0].mxu0 %v1026
    %v1117 = vpop.f32.mrb[0].mxu0
    %v1118 = vadd.f32 0.0, %v1117
    %v1119 = vpop.f32.mrb[0].mxu0
    %v1120 = vpop.f32.mrb[0].mxu0
    %v1121 = vadd.f32 0.0, %v1120
    %v1122 = vpop.f32.mrb[0].mxu0
    %1123 = vdwg.mxu0
    %v1124 = vmul.f32 %v1062, %v176
    %v1125 = vmul.f32 %v1065, %v177
    %v1126 = vmul.f32 %v1070, %v178
    %v1127 = vmul.f32 %v1073, %v179
    %v1128 = vmul.f32 %v1078, %v180
    %v1129 = vmul.f32 %v1081, %v181
    %v1130 = vmul.f32 %v1086, %v182
    %v1131 = vmul.f32 %v1089, %v183
    %v1132 = vmul.f32 %v1094, %v184
    %v1133 = vmul.f32 %v1097, %v185
    %v1134 = vmul.f32 %v1102, %v186
    %v1135 = vmul.f32 %v1105, %v187
    %v1136 = vmul.f32 %v1110, %v188
    %v1137 = vmul.f32 %v1113, %v189
    %v1138 = vmul.f32 %v1118, %v190
    %v1139 = vmul.f32 %v1121, %v191
    %v1140 = vpack.c.bf16 %v1004, %v1003
    %v1141 = vpack.c.bf16 %v1006, %v1005
    %v1142 = vpack.c.bf16 %v1008, %v1007
    %v1143 = vpack.c.bf16 %v1010, %v1009
    %v1144 = vpack.c.bf16 %v1012, %v1011
    %v1145 = vpack.c.bf16 %v1014, %v1013
    %v1146 = vpack.c.bf16 %v1016, %v1015
    %v1147 = vpack.c.bf16 %v1018, %v1017
    %v1148 = vsub.f32 %v54, %v1003
    %v1149 = vsub.f32 %v55, %v1004
    %v1150 = vsub.f32 %v56, %v1005
    %v1151 = vsub.f32 %v57, %v1006
    %v1152 = vsub.f32 %v58, %v1007
    %v1153 = vsub.f32 %v59, %v1008
    %v1154 = vsub.f32 %v60, %v1009
    %v1155 = vsub.f32 %v61, %v1010
    %v1156 = vsub.f32 %v62, %v1011
    %v1157 = vsub.f32 %v63, %v1012
    %v1158 = vsub.f32 %v64, %v1013
    %v1159 = vsub.f32 %v65, %v1014
    %v1160 = vsub.f32 %v66, %v1015
    %v1161 = vsub.f32 %v67, %v1016
    %v1162 = vsub.f32 %v68, %v1017
    %v1163 = vsub.f32 %v69, %v1018
    %v1164 = vpack.c.bf16 %v1149, %v1148
    %v1165 = vpack.c.bf16 %v1151, %v1150
    %v1166 = vpack.c.bf16 %v1153, %v1152
    %v1167 = vpack.c.bf16 %v1155, %v1154
    %v1168 = vpack.c.bf16 %v1157, %v1156
    %v1169 = vpack.c.bf16 %v1159, %v1158
    %v1170 = vpack.c.bf16 %v1161, %v1160
    %v1171 = vpack.c.bf16 %v1163, %v1162
    %v1172 = vmul.f32 %v54, %v1003
    %v1173 = vmul.f32 %v55, %v1004
    %v1174 = vmul.f32 %v56, %v1005
    %v1175 = vmul.f32 %v57, %v1006
    %v1176 = vmul.f32 %v58, %v1007
    %v1177 = vmul.f32 %v59, %v1008
    %v1178 = vmul.f32 %v60, %v1009
    %v1179 = vmul.f32 %v61, %v1010
    %v1180 = vmul.f32 %v62, %v1011
    %v1181 = vmul.f32 %v63, %v1012
    %v1182 = vmul.f32 %v64, %v1013
    %v1183 = vmul.f32 %v65, %v1014
    %v1184 = vmul.f32 %v66, %v1015
    %v1185 = vmul.f32 %v67, %v1016
    %v1186 = vmul.f32 %v68, %v1017
    %v1187 = vmul.f32 %v69, %v1018
    %v1188 = vpack.c.bf16 %v1173, %v1172
    %v1189 = vpack.c.bf16 %v1175, %v1174
    %v1190 = vpack.c.bf16 %v1177, %v1176
    %v1191 = vpack.c.bf16 %v1179, %v1178
    %v1192 = vpack.c.bf16 %v1181, %v1180
    %v1193 = vpack.c.bf16 %v1183, %v1182
    %v1194 = vpack.c.bf16 %v1185, %v1184
    %v1195 = vpack.c.bf16 %v1187, %v1186
    %1204 = vrot.lane.b32.xlu0 %v1140, 32
    %v1205 = vpop.permute.xlu0 %1204
    %1206 = vrot.lane.b32.xlu0 %v1141, 32
    %v1207 = vpop.permute.xlu0 %1206
    %1208 = vrot.lane.b32.xlu0 %v1142, 32
    %v1209 = vpop.permute.xlu0 %1208
    %1210 = vrot.lane.b32.xlu0 %v1143, 32
    %v1211 = vpop.permute.xlu0 %1210
    %1212 = vrot.lane.b32.xlu0 %v1144, 32
    %v1213 = vpop.permute.xlu0 %1212
    %1214 = vrot.lane.b32.xlu0 %v1145, 32
    %v1215 = vpop.permute.xlu0 %1214
    %1216 = vrot.lane.b32.xlu0 %v1146, 32
    %v1217 = vpop.permute.xlu0 %1216
    %1218 = vrot.lane.b32.xlu0 %v1147, 32
    %v1219 = vpop.permute.xlu0 %1218
    %1228 = vrot.lane.b32.xlu0 %v1164, 64
    %v1229 = vpop.permute.xlu0 %1228
    %1230 = vrot.lane.b32.xlu0 %v1165, 64
    %v1231 = vpop.permute.xlu0 %1230
    %1232 = vrot.lane.b32.xlu0 %v1166, 64
    %v1233 = vpop.permute.xlu0 %1232
    %1234 = vrot.lane.b32.xlu0 %v1167, 64
    %v1235 = vpop.permute.xlu0 %1234
    %1236 = vrot.lane.b32.xlu0 %v1168, 64
    %v1237 = vpop.permute.xlu0 %1236
    %1238 = vrot.lane.b32.xlu0 %v1169, 64
    %v1239 = vpop.permute.xlu0 %1238
    %1240 = vrot.lane.b32.xlu0 %v1170, 64
    %v1241 = vpop.permute.xlu0 %1240
    %1242 = vrot.lane.b32.xlu0 %v1171, 64
    %v1243 = vpop.permute.xlu0 %1242
    %1252 = vrot.lane.b32.xlu0 %v1188, 96
    %v1253 = vpop.permute.xlu0 %1252
    %1254 = vrot.lane.b32.xlu0 %v1189, 96
    %v1255 = vpop.permute.xlu0 %1254
    %1256 = vrot.lane.b32.xlu0 %v1190, 96
    %v1257 = vpop.permute.xlu0 %1256
    %1258 = vrot.lane.b32.xlu0 %v1191, 96
    %v1259 = vpop.permute.xlu0 %1258
    %1260 = vrot.lane.b32.xlu0 %v1192, 96
    %v1261 = vpop.permute.xlu0 %1260
    %1262 = vrot.lane.b32.xlu0 %v1193, 96
    %v1263 = vpop.permute.xlu0 %1262
    %1264 = vrot.lane.b32.xlu0 %v1194, 96
    %v1265 = vpop.permute.xlu0 %1264
    %1266 = vrot.lane.b32.xlu0 %v1195, 96
    %v1267 = vpop.permute.xlu0 %1266
    %v1269 = vsel %vm208, %v192, %v1205
    %v1271 = vsel %vm208, %v193, %v1207
    %v1273 = vsel %vm208, %v194, %v1209
    %v1275 = vsel %vm208, %v195, %v1211
    %v1277 = vsel %vm208, %v196, %v1213
    %v1279 = vsel %vm208, %v197, %v1215
    %v1281 = vsel %vm208, %v198, %v1217
    %v1283 = vsel %vm208, %v199, %v1219
    %vm1284 = vcmask 523264
    %v1286 = vsel %vm1284, %v1269, %v1229
    %v1288 = vsel %vm1284, %v1271, %v1231
    %v1290 = vsel %vm1284, %v1273, %v1233
    %v1292 = vsel %vm1284, %v1275, %v1235
    %v1294 = vsel %vm1284, %v1277, %v1237
    %v1296 = vsel %vm1284, %v1279, %v1239
    %v1298 = vsel %vm1284, %v1281, %v1241
    %v1300 = vsel %vm1284, %v1283, %v1243
    %vm1301 = vcmask 785408
    %v1303 = vsel %vm1301, %v1286, %v1253
    %v1306 = vsel %vm1301, %v1288, %v1255
    %v1309 = vsel %vm1301, %v1290, %v1257
    %v1312 = vsel %vm1301, %v1292, %v1259
    %v1315 = vsel %vm1301, %v1294, %v1261
    %v1318 = vsel %vm1301, %v1296, %v1263
    %v1321 = vsel %vm1301, %v1298, %v1265
    %v1324 = vsel %vm1301, %v1300, %v1267
    %v1326 = vpack.c.bf16 %v1125, %v1124
    %v1327 = vpack.c.bf16 %v1127, %v1126
    %v1328 = vpack.c.bf16 %v1129, %v1128
    %v1329 = vpack.c.bf16 %v1131, %v1130
    %v1330 = vpack.c.bf16 %v1133, %v1132
    %v1331 = vpack.c.bf16 %v1135, %v1134
    %v1332 = vpack.c.bf16 %v1137, %v1136
    %v1333 = vpack.c.bf16 %v1139, %v1138
    %v1334 = vsub.f32 %v70, %v1124
    %v1335 = vsub.f32 %v71, %v1125
    %v1336 = vsub.f32 %v72, %v1126
    %v1337 = vsub.f32 %v73, %v1127
    %v1338 = vsub.f32 %v74, %v1128
    %v1339 = vsub.f32 %v75, %v1129
    %v1340 = vsub.f32 %v76, %v1130
    %v1341 = vsub.f32 %v77, %v1131
    %v1342 = vsub.f32 %v78, %v1132
    %v1343 = vsub.f32 %v79, %v1133
    %v1344 = vsub.f32 %v80, %v1134
    %v1345 = vsub.f32 %v81, %v1135
    %v1346 = vsub.f32 %v82, %v1136
    %v1347 = vsub.f32 %v83, %v1137
    %v1348 = vsub.f32 %v84, %v1138
    %v1349 = vsub.f32 %v85, %v1139
    %v1350 = vpack.c.bf16 %v1335, %v1334
    %v1351 = vpack.c.bf16 %v1337, %v1336
    %v1352 = vpack.c.bf16 %v1339, %v1338
    %v1353 = vpack.c.bf16 %v1341, %v1340
    %v1354 = vpack.c.bf16 %v1343, %v1342
    %v1355 = vpack.c.bf16 %v1345, %v1344
    %v1356 = vpack.c.bf16 %v1347, %v1346
    %v1357 = vpack.c.bf16 %v1349, %v1348
    %v1358 = vmul.f32 %v70, %v1124
    %v1359 = vmul.f32 %v71, %v1125
    %v1360 = vmul.f32 %v72, %v1126
    %v1361 = vmul.f32 %v73, %v1127
    %v1362 = vmul.f32 %v74, %v1128
    %v1363 = vmul.f32 %v75, %v1129
    %v1364 = vmul.f32 %v76, %v1130
    %v1365 = vmul.f32 %v77, %v1131
    %v1366 = vmul.f32 %v78, %v1132
    %v1367 = vmul.f32 %v79, %v1133
    %v1368 = vmul.f32 %v80, %v1134
    %v1369 = vmul.f32 %v81, %v1135
    %v1370 = vmul.f32 %v82, %v1136
    %v1371 = vmul.f32 %v83, %v1137
    %v1372 = vmul.f32 %v84, %v1138
    %v1373 = vmul.f32 %v85, %v1139
    %v1374 = vpack.c.bf16 %v1359, %v1358
    %v1375 = vpack.c.bf16 %v1361, %v1360
    %v1376 = vpack.c.bf16 %v1363, %v1362
    %v1377 = vpack.c.bf16 %v1365, %v1364
    %v1378 = vpack.c.bf16 %v1367, %v1366
    %v1379 = vpack.c.bf16 %v1369, %v1368
    %v1380 = vpack.c.bf16 %v1371, %v1370
    %v1381 = vpack.c.bf16 %v1373, %v1372
    %1390 = vrot.lane.b32.xlu0 %v1326, 32
    %v1391 = vpop.permute.xlu0 %1390
    %1392 = vrot.lane.b32.xlu0 %v1327, 32
    %v1393 = vpop.permute.xlu0 %1392
    %1394 = vrot.lane.b32.xlu0 %v1328, 32
    %v1395 = vpop.permute.xlu0 %1394
    %1396 = vrot.lane.b32.xlu0 %v1329, 32
    %v1397 = vpop.permute.xlu0 %1396
    %1398 = vrot.lane.b32.xlu0 %v1330, 32
    %v1399 = vpop.permute.xlu0 %1398
    %1400 = vrot.lane.b32.xlu0 %v1331, 32
    %v1401 = vpop.permute.xlu0 %1400
    %1402 = vrot.lane.b32.xlu0 %v1332, 32
    %v1403 = vpop.permute.xlu0 %1402
    %1404 = vrot.lane.b32.xlu0 %v1333, 32
    %v1405 = vpop.permute.xlu0 %1404
    %1414 = vrot.lane.b32.xlu0 %v1350, 64
    %v1415 = vpop.permute.xlu0 %1414
    %1416 = vrot.lane.b32.xlu0 %v1351, 64
    %v1417 = vpop.permute.xlu0 %1416
    %1418 = vrot.lane.b32.xlu0 %v1352, 64
    %v1419 = vpop.permute.xlu0 %1418
    %1420 = vrot.lane.b32.xlu0 %v1353, 64
    %v1421 = vpop.permute.xlu0 %1420
    %1422 = vrot.lane.b32.xlu0 %v1354, 64
    %v1423 = vpop.permute.xlu0 %1422
    %1424 = vrot.lane.b32.xlu0 %v1355, 64
    %v1425 = vpop.permute.xlu0 %1424
    %1426 = vrot.lane.b32.xlu0 %v1356, 64
    %v1427 = vpop.permute.xlu0 %1426
    %1428 = vrot.lane.b32.xlu0 %v1357, 64
    %v1429 = vpop.permute.xlu0 %1428
    %1438 = vrot.lane.b32.xlu0 %v1374, 96
    %v1439 = vpop.permute.xlu0 %1438
    %1440 = vrot.lane.b32.xlu0 %v1375, 96
    %v1441 = vpop.permute.xlu0 %1440
    %1442 = vrot.lane.b32.xlu0 %v1376, 96
    %v1443 = vpop.permute.xlu0 %1442
    %1444 = vrot.lane.b32.xlu0 %v1377, 96
    %v1445 = vpop.permute.xlu0 %1444
    %1446 = vrot.lane.b32.xlu0 %v1378, 96
    %v1447 = vpop.permute.xlu0 %1446
    %1448 = vrot.lane.b32.xlu0 %v1379, 96
    %v1449 = vpop.permute.xlu0 %1448
    %1450 = vrot.lane.b32.xlu0 %v1380, 96
    %v1451 = vpop.permute.xlu0 %1450
    %1452 = vrot.lane.b32.xlu0 %v1381, 96
    %v1453 = vpop.permute.xlu0 %1452
    %v1455 = vsel %vm208, %v200, %v1391
    %v1457 = vsel %vm208, %v201, %v1393
    %v1459 = vsel %vm208, %v202, %v1395
    %v1461 = vsel %vm208, %v203, %v1397
    %v1463 = vsel %vm208, %v204, %v1399
    %v1465 = vsel %vm208, %v205, %v1401
    %v1467 = vsel %vm208, %v206, %v1403
    %v1469 = vsel %vm208, %v207, %v1405
    %v1471 = vsel %vm1284, %v1455, %v1415
    %v1473 = vsel %vm1284, %v1457, %v1417
    %v1475 = vsel %vm1284, %v1459, %v1419
    %v1477 = vsel %vm1284, %v1461, %v1421
    %v1479 = vsel %vm1284, %v1463, %v1423
    %v1481 = vsel %vm1284, %v1465, %v1425
    %v1483 = vsel %vm1284, %v1467, %v1427
    %v1485 = vsel %vm1284, %v1469, %v1429
    %v1487 = vsel %vm1301, %v1471, %v1439
    %v1490 = vsel %vm1301, %v1473, %v1441
    %v1493 = vsel %vm1301, %v1475, %v1443
    %v1496 = vsel %vm1301, %v1477, %v1445
    %v1499 = vsel %vm1301, %v1479, %v1447
    %v1502 = vsel %vm1301, %v1481, %v1449
    %v1505 = vsel %vm1301, %v1483, %v1451
    %v1508 = vsel %vm1301, %v1485, %v1453
    %s1510 = scalar_lea.vmem %s2, 128
    %v1511 = vld [vmem:[%s1510] sm:$0xff]
    %v1512 = vld [vmem:[%s1510 + $0x8] sm:$0xff]
    %v1513 = vld [vmem:[%s1510 + $0x10] sm:$0xff]
    %v1514 = vld [vmem:[%s1510 + $0x18] sm:$0xff]
    %v1515 = vld [vmem:[%s1510 + $0x20] sm:$0xff]
    %v1516 = vld [vmem:[%s1510 + $0x28] sm:$0xff]
    %v1517 = vld [vmem:[%s1510 + $0x30] sm:$0xff]
    %v1518 = vld [vmem:[%s1510 + $0x38] sm:$0xff]
    %v1519 = vld [vmem:[%s1510 + $0x40] sm:$0xff]
    %v1520 = vld [vmem:[%s1510 + $0x48] sm:$0xff]
    %v1521 = vld [vmem:[%s1510 + $0x50] sm:$0xff]
    %v1522 = vld [vmem:[%s1510 + $0x58] sm:$0xff]
    %v1523 = vld [vmem:[%s1510 + $0x60] sm:$0xff]
    %v1524 = vld [vmem:[%s1510 + $0x68] sm:$0xff]
    %v1525 = vld [vmem:[%s1510 + $0x70] sm:$0xff]
    %v1526 = vld [vmem:[%s1510 + $0x78] sm:$0xff]
    %s1527 = scalar_lea.vmem %s3, 128
    %v1528 = vld [vmem:[%s1527] sm:$0xff]
    %v1529 = vld [vmem:[%s1527 + $0x8] sm:$0xff]
    %v1530 = vld [vmem:[%s1527 + $0x10] sm:$0xff]
    %v1531 = vld [vmem:[%s1527 + $0x18] sm:$0xff]
    %v1532 = vld [vmem:[%s1527 + $0x20] sm:$0xff]
    %v1533 = vld [vmem:[%s1527 + $0x28] sm:$0xff]
    %v1534 = vld [vmem:[%s1527 + $0x30] sm:$0xff]
    %v1535 = vld [vmem:[%s1527 + $0x38] sm:$0xff]
    %v1536 = vld [vmem:[%s1527 + $0x40] sm:$0xff]
    %v1537 = vld [vmem:[%s1527 + $0x48] sm:$0xff]
    %v1538 = vld [vmem:[%s1527 + $0x50] sm:$0xff]
    %v1539 = vld [vmem:[%s1527 + $0x58] sm:$0xff]
    %v1540 = vld [vmem:[%s1527 + $0x60] sm:$0xff]
    %v1541 = vld [vmem:[%s1527 + $0x68] sm:$0xff]
    %v1542 = vld [vmem:[%s1527 + $0x70] sm:$0xff]
    %v1543 = vld [vmem:[%s1527 + $0x78] sm:$0xff]
    %s1544 = sadd.s32 %s34, 1
    %s1545 = sld [smem:[#allocation3 + %s1544]]
    %s1546 = sld [smem:[#allocation4 + %s1544]]
    %v1547 = vstv %s1545
    %vm1548 = vcmp.lt.s32.totalorder %v36, %v1547
    %v1549 = vsel %vm1548, 1, 0
    %v1550 = vcvt.s32.f32 %v1549
    %v1551 = vstv %s1546
    %vm1552 = vcmp.lt.s32.totalorder %v36, %v1551
    %v1553 = vsel %vm1552, 1, 0
    %v1554 = vcvt.s32.f32 %v1553
    %vm1555 = vcmp.lt.s32.totalorder %v38, %v1547
    %vm1556 = vcmp.lt.s32.totalorder %v39, %v1547
    %vm1557 = vcmp.lt.s32.totalorder %v40, %v1547
    %vm1558 = vcmp.lt.s32.totalorder %v41, %v1547
    %vm1559 = vcmp.lt.s32.totalorder %v42, %v1547
    %vm1560 = vcmp.lt.s32.totalorder %v43, %v1547
    %vm1561 = vcmp.lt.s32.totalorder %v44, %v1547
    %vm1562 = vcmp.lt.s32.totalorder %v45, %v1547
    %vm1563 = vcmp.lt.s32.totalorder %v46, %v1547
    %vm1564 = vcmp.lt.s32.totalorder %v47, %v1547
    %vm1565 = vcmp.lt.s32.totalorder %v48, %v1547
    %vm1566 = vcmp.lt.s32.totalorder %v49, %v1547
    %vm1567 = vcmp.lt.s32.totalorder %v50, %v1547
    %vm1568 = vcmp.lt.s32.totalorder %v51, %v1547
    %vm1569 = vcmp.lt.s32.totalorder %v52, %v1547
    %vm1570 = vcmp.lt.s32.totalorder %v53, %v1547
    %v1571 = vsel %vm1555, 1, 0
    %v1572 = vsel %vm1556, 1, 0
    %v1573 = vsel %vm1557, 1, 0
    %v1574 = vsel %vm1558, 1, 0
    %v1575 = vsel %vm1559, 1, 0
    %v1576 = vsel %vm1560, 1, 0
    %v1577 = vsel %vm1561, 1, 0
    %v1578 = vsel %vm1562, 1, 0
    %v1579 = vsel %vm1563, 1, 0
    %v1580 = vsel %vm1564, 1, 0
    %v1581 = vsel %vm1565, 1, 0
    %v1582 = vsel %vm1566, 1, 0
    %v1583 = vsel %vm1567, 1, 0
    %v1584 = vsel %vm1568, 1, 0
    %v1585 = vsel %vm1569, 1, 0
    %v1586 = vsel %vm1570, 1, 0
    %v1587 = vcvt.s32.f32 %v1571
    %v1588 = vcvt.s32.f32 %v1572
    %v1589 = vcvt.s32.f32 %v1573
    %v1590 = vcvt.s32.f32 %v1574
    %v1591 = vcvt.s32.f32 %v1575
    %v1592 = vcvt.s32.f32 %v1576
    %v1593 = vcvt.s32.f32 %v1577
    %v1594 = vcvt.s32.f32 %v1578
    %v1595 = vcvt.s32.f32 %v1579
    %v1596 = vcvt.s32.f32 %v1580
    %v1597 = vcvt.s32.f32 %v1581
    %v1598 = vcvt.s32.f32 %v1582
    %v1599 = vcvt.s32.f32 %v1583
    %v1600 = vcvt.s32.f32 %v1584
    %v1601 = vcvt.s32.f32 %v1585
    %v1602 = vcvt.s32.f32 %v1586
    %vm1603 = vcmp.lt.s32.totalorder %v38, %v1551
    %vm1604 = vcmp.lt.s32.totalorder %v39, %v1551
    %vm1605 = vcmp.lt.s32.totalorder %v40, %v1551
    %vm1606 = vcmp.lt.s32.totalorder %v41, %v1551
    %vm1607 = vcmp.lt.s32.totalorder %v42, %v1551
    %vm1608 = vcmp.lt.s32.totalorder %v43, %v1551
    %vm1609 = vcmp.lt.s32.totalorder %v44, %v1551
    %vm1610 = vcmp.lt.s32.totalorder %v45, %v1551
    %vm1611 = vcmp.lt.s32.totalorder %v46, %v1551
    %vm1612 = vcmp.lt.s32.totalorder %v47, %v1551
    %vm1613 = vcmp.lt.s32.totalorder %v48, %v1551
    %vm1614 = vcmp.lt.s32.totalorder %v49, %v1551
    %vm1615 = vcmp.lt.s32.totalorder %v50, %v1551
    %vm1616 = vcmp.lt.s32.totalorder %v51, %v1551
    %vm1617 = vcmp.lt.s32.totalorder %v52, %v1551
    %vm1618 = vcmp.lt.s32.totalorder %v53, %v1551
    %v1619 = vsel %vm1603, 1, 0
    %v1620 = vsel %vm1604, 1, 0
    %v1621 = vsel %vm1605, 1, 0
    %v1622 = vsel %vm1606, 1, 0
    %v1623 = vsel %vm1607, 1, 0
    %v1624 = vsel %vm1608, 1, 0
    %v1625 = vsel %vm1609, 1, 0
    %v1626 = vsel %vm1610, 1, 0
    %v1627 = vsel %vm1611, 1, 0
    %v1628 = vsel %vm1612, 1, 0
    %v1629 = vsel %vm1613, 1, 0
    %v1630 = vsel %vm1614, 1, 0
    %v1631 = vsel %vm1615, 1, 0
    %v1632 = vsel %vm1616, 1, 0
    %v1633 = vsel %vm1617, 1, 0
    %v1634 = vsel %vm1618, 1, 0
    %v1635 = vcvt.s32.f32 %v1619
    %v1636 = vcvt.s32.f32 %v1620
    %v1637 = vcvt.s32.f32 %v1621
    %v1638 = vcvt.s32.f32 %v1622
    %v1639 = vcvt.s32.f32 %v1623
    %v1640 = vcvt.s32.f32 %v1624
    %v1641 = vcvt.s32.f32 %v1625
    %v1642 = vcvt.s32.f32 %v1626
    %v1643 = vcvt.s32.f32 %v1627
    %v1644 = vcvt.s32.f32 %v1628
    %v1645 = vcvt.s32.f32 %v1629
    %v1646 = vcvt.s32.f32 %v1630
    %v1647 = vcvt.s32.f32 %v1631
    %v1648 = vcvt.s32.f32 %v1632
    %v1649 = vcvt.s32.f32 %v1633
    %v1650 = vcvt.s32.f32 %v1634
    %v1651 = vpack.c.bf16 %v1512, %v1511
    %v1652 = vpack.c.bf16 %v1514, %v1513
    %v1653 = vpack.c.bf16 %v1516, %v1515
    %v1654 = vpack.c.bf16 %v1518, %v1517
    %v1655 = vpack.c.bf16 %v1520, %v1519
    %v1656 = vpack.c.bf16 %v1522, %v1521
    %v1657 = vpack.c.bf16 %v1524, %v1523
    %v1658 = vpack.c.bf16 %v1526, %v1525
    %v1659 = vpack.c.bf16 %v1529, %v1528
    %v1660 = vpack.c.bf16 %v1531, %v1530
    %v1661 = vpack.c.bf16 %v1533, %v1532
    %v1662 = vpack.c.bf16 %v1535, %v1534
    %v1663 = vpack.c.bf16 %v1537, %v1536
    %v1664 = vpack.c.bf16 %v1539, %v1538
    %v1665 = vpack.c.bf16 %v1541, %v1540
    %v1666 = vpack.c.bf16 %v1543, %v1542
    %v1668 = vsel %vm208, %v1651, 0
    %v1671 = vsel %vm208, %v1652, 0
    %v1674 = vsel %vm208, %v1653, 0
    %v1677 = vsel %vm208, %v1654, 0
    %v1680 = vsel %vm208, %v1655, 0
    %v1683 = vsel %vm208, %v1656, 0
    %v1686 = vsel %vm208, %v1657, 0
    %v1689 = vsel %vm208, %v1658, 0
    %v1692 = vsel %vm208, %v1659, 0
    %v1695 = vsel %vm208, %v1660, 0
    %v1698 = vsel %vm208, %v1661, 0
    %v1701 = vsel %vm208, %v1662, 0
    %v1704 = vsel %vm208, %v1663, 0
    %v1707 = vsel %vm208, %v1664, 0
    %v1710 = vsel %vm208, %v1665, 0
    %v1713 = vsel %vm208, %v1666, 0
    %1715 = vmatprep.subr.bf16.mxu0 0
    %1716 = vmatpush1.bf16.xpose.msra.mxu0 %v1692
    %1717 = vmatprep.subr.bf16.mxu0 0
    %1718 = vmatpush1.bf16.xpose.msra.mxu0 %v1695
    %1719 = vmatprep.subr.bf16.mxu0 0
    %1720 = vmatpush1.bf16.xpose.msra.mxu0 %v1698
    %1721 = vmatprep.subr.bf16.mxu0 0
    %1722 = vmatpush1.bf16.xpose.msra.mxu0 %v1701
    %1723 = vmatprep.subr.bf16.mxu0 0
    %1724 = vmatpush1.bf16.xpose.msra.mxu0 %v1704
    %1725 = vmatprep.subr.bf16.mxu0 0
    %1726 = vmatpush1.bf16.xpose.msra.mxu0 %v1707
    %1727 = vmatprep.subr.bf16.mxu0 0
    %1728 = vmatpush1.bf16.xpose.msra.mxu0 %v1710
    %1729 = vmatprep.subr.bf16.mxu0 0
    %1730 = vmatpush1.bf16.xpose.msra.mxu0 %v1713
    %1731 = vmatprep.subr.bf16.mxu0 0
    %1732 = vmatpush1.bf16.xpose.msra.mxu0 0
    %1733 = vmatprep.subr.bf16.mxu0 0
    %1734 = vmatpush1.bf16.xpose.msra.mxu0 0
    %1735 = vmatprep.subr.bf16.mxu0 0
    %1736 = vmatpush1.bf16.xpose.msra.mxu0 0
    %1737 = vmatprep.subr.bf16.mxu0 0
    %1738 = vmatpush1.bf16.xpose.msra.mxu0 0
    %1739 = vmatprep.subr.bf16.mxu0 0
    %1740 = vmatpush1.bf16.xpose.msra.mxu0 0
    %1741 = vmatprep.subr.bf16.mxu0 0
    %1742 = vmatpush1.bf16.xpose.msra.mxu0 0
    %1743 = vmatprep.subr.bf16.mxu0 0
    %1744 = vmatpush1.bf16.xpose.msra.mxu0 0
    %1745 = vmatprep.subr.bf16.mxu0 0
    %1746 = vmatpush1.bf16.xpose.msra.mxu0 0
    %1747 = vmatprep.mubr.bf16.mxu0 0
    %1748 = vmatmul.mubr.bf16.gmra.mrb[0].mxu0 %v1668
    %v1749 = vpop.f32.mrb[0].mxu0
    %v1750 = vadd.f32 0.0, %v1749
    %v1751 = vpop.f32.mrb[0].mxu0
    %v1752 = vpop.f32.mrb[0].mxu0
    %v1753 = vadd.f32 0.0, %v1752
    %v1754 = vpop.f32.mrb[0].mxu0
    %1755 = vmatprep.mubr.bf16.mxu0 0
    %1756 = vmatmul.mubr.bf16.gmra.mrb[0].mxu0 %v1671
    %v1757 = vpop.f32.mrb[0].mxu0
    %v1758 = vadd.f32 0.0, %v1757
    %v1759 = vpop.f32.mrb[0].mxu0
    %v1760 = vpop.f32.mrb[0].mxu0
    %v1761 = vadd.f32 0.0, %v1760
    %v1762 = vpop.f32.mrb[0].mxu0
    %1763 = vmatprep.mubr.bf16.mxu0 0
    %1764 = vmatmul.mubr.bf16.gmra.mrb[0].mxu0 %v1674
    %v1765 = vpop.f32.mrb[0].mxu0
    %v1766 = vadd.f32 0.0, %v1765
    %v1767 = vpop.f32.mrb[0].mxu0
    %v1768 = vpop.f32.mrb[0].mxu0
    %v1769 = vadd.f32 0.0, %v1768
    %v1770 = vpop.f32.mrb[0].mxu0
    %1771 = vmatprep.mubr.bf16.mxu0 0
    %1772 = vmatmul.mubr.bf16.gmra.mrb[0].mxu0 %v1677
    %v1773 = vpop.f32.mrb[0].mxu0
    %v1774 = vadd.f32 0.0, %v1773
    %v1775 = vpop.f32.mrb[0].mxu0
    %v1776 = vpop.f32.mrb[0].mxu0
    %v1777 = vadd.f32 0.0, %v1776
    %v1778 = vpop.f32.mrb[0].mxu0
    %1779 = vmatprep.mubr.bf16.mxu0 0
    %1780 = vmatmul.mubr.bf16.gmra.mrb[0].mxu0 %v1680
    %v1781 = vpop.f32.mrb[0].mxu0
    %v1782 = vadd.f32 0.0, %v1781
    %v1783 = vpop.f32.mrb[0].mxu0
    %v1784 = vpop.f32.mrb[0].mxu0
    %v1785 = vadd.f32 0.0, %v1784
    %v1786 = vpop.f32.mrb[0].mxu0
    %1787 = vmatprep.mubr.bf16.mxu0 0
    %1788 = vmatmul.mubr.bf16.gmra.mrb[0].mxu0 %v1683
    %v1789 = vpop.f32.mrb[0].mxu0
    %v1790 = vadd.f32 0.0, %v1789
    %v1791 = vpop.f32.mrb[0].mxu0
    %v1792 = vpop.f32.mrb[0].mxu0
    %v1793 = vadd.f32 0.0, %v1792
    %v1794 = vpop.f32.mrb[0].mxu0
    %1795 = vmatprep.mubr.bf16.mxu0 0
    %1796 = vmatmul.mubr.bf16.gmra.mrb[0].mxu0 %v1686
    %v1797 = vpop.f32.mrb[0].mxu0
    %v1798 = vadd.f32 0.0, %v1797
    %v1799 = vpop.f32.mrb[0].mxu0
    %v1800 = vpop.f32.mrb[0].mxu0
    %v1801 = vadd.f32 0.0, %v1800
    %v1802 = vpop.f32.mrb[0].mxu0
    %1803 = vmatprep.mubr.bf16.mxu0 0
    %1804 = vmatmul.mubr.bf16.gmra.mrb[0].mxu0 %v1689
    %v1805 = vpop.f32.mrb[0].mxu0
    %v1806 = vadd.f32 0.0, %v1805
    %v1807 = vpop.f32.mrb[0].mxu0
    %v1808 = vpop.f32.mrb[0].mxu0
    %v1809 = vadd.f32 0.0, %v1808
    %v1810 = vpop.f32.mrb[0].mxu0
    %1811 = vdwg.mxu0
    %1812 = vxpose.xlu0.b32.start [1/16] %v1750, 128
    %1813 = vxpose.xlu0.b32.cont [2/16] %v1753, 128
    %1814 = vxpose.xlu0.b32.cont [3/16] %v1758, 128
    %1815 = vxpose.xlu0.b32.cont [4/16] %v1761, 128
    %1816 = vxpose.xlu0.b32.cont [5/16] %v1766, 128
    %1817 = vxpose.xlu0.b32.cont [6/16] %v1769, 128
    %1818 = vxpose.xlu0.b32.cont [7/16] %v1774, 128
    %1819 = vxpose.xlu0.b32.cont [8/16] %v1777, 128
    %1820 = vxpose.xlu0.b32.cont [9/16] %v1782, 128
    %1821 = vxpose.xlu0.b32.cont [10/16] %v1785, 128
    %1822 = vxpose.xlu0.b32.cont [11/16] %v1790, 128
    %1823 = vxpose.xlu0.b32.cont [12/16] %v1793, 128
    %1824 = vxpose.xlu0.b32.cont [13/16] %v1798, 128
    %1825 = vxpose.xlu0.b32.cont [14/16] %v1801, 128
    %1826 = vxpose.xlu0.b32.cont [15/16] %v1806, 128
    %1827 = vxpose.xlu0.b32.end [16/16] %v1809, 128
    %v1828 = vpop.trf.xlu0
    %v1829 = vpop.trf.xlu0
    %v1830 = vpop.trf.xlu0
    %v1831 = vpop.trf.xlu0
    %v1832 = vpop.trf.xlu0
    %v1833 = vpop.trf.xlu0
    %v1834 = vpop.trf.xlu0
    %v1835 = vpop.trf.xlu0
    %v1836 = vpop.trf.xlu0
    %v1837 = vpop.trf.xlu0
    %v1838 = vpop.trf.xlu0
    %v1839 = vpop.trf.xlu0
    %v1840 = vpop.trf.xlu0
    %v1841 = vpop.trf.xlu0
    %v1842 = vpop.trf.xlu0
    %v1843 = vpop.trf.xlu0
    %v1844 = vmul.f32 %v1750, %v1554
    %v1845 = vmul.f32 %v1753, %v1554
    %v1846 = vmul.f32 %v1758, %v1554
    %v1847 = vmul.f32 %v1761, %v1554
    %v1848 = vmul.f32 %v1766, %v1554
    %v1849 = vmul.f32 %v1769, %v1554
    %v1850 = vmul.f32 %v1774, %v1554
    %v1851 = vmul.f32 %v1777, %v1554
    %v1852 = vmul.f32 %v1782, %v1554
    %v1853 = vmul.f32 %v1785, %v1554
    %v1854 = vmul.f32 %v1790, %v1554
    %v1855 = vmul.f32 %v1793, %v1554
    %v1856 = vmul.f32 %v1798, %v1554
    %v1857 = vmul.f32 %v1801, %v1554
    %v1858 = vmul.f32 %v1806, %v1554
    %v1859 = vmul.f32 %v1809, %v1554
    %1860 = vmax.xlane.f32.xlu0 %v1844
    %v1861 = vpop.xlane.xlu0 %1860
    %1862 = vmax.xlane.f32.xlu0 %v1845
    %v1863 = vpop.xlane.xlu0 %1862
    %1864 = vmax.xlane.f32.xlu0 %v1846
    %v1865 = vpop.xlane.xlu0 %1864
    %1866 = vmax.xlane.f32.xlu0 %v1847
    %v1867 = vpop.xlane.xlu0 %1866
    %1868 = vmax.xlane.f32.xlu0 %v1848
    %v1869 = vpop.xlane.xlu0 %1868
    %1870 = vmax.xlane.f32.xlu0 %v1849
    %v1871 = vpop.xlane.xlu0 %1870
    %1872 = vmax.xlane.f32.xlu0 %v1850
    %v1873 = vpop.xlane.xlu0 %1872
    %1874 = vmax.xlane.f32.xlu0 %v1851
    %v1875 = vpop.xlane.xlu0 %1874
    %1876 = vmax.xlane.f32.xlu0 %v1852
    %v1877 = vpop.xlane.xlu0 %1876
    %1878 = vmax.xlane.f32.xlu0 %v1853
    %v1879 = vpop.xlane.xlu0 %1878
    %1880 = vmax.xlane.f32.xlu0 %v1854
    %v1881 = vpop.xlane.xlu0 %1880
    %1882 = vmax.xlane.f32.xlu0 %v1855
    %v1883 = vpop.xlane.xlu0 %1882
    %1884 = vmax.xlane.f32.xlu0 %v1856
    %v1885 = vpop.xlane.xlu0 %1884
    %1886 = vmax.xlane.f32.xlu0 %v1857
    %v1887 = vpop.xlane.xlu0 %1886
    %1888 = vmax.xlane.f32.xlu0 %v1858
    %v1889 = vpop.xlane.xlu0 %1888
    %1890 = vmax.xlane.f32.xlu0 %v1859
    %v1891 = vpop.xlane.xlu0 %1890
    %v1892 = vsub.f32 %v1844, %v1861
    %v1893 = vsub.f32 %v1845, %v1863
    %v1894 = vsub.f32 %v1846, %v1865
    %v1895 = vsub.f32 %v1847, %v1867
    %v1896 = vsub.f32 %v1848, %v1869
    %v1897 = vsub.f32 %v1849, %v1871
    %v1898 = vsub.f32 %v1850, %v1873
    %v1899 = vsub.f32 %v1851, %v1875
    %v1900 = vsub.f32 %v1852, %v1877
    %v1901 = vsub.f32 %v1853, %v1879
    %v1902 = vsub.f32 %v1854, %v1881
    %v1903 = vsub.f32 %v1855, %v1883
    %v1904 = vsub.f32 %v1856, %v1885
    %v1905 = vsub.f32 %v1857, %v1887
    %v1906 = vsub.f32 %v1858, %v1889
    %v1907 = vsub.f32 %v1859, %v1891
    %v1908 = vmul.f32 %v1892, 1.442695
    %v1909 = vpow.pop %v1908
    %v1910 = vmul.f32 %v1893, 1.442695
    %v1911 = vpow.pop %v1910
    %v1912 = vmul.f32 %v1894, 1.442695
    %v1913 = vpow.pop %v1912
    %v1914 = vmul.f32 %v1895, 1.442695
    %v1915 = vpow.pop %v1914
    %v1916 = vmul.f32 %v1896, 1.442695
    %v1917 = vpow.pop %v1916
    %v1918 = vmul.f32 %v1897, 1.442695
    %v1919 = vpow.pop %v1918
    %v1920 = vmul.f32 %v1898, 1.442695
    %v1921 = vpow.pop %v1920
    %v1922 = vmul.f32 %v1899, 1.442695
    %v1923 = vpow.pop %v1922
    %v1924 = vmul.f32 %v1900, 1.442695
    %v1925 = vpow.pop %v1924
    %v1926 = vmul.f32 %v1901, 1.442695
    %v1927 = vpow.pop %v1926
    %v1928 = vmul.f32 %v1902, 1.442695
    %v1929 = vpow.pop %v1928
    %v1930 = vmul.f32 %v1903, 1.442695
    %v1931 = vpow.pop %v1930
    %v1932 = vmul.f32 %v1904, 1.442695
    %v1933 = vpow.pop %v1932
    %v1934 = vmul.f32 %v1905, 1.442695
    %v1935 = vpow.pop %v1934
    %v1936 = vmul.f32 %v1906, 1.442695
    %v1937 = vpow.pop %v1936
    %v1938 = vmul.f32 %v1907, 1.442695
    %v1939 = vpow.pop %v1938
    %1940 = vadd.xlane.f32.xlu0 %v1909
    %v1941 = vpop.xlane.xlu0 %1940
    %1942 = vadd.xlane.f32.xlu0 %v1911
    %v1943 = vpop.xlane.xlu0 %1942
    %1944 = vadd.xlane.f32.xlu0 %v1913
    %v1945 = vpop.xlane.xlu0 %1944
    %1946 = vadd.xlane.f32.xlu0 %v1915
    %v1947 = vpop.xlane.xlu0 %1946
    %1948 = vadd.xlane.f32.xlu0 %v1917
    %v1949 = vpop.xlane.xlu0 %1948
    %1950 = vadd.xlane.f32.xlu0 %v1919
    %v1951 = vpop.xlane.xlu0 %1950
    %1952 = vadd.xlane.f32.xlu0 %v1921
    %v1953 = vpop.xlane.xlu0 %1952
    %1954 = vadd.xlane.f32.xlu0 %v1923
    %v1955 = vpop.xlane.xlu0 %1954
    %1956 = vadd.xlane.f32.xlu0 %v1925
    %v1957 = vpop.xlane.xlu0 %1956
    %1958 = vadd.xlane.f32.xlu0 %v1927
    %v1959 = vpop.xlane.xlu0 %1958
    %1960 = vadd.xlane.f32.xlu0 %v1929
    %v1961 = vpop.xlane.xlu0 %1960
    %1962 = vadd.xlane.f32.xlu0 %v1931
    %v1963 = vpop.xlane.xlu0 %1962
    %1964 = vadd.xlane.f32.xlu0 %v1933
    %v1965 = vpop.xlane.xlu0 %1964
    %1966 = vadd.xlane.f32.xlu0 %v1935
    %v1967 = vpop.xlane.xlu0 %1966
    %1968 = vadd.xlane.f32.xlu0 %v1937
    %v1969 = vpop.xlane.xlu0 %1968
    %1970 = vadd.xlane.f32.xlu0 %v1939
    %v1971 = vpop.xlane.xlu0 %1970
    %v1972 = vrcp.pop %v1941
    %v1973 = vrcp.pop %v1943
    %v1974 = vrcp.pop %v1945
    %v1975 = vrcp.pop %v1947
    %v1976 = vrcp.pop %v1949
    %v1977 = vrcp.pop %v1951
    %v1978 = vrcp.pop %v1953
    %v1979 = vrcp.pop %v1955
    %v1980 = vrcp.pop %v1957
    %v1981 = vrcp.pop %v1959
    %v1982 = vrcp.pop %v1961
    %v1983 = vrcp.pop %v1963
    %v1984 = vrcp.pop %v1965
    %v1985 = vrcp.pop %v1967
    %v1986 = vrcp.pop %v1969
    %v1987 = vrcp.pop %v1971
    %v1988 = vmul.f32 %v1909, %v1972
    %v1989 = vmul.f32 %v1911, %v1973
    %v1990 = vmul.f32 %v1913, %v1974
    %v1991 = vmul.f32 %v1915, %v1975
    %v1992 = vmul.f32 %v1917, %v1976
    %v1993 = vmul.f32 %v1919, %v1977
    %v1994 = vmul.f32 %v1921, %v1978
    %v1995 = vmul.f32 %v1923, %v1979
    %v1996 = vmul.f32 %v1925, %v1980
    %v1997 = vmul.f32 %v1927, %v1981
    %v1998 = vmul.f32 %v1929, %v1982
    %v1999 = vmul.f32 %v1931, %v1983
    %v2000 = vmul.f32 %v1933, %v1984
    %v2001 = vmul.f32 %v1935, %v1985
    %v2002 = vmul.f32 %v1937, %v1986
    %v2003 = vmul.f32 %v1939, %v1987
    %v2004 = vmul.f32 %v1988, %v1554
    %v2005 = vmul.f32 %v1989, %v1554
    %v2006 = vmul.f32 %v1990, %v1554
    %v2007 = vmul.f32 %v1991, %v1554
    %v2008 = vmul.f32 %v1992, %v1554
    %v2009 = vmul.f32 %v1993, %v1554
    %v2010 = vmul.f32 %v1994, %v1554
    %v2011 = vmul.f32 %v1995, %v1554
    %v2012 = vmul.f32 %v1996, %v1554
    %v2013 = vmul.f32 %v1997, %v1554
    %v2014 = vmul.f32 %v1998, %v1554
    %v2015 = vmul.f32 %v1999, %v1554
    %v2016 = vmul.f32 %v2000, %v1554
    %v2017 = vmul.f32 %v2001, %v1554
    %v2018 = vmul.f32 %v2002, %v1554
    %v2019 = vmul.f32 %v2003, %v1554
    %2020 = vadd.xlane.f32.xlu0 %v2004
    %v2021 = vpop.xlane.xlu0 %2020
    %2022 = vadd.xlane.f32.xlu0 %v2005
    %v2023 = vpop.xlane.xlu0 %2022
    %2024 = vadd.xlane.f32.xlu0 %v2006
    %v2025 = vpop.xlane.xlu0 %2024
    %2026 = vadd.xlane.f32.xlu0 %v2007
    %v2027 = vpop.xlane.xlu0 %2026
    %2028 = vadd.xlane.f32.xlu0 %v2008
    %v2029 = vpop.xlane.xlu0 %2028
    %2030 = vadd.xlane.f32.xlu0 %v2009
    %v2031 = vpop.xlane.xlu0 %2030
    %2032 = vadd.xlane.f32.xlu0 %v2010
    %v2033 = vpop.xlane.xlu0 %2032
    %2034 = vadd.xlane.f32.xlu0 %v2011
    %v2035 = vpop.xlane.xlu0 %2034
    %2036 = vadd.xlane.f32.xlu0 %v2012
    %v2037 = vpop.xlane.xlu0 %2036
    %2038 = vadd.xlane.f32.xlu0 %v2013
    %v2039 = vpop.xlane.xlu0 %2038
    %2040 = vadd.xlane.f32.xlu0 %v2014
    %v2041 = vpop.xlane.xlu0 %2040
    %2042 = vadd.xlane.f32.xlu0 %v2015
    %v2043 = vpop.xlane.xlu0 %2042
    %2044 = vadd.xlane.f32.xlu0 %v2016
    %v2045 = vpop.xlane.xlu0 %2044
    %2046 = vadd.xlane.f32.xlu0 %v2017
    %v2047 = vpop.xlane.xlu0 %2046
    %2048 = vadd.xlane.f32.xlu0 %v2018
    %v2049 = vpop.xlane.xlu0 %2048
    %2050 = vadd.xlane.f32.xlu0 %v2019
    %v2051 = vpop.xlane.xlu0 %2050
    %v2052 = vadd.f32 %v2021, 1e-13
    %v2053 = vadd.f32 %v2023, 1e-13
    %v2054 = vadd.f32 %v2025, 1e-13
    %v2055 = vadd.f32 %v2027, 1e-13
    %v2056 = vadd.f32 %v2029, 1e-13
    %v2057 = vadd.f32 %v2031, 1e-13
    %v2058 = vadd.f32 %v2033, 1e-13
    %v2059 = vadd.f32 %v2035, 1e-13
    %v2060 = vadd.f32 %v2037, 1e-13
    %v2061 = vadd.f32 %v2039, 1e-13
    %v2062 = vadd.f32 %v2041, 1e-13
    %v2063 = vadd.f32 %v2043, 1e-13
    %v2064 = vadd.f32 %v2045, 1e-13
    %v2065 = vadd.f32 %v2047, 1e-13
    %v2066 = vadd.f32 %v2049, 1e-13
    %v2067 = vadd.f32 %v2051, 1e-13
    %v2068 = vrcp.pop %v2052
    %v2069 = vrcp.pop %v2053
    %v2070 = vrcp.pop %v2054
    %v2071 = vrcp.pop %v2055
    %v2072 = vrcp.pop %v2056
    %v2073 = vrcp.pop %v2057
    %v2074 = vrcp.pop %v2058
    %v2075 = vrcp.pop %v2059
    %v2076 = vrcp.pop %v2060
    %v2077 = vrcp.pop %v2061
    %v2078 = vrcp.pop %v2062
    %v2079 = vrcp.pop %v2063
    %v2080 = vrcp.pop %v2064
    %v2081 = vrcp.pop %v2065
    %v2082 = vrcp.pop %v2066
    %v2083 = vrcp.pop %v2067
    %v2084 = vmul.f32 %v2004, %v2068
    %v2085 = vmul.f32 %v2005, %v2069
    %v2086 = vmul.f32 %v2006, %v2070
    %v2087 = vmul.f32 %v2007, %v2071
    %v2088 = vmul.f32 %v2008, %v2072
    %v2089 = vmul.f32 %v2009, %v2073
    %v2090 = vmul.f32 %v2010, %v2074
    %v2091 = vmul.f32 %v2011, %v2075
    %v2092 = vmul.f32 %v2012, %v2076
    %v2093 = vmul.f32 %v2013, %v2077
    %v2094 = vmul.f32 %v2014, %v2078
    %v2095 = vmul.f32 %v2015, %v2079
    %v2096 = vmul.f32 %v2016, %v2080
    %v2097 = vmul.f32 %v2017, %v2081
    %v2098 = vmul.f32 %v2018, %v2082
    %v2099 = vmul.f32 %v2019, %v2083
    %v2100 = vmul.f32 %v1828, %v1550
    %v2101 = vmul.f32 %v1829, %v1550
    %v2102 = vmul.f32 %v1830, %v1550
    %v2103 = vmul.f32 %v1831, %v1550
    %v2104 = vmul.f32 %v1832, %v1550
    %v2105 = vmul.f32 %v1833, %v1550
    %v2106 = vmul.f32 %v1834, %v1550
    %v2107 = vmul.f32 %v1835, %v1550
    %v2108 = vmul.f32 %v1836, %v1550
    %v2109 = vmul.f32 %v1837, %v1550
    %v2110 = vmul.f32 %v1838, %v1550
    %v2111 = vmul.f32 %v1839, %v1550
    %v2112 = vmul.f32 %v1840, %v1550
    %v2113 = vmul.f32 %v1841, %v1550
    %v2114 = vmul.f32 %v1842, %v1550
    %v2115 = vmul.f32 %v1843, %v1550
    %2116 = vmax.xlane.f32.xlu0 %v2100
    %v2117 = vpop.xlane.xlu0 %2116
    %2118 = vmax.xlane.f32.xlu0 %v2101
    %v2119 = vpop.xlane.xlu0 %2118
    %2120 = vmax.xlane.f32.xlu0 %v2102
    %v2121 = vpop.xlane.xlu0 %2120
    %2122 = vmax.xlane.f32.xlu0 %v2103
    %v2123 = vpop.xlane.xlu0 %2122
    %2124 = vmax.xlane.f32.xlu0 %v2104
    %v2125 = vpop.xlane.xlu0 %2124
    %2126 = vmax.xlane.f32.xlu0 %v2105
    %v2127 = vpop.xlane.xlu0 %2126
    %2128 = vmax.xlane.f32.xlu0 %v2106
    %v2129 = vpop.xlane.xlu0 %2128
    %2130 = vmax.xlane.f32.xlu0 %v2107
    %v2131 = vpop.xlane.xlu0 %2130
    %2132 = vmax.xlane.f32.xlu0 %v2108
    %v2133 = vpop.xlane.xlu0 %2132
    %2134 = vmax.xlane.f32.xlu0 %v2109
    %v2135 = vpop.xlane.xlu0 %2134
    %2136 = vmax.xlane.f32.xlu0 %v2110
    %v2137 = vpop.xlane.xlu0 %2136
    %2138 = vmax.xlane.f32.xlu0 %v2111
    %v2139 = vpop.xlane.xlu0 %2138
    %2140 = vmax.xlane.f32.xlu0 %v2112
    %v2141 = vpop.xlane.xlu0 %2140
    %2142 = vmax.xlane.f32.xlu0 %v2113
    %v2143 = vpop.xlane.xlu0 %2142
    %2144 = vmax.xlane.f32.xlu0 %v2114
    %v2145 = vpop.xlane.xlu0 %2144
    %2146 = vmax.xlane.f32.xlu0 %v2115
    %v2147 = vpop.xlane.xlu0 %2146
    %v2148 = vsub.f32 %v2100, %v2117
    %v2149 = vsub.f32 %v2101, %v2119
    %v2150 = vsub.f32 %v2102, %v2121
    %v2151 = vsub.f32 %v2103, %v2123
    %v2152 = vsub.f32 %v2104, %v2125
    %v2153 = vsub.f32 %v2105, %v2127
    %v2154 = vsub.f32 %v2106, %v2129
    %v2155 = vsub.f32 %v2107, %v2131
    %v2156 = vsub.f32 %v2108, %v2133
    %v2157 = vsub.f32 %v2109, %v2135
    %v2158 = vsub.f32 %v2110, %v2137
    %v2159 = vsub.f32 %v2111, %v2139
    %v2160 = vsub.f32 %v2112, %v2141
    %v2161 = vsub.f32 %v2113, %v2143
    %v2162 = vsub.f32 %v2114, %v2145
    %v2163 = vsub.f32 %v2115, %v2147
    %v2164 = vmul.f32 %v2148, 1.442695
    %v2165 = vpow.pop %v2164
    %v2166 = vmul.f32 %v2149, 1.442695
    %v2167 = vpow.pop %v2166
    %v2168 = vmul.f32 %v2150, 1.442695
    %v2169 = vpow.pop %v2168
    %v2170 = vmul.f32 %v2151, 1.442695
    %v2171 = vpow.pop %v2170
    %v2172 = vmul.f32 %v2152, 1.442695
    %v2173 = vpow.pop %v2172
    %v2174 = vmul.f32 %v2153, 1.442695
    %v2175 = vpow.pop %v2174
    %v2176 = vmul.f32 %v2154, 1.442695
    %v2177 = vpow.pop %v2176
    %v2178 = vmul.f32 %v2155, 1.442695
    %v2179 = vpow.pop %v2178
    %v2180 = vmul.f32 %v2156, 1.442695
    %v2181 = vpow.pop %v2180
    %v2182 = vmul.f32 %v2157, 1.442695
    %v2183 = vpow.pop %v2182
    %v2184 = vmul.f32 %v2158, 1.442695
    %v2185 = vpow.pop %v2184
    %v2186 = vmul.f32 %v2159, 1.442695
    %v2187 = vpow.pop %v2186
    %v2188 = vmul.f32 %v2160, 1.442695
    %v2189 = vpow.pop %v2188
    %v2190 = vmul.f32 %v2161, 1.442695
    %v2191 = vpow.pop %v2190
    %v2192 = vmul.f32 %v2162, 1.442695
    %v2193 = vpow.pop %v2192
    %v2194 = vmul.f32 %v2163, 1.442695
    %v2195 = vpow.pop %v2194
    %2196 = vadd.xlane.f32.xlu0 %v2165
    %v2197 = vpop.xlane.xlu0 %2196
    %2198 = vadd.xlane.f32.xlu0 %v2167
    %v2199 = vpop.xlane.xlu0 %2198
    %2200 = vadd.xlane.f32.xlu0 %v2169
    %v2201 = vpop.xlane.xlu0 %2200
    %2202 = vadd.xlane.f32.xlu0 %v2171
    %v2203 = vpop.xlane.xlu0 %2202
    %2204 = vadd.xlane.f32.xlu0 %v2173
    %v2205 = vpop.xlane.xlu0 %2204
    %2206 = vadd.xlane.f32.xlu0 %v2175
    %v2207 = vpop.xlane.xlu0 %2206
    %2208 = vadd.xlane.f32.xlu0 %v2177
    %v2209 = vpop.xlane.xlu0 %2208
    %2210 = vadd.xlane.f32.xlu0 %v2179
    %v2211 = vpop.xlane.xlu0 %2210
    %2212 = vadd.xlane.f32.xlu0 %v2181
    %v2213 = vpop.xlane.xlu0 %2212
    %2214 = vadd.xlane.f32.xlu0 %v2183
    %v2215 = vpop.xlane.xlu0 %2214
    %2216 = vadd.xlane.f32.xlu0 %v2185
    %v2217 = vpop.xlane.xlu0 %2216
    %2218 = vadd.xlane.f32.xlu0 %v2187
    %v2219 = vpop.xlane.xlu0 %2218
    %2220 = vadd.xlane.f32.xlu0 %v2189
    %v2221 = vpop.xlane.xlu0 %2220
    %2222 = vadd.xlane.f32.xlu0 %v2191
    %v2223 = vpop.xlane.xlu0 %2222
    %2224 = vadd.xlane.f32.xlu0 %v2193
    %v2225 = vpop.xlane.xlu0 %2224
    %2226 = vadd.xlane.f32.xlu0 %v2195
    %v2227 = vpop.xlane.xlu0 %2226
    %v2228 = vrcp.pop %v2197
    %v2229 = vrcp.pop %v2199
    %v2230 = vrcp.pop %v2201
    %v2231 = vrcp.pop %v2203
    %v2232 = vrcp.pop %v2205
    %v2233 = vrcp.pop %v2207
    %v2234 = vrcp.pop %v2209
    %v2235 = vrcp.pop %v2211
    %v2236 = vrcp.pop %v2213
    %v2237 = vrcp.pop %v2215
    %v2238 = vrcp.pop %v2217
    %v2239 = vrcp.pop %v2219
    %v2240 = vrcp.pop %v2221
    %v2241 = vrcp.pop %v2223
    %v2242 = vrcp.pop %v2225
    %v2243 = vrcp.pop %v2227
    %v2244 = vmul.f32 %v2165, %v2228
    %v2245 = vmul.f32 %v2167, %v2229
    %v2246 = vmul.f32 %v2169, %v2230
    %v2247 = vmul.f32 %v2171, %v2231
    %v2248 = vmul.f32 %v2173, %v2232
    %v2249 = vmul.f32 %v2175, %v2233
    %v2250 = vmul.f32 %v2177, %v2234
    %v2251 = vmul.f32 %v2179, %v2235
    %v2252 = vmul.f32 %v2181, %v2236
    %v2253 = vmul.f32 %v2183, %v2237
    %v2254 = vmul.f32 %v2185, %v2238
    %v2255 = vmul.f32 %v2187, %v2239
    %v2256 = vmul.f32 %v2189, %v2240
    %v2257 = vmul.f32 %v2191, %v2241
    %v2258 = vmul.f32 %v2193, %v2242
    %v2259 = vmul.f32 %v2195, %v2243
    %v2260 = vmul.f32 %v2244, %v1550
    %v2261 = vmul.f32 %v2245, %v1550
    %v2262 = vmul.f32 %v2246, %v1550
    %v2263 = vmul.f32 %v2247, %v1550
    %v2264 = vmul.f32 %v2248, %v1550
    %v2265 = vmul.f32 %v2249, %v1550
    %v2266 = vmul.f32 %v2250, %v1550
    %v2267 = vmul.f32 %v2251, %v1550
    %v2268 = vmul.f32 %v2252, %v1550
    %v2269 = vmul.f32 %v2253, %v1550
    %v2270 = vmul.f32 %v2254, %v1550
    %v2271 = vmul.f32 %v2255, %v1550
    %v2272 = vmul.f32 %v2256, %v1550
    %v2273 = vmul.f32 %v2257, %v1550
    %v2274 = vmul.f32 %v2258, %v1550
    %v2275 = vmul.f32 %v2259, %v1550
    %2276 = vadd.xlane.f32.xlu0 %v2260
    %v2277 = vpop.xlane.xlu0 %2276
    %2278 = vadd.xlane.f32.xlu0 %v2261
    %v2279 = vpop.xlane.xlu0 %2278
    %2280 = vadd.xlane.f32.xlu0 %v2262
    %v2281 = vpop.xlane.xlu0 %2280
    %2282 = vadd.xlane.f32.xlu0 %v2263
    %v2283 = vpop.xlane.xlu0 %2282
    %2284 = vadd.xlane.f32.xlu0 %v2264
    %v2285 = vpop.xlane.xlu0 %2284
    %2286 = vadd.xlane.f32.xlu0 %v2265
    %v2287 = vpop.xlane.xlu0 %2286
    %2288 = vadd.xlane.f32.xlu0 %v2266
    %v2289 = vpop.xlane.xlu0 %2288
    %2290 = vadd.xlane.f32.xlu0 %v2267
    %v2291 = vpop.xlane.xlu0 %2290
    %2292 = vadd.xlane.f32.xlu0 %v2268
    %v2293 = vpop.xlane.xlu0 %2292
    %2294 = vadd.xlane.f32.xlu0 %v2269
    %v2295 = vpop.xlane.xlu0 %2294
    %2296 = vadd.xlane.f32.xlu0 %v2270
    %v2297 = vpop.xlane.xlu0 %2296
    %2298 = vadd.xlane.f32.xlu0 %v2271
    %v2299 = vpop.xlane.xlu0 %2298
    %2300 = vadd.xlane.f32.xlu0 %v2272
    %v2301 = vpop.xlane.xlu0 %2300
    %2302 = vadd.xlane.f32.xlu0 %v2273
    %v2303 = vpop.xlane.xlu0 %2302
    %2304 = vadd.xlane.f32.xlu0 %v2274
    %v2305 = vpop.xlane.xlu0 %2304
    %2306 = vadd.xlane.f32.xlu0 %v2275
    %v2307 = vpop.xlane.xlu0 %2306
    %v2308 = vadd.f32 %v2277, 1e-13
    %v2309 = vadd.f32 %v2279, 1e-13
    %v2310 = vadd.f32 %v2281, 1e-13
    %v2311 = vadd.f32 %v2283, 1e-13
    %v2312 = vadd.f32 %v2285, 1e-13
    %v2313 = vadd.f32 %v2287, 1e-13
    %v2314 = vadd.f32 %v2289, 1e-13
    %v2315 = vadd.f32 %v2291, 1e-13
    %v2316 = vadd.f32 %v2293, 1e-13
    %v2317 = vadd.f32 %v2295, 1e-13
    %v2318 = vadd.f32 %v2297, 1e-13
    %v2319 = vadd.f32 %v2299, 1e-13
    %v2320 = vadd.f32 %v2301, 1e-13
    %v2321 = vadd.f32 %v2303, 1e-13
    %v2322 = vadd.f32 %v2305, 1e-13
    %v2323 = vadd.f32 %v2307, 1e-13
    %v2324 = vrcp.pop %v2308
    %v2325 = vrcp.pop %v2309
    %v2326 = vrcp.pop %v2310
    %v2327 = vrcp.pop %v2311
    %v2328 = vrcp.pop %v2312
    %v2329 = vrcp.pop %v2313
    %v2330 = vrcp.pop %v2314
    %v2331 = vrcp.pop %v2315
    %v2332 = vrcp.pop %v2316
    %v2333 = vrcp.pop %v2317
    %v2334 = vrcp.pop %v2318
    %v2335 = vrcp.pop %v2319
    %v2336 = vrcp.pop %v2320
    %v2337 = vrcp.pop %v2321
    %v2338 = vrcp.pop %v2322
    %v2339 = vrcp.pop %v2323
    %v2340 = vmul.f32 %v2260, %v2324
    %v2341 = vmul.f32 %v2261, %v2325
    %v2342 = vmul.f32 %v2262, %v2326
    %v2343 = vmul.f32 %v2263, %v2327
    %v2344 = vmul.f32 %v2264, %v2328
    %v2345 = vmul.f32 %v2265, %v2329
    %v2346 = vmul.f32 %v2266, %v2330
    %v2347 = vmul.f32 %v2267, %v2331
    %v2348 = vmul.f32 %v2268, %v2332
    %v2349 = vmul.f32 %v2269, %v2333
    %v2350 = vmul.f32 %v2270, %v2334
    %v2351 = vmul.f32 %v2271, %v2335
    %v2352 = vmul.f32 %v2272, %v2336
    %v2353 = vmul.f32 %v2273, %v2337
    %v2354 = vmul.f32 %v2274, %v2338
    %v2355 = vmul.f32 %v2275, %v2339
    %v2356 = vpack.c.bf16 %v2085, %v2084
    %v2357 = vpack.c.bf16 %v2087, %v2086
    %v2358 = vpack.c.bf16 %v2089, %v2088
    %v2359 = vpack.c.bf16 %v2091, %v2090
    %v2360 = vpack.c.bf16 %v2093, %v2092
    %v2361 = vpack.c.bf16 %v2095, %v2094
    %v2362 = vpack.c.bf16 %v2097, %v2096
    %v2363 = vpack.c.bf16 %v2099, %v2098
    %2364 = vmatprep.subr.bf16.mxu0 0
    %2365 = vmatpush1.bf16.msra.mxu0 %v1659
    %2366 = vmatprep.subr.bf16.mxu0 0
    %2367 = vmatpush1.bf16.msra.mxu0 %v1660
    %2368 = vmatprep.subr.bf16.mxu0 0
    %2369 = vmatpush1.bf16.msra.mxu0 %v1661
    %2370 = vmatprep.subr.bf16.mxu0 0
    %2371 = vmatpush1.bf16.msra.mxu0 %v1662
    %2372 = vmatprep.subr.bf16.mxu0 0
    %2373 = vmatpush1.bf16.msra.mxu0 %v1663
    %2374 = vmatprep.subr.bf16.mxu0 0
    %2375 = vmatpush1.bf16.msra.mxu0 %v1664
    %2376 = vmatprep.subr.bf16.mxu0 0
    %2377 = vmatpush1.bf16.msra.mxu0 %v1665
    %2378 = vmatprep.subr.bf16.mxu0 0
    %2379 = vmatpush1.bf16.msra.mxu0 %v1666
    %2380 = vmatprep.subr.bf16.mxu0 0
    %2381 = vmatpush1.bf16.msra.mxu0 0
    %2382 = vmatprep.subr.bf16.mxu0 0
    %2383 = vmatpush1.bf16.msra.mxu0 0
    %2384 = vmatprep.subr.bf16.mxu0 0
    %2385 = vmatpush1.bf16.msra.mxu0 0
    %2386 = vmatprep.subr.bf16.mxu0 0
    %2387 = vmatpush1.bf16.msra.mxu0 0
    %2388 = vmatprep.subr.bf16.mxu0 0
    %2389 = vmatpush1.bf16.msra.mxu0 0
    %2390 = vmatprep.subr.bf16.mxu0 0
    %2391 = vmatpush1.bf16.msra.mxu0 0
    %2392 = vmatprep.subr.bf16.mxu0 0
    %2393 = vmatpush1.bf16.msra.mxu0 0
    %2394 = vmatprep.subr.bf16.mxu0 0
    %2395 = vmatpush1.bf16.msra.mxu0 0
    %2396 = vmatprep.mubr.bf16.mxu0 0
    %2397 = vmatmul.mubr.bf16.gmra.mrb[0].mxu0 %v2356
    %v2398 = vpop.f32.mrb[0].mxu0
    %v2399 = vadd.f32 0.0, %v2398
    %v2400 = vpop.f32.mrb[0].mxu0
    %v2401 = vpop.f32.mrb[0].mxu0
    %v2402 = vadd.f32 0.0, %v2401
    %v2403 = vpop.f32.mrb[0].mxu0
    %2404 = vmatprep.mubr.bf16.mxu0 0
    %2405 = vmatmul.mubr.bf16.gmra.mrb[0].mxu0 %v2357
    %v2406 = vpop.f32.mrb[0].mxu0
    %v2407 = vadd.f32 0.0, %v2406
    %v2408 = vpop.f32.mrb[0].mxu0
    %v2409 = vpop.f32.mrb[0].mxu0
    %v2410 = vadd.f32 0.0, %v2409
    %v2411 = vpop.f32.mrb[0].mxu0
    %2412 = vmatprep.mubr.bf16.mxu0 0
    %2413 = vmatmul.mubr.bf16.gmra.mrb[0].mxu0 %v2358
    %v2414 = vpop.f32.mrb[0].mxu0
    %v2415 = vadd.f32 0.0, %v2414
    %v2416 = vpop.f32.mrb[0].mxu0
    %v2417 = vpop.f32.mrb[0].mxu0
    %v2418 = vadd.f32 0.0, %v2417
    %v2419 = vpop.f32.mrb[0].mxu0
    %2420 = vmatprep.mubr.bf16.mxu0 0
    %2421 = vmatmul.mubr.bf16.gmra.mrb[0].mxu0 %v2359
    %v2422 = vpop.f32.mrb[0].mxu0
    %v2423 = vadd.f32 0.0, %v2422
    %v2424 = vpop.f32.mrb[0].mxu0
    %v2425 = vpop.f32.mrb[0].mxu0
    %v2426 = vadd.f32 0.0, %v2425
    %v2427 = vpop.f32.mrb[0].mxu0
    %2428 = vmatprep.mubr.bf16.mxu0 0
    %2429 = vmatmul.mubr.bf16.gmra.mrb[0].mxu0 %v2360
    %v2430 = vpop.f32.mrb[0].mxu0
    %v2431 = vadd.f32 0.0, %v2430
    %v2432 = vpop.f32.mrb[0].mxu0
    %v2433 = vpop.f32.mrb[0].mxu0
    %v2434 = vadd.f32 0.0, %v2433
    %v2435 = vpop.f32.mrb[0].mxu0
    %2436 = vmatprep.mubr.bf16.mxu0 0
    %2437 = vmatmul.mubr.bf16.gmra.mrb[0].mxu0 %v2361
    %v2438 = vpop.f32.mrb[0].mxu0
    %v2439 = vadd.f32 0.0, %v2438
    %v2440 = vpop.f32.mrb[0].mxu0
    %v2441 = vpop.f32.mrb[0].mxu0
    %v2442 = vadd.f32 0.0, %v2441
    %v2443 = vpop.f32.mrb[0].mxu0
    %2444 = vmatprep.mubr.bf16.mxu0 0
    %2445 = vmatmul.mubr.bf16.gmra.mrb[0].mxu0 %v2362
    %v2446 = vpop.f32.mrb[0].mxu0
    %v2447 = vadd.f32 0.0, %v2446
    %v2448 = vpop.f32.mrb[0].mxu0
    %v2449 = vpop.f32.mrb[0].mxu0
    %v2450 = vadd.f32 0.0, %v2449
    %v2451 = vpop.f32.mrb[0].mxu0
    %2452 = vmatprep.mubr.bf16.mxu0 0
    %2453 = vmatmul.mubr.bf16.gmra.mrb[0].mxu0 %v2363
    %v2454 = vpop.f32.mrb[0].mxu0
    %v2455 = vadd.f32 0.0, %v2454
    %v2456 = vpop.f32.mrb[0].mxu0
    %v2457 = vpop.f32.mrb[0].mxu0
    %v2458 = vadd.f32 0.0, %v2457
    %v2459 = vpop.f32.mrb[0].mxu0
    %2460 = vdwg.mxu0
    %v2461 = vmul.f32 %v2399, %v1587
    %v2462 = vmul.f32 %v2402, %v1588
    %v2463 = vmul.f32 %v2407, %v1589
    %v2464 = vmul.f32 %v2410, %v1590
    %v2465 = vmul.f32 %v2415, %v1591
    %v2466 = vmul.f32 %v2418, %v1592
    %v2467 = vmul.f32 %v2423, %v1593
    %v2468 = vmul.f32 %v2426, %v1594
    %v2469 = vmul.f32 %v2431, %v1595
    %v2470 = vmul.f32 %v2434, %v1596
    %v2471 = vmul.f32 %v2439, %v1597
    %v2472 = vmul.f32 %v2442, %v1598
    %v2473 = vmul.f32 %v2447, %v1599
    %v2474 = vmul.f32 %v2450, %v1600
    %v2475 = vmul.f32 %v2455, %v1601
    %v2476 = vmul.f32 %v2458, %v1602
    %v2477 = vpack.c.bf16 %v2341, %v2340
    %v2478 = vpack.c.bf16 %v2343, %v2342
    %v2479 = vpack.c.bf16 %v2345, %v2344
    %v2480 = vpack.c.bf16 %v2347, %v2346
    %v2481 = vpack.c.bf16 %v2349, %v2348
    %v2482 = vpack.c.bf16 %v2351, %v2350
    %v2483 = vpack.c.bf16 %v2353, %v2352
    %v2484 = vpack.c.bf16 %v2355, %v2354
    %2485 = vmatprep.subr.bf16.mxu0 0
    %2486 = vmatpush1.bf16.msra.mxu0 %v1651
    %2487 = vmatprep.subr.bf16.mxu0 0
    %2488 = vmatpush1.bf16.msra.mxu0 %v1652
    %2489 = vmatprep.subr.bf16.mxu0 0
    %2490 = vmatpush1.bf16.msra.mxu0 %v1653
    %2491 = vmatprep.subr.bf16.mxu0 0
    %2492 = vmatpush1.bf16.msra.mxu0 %v1654
    %2493 = vmatprep.subr.bf16.mxu0 0
    %2494 = vmatpush1.bf16.msra.mxu0 %v1655
    %2495 = vmatprep.subr.bf16.mxu0 0
    %2496 = vmatpush1.bf16.msra.mxu0 %v1656
    %2497 = vmatprep.subr.bf16.mxu0 0
    %2498 = vmatpush1.bf16.msra.mxu0 %v1657
    %2499 = vmatprep.subr.bf16.mxu0 0
    %2500 = vmatpush1.bf16.msra.mxu0 %v1658
    %2501 = vmatprep.subr.bf16.mxu0 0
    %2502 = vmatpush1.bf16.msra.mxu0 0
    %2503 = vmatprep.subr.bf16.mxu0 0
    %2504 = vmatpush1.bf16.msra.mxu0 0
    %2505 = vmatprep.subr.bf16.mxu0 0
    %2506 = vmatpush1.bf16.msra.mxu0 0
    %2507 = vmatprep.subr.bf16.mxu0 0
    %2508 = vmatpush1.bf16.msra.mxu0 0
    %2509 = vmatprep.subr.bf16.mxu0 0
    %2510 = vmatpush1.bf16.msra.mxu0 0
    %2511 = vmatprep.subr.bf16.mxu0 0
    %2512 = vmatpush1.bf16.msra.mxu0 0
    %2513 = vmatprep.subr.bf16.mxu0 0
    %2514 = vmatpush1.bf16.msra.mxu0 0
    %2515 = vmatprep.subr.bf16.mxu0 0
    %2516 = vmatpush1.bf16.msra.mxu0 0
    %2517 = vmatprep.mubr.bf16.mxu0 0
    %2518 = vmatmul.mubr.bf16.gmra.mrb[0].mxu0 %v2477
    %v2519 = vpop.f32.mrb[0].mxu0
    %v2520 = vadd.f32 0.0, %v2519
    %v2521 = vpop.f32.mrb[0].mxu0
    %v2522 = vpop.f32.mrb[0].mxu0
    %v2523 = vadd.f32 0.0, %v2522
    %v2524 = vpop.f32.mrb[0].mxu0
    %2525 = vmatprep.mubr.bf16.mxu0 0
    %2526 = vmatmul.mubr.bf16.gmra.mrb[0].mxu0 %v2478
    %v2527 = vpop.f32.mrb[0].mxu0
    %v2528 = vadd.f32 0.0, %v2527
    %v2529 = vpop.f32.mrb[0].mxu0
    %v2530 = vpop.f32.mrb[0].mxu0
    %v2531 = vadd.f32 0.0, %v2530
    %v2532 = vpop.f32.mrb[0].mxu0
    %2533 = vmatprep.mubr.bf16.mxu0 0
    %2534 = vmatmul.mubr.bf16.gmra.mrb[0].mxu0 %v2479
    %v2535 = vpop.f32.mrb[0].mxu0
    %v2536 = vadd.f32 0.0, %v2535
    %v2537 = vpop.f32.mrb[0].mxu0
    %v2538 = vpop.f32.mrb[0].mxu0
    %v2539 = vadd.f32 0.0, %v2538
    %v2540 = vpop.f32.mrb[0].mxu0
    %2541 = vmatprep.mubr.bf16.mxu0 0
    %2542 = vmatmul.mubr.bf16.gmra.mrb[0].mxu0 %v2480
    %v2543 = vpop.f32.mrb[0].mxu0
    %v2544 = vadd.f32 0.0, %v2543
    %v2545 = vpop.f32.mrb[0].mxu0
    %v2546 = vpop.f32.mrb[0].mxu0
    %v2547 = vadd.f32 0.0, %v2546
    %v2548 = vpop.f32.mrb[0].mxu0
    %2549 = vmatprep.mubr.bf16.mxu0 0
    %2550 = vmatmul.mubr.bf16.gmra.mrb[0].mxu0 %v2481
    %v2551 = vpop.f32.mrb[0].mxu0
    %v2552 = vadd.f32 0.0, %v2551
    %v2553 = vpop.f32.mrb[0].mxu0
    %v2554 = vpop.f32.mrb[0].mxu0
    %v2555 = vadd.f32 0.0, %v2554
    %v2556 = vpop.f32.mrb[0].mxu0
    %2557 = vmatprep.mubr.bf16.mxu0 0
    %2558 = vmatmul.mubr.bf16.gmra.mrb[0].mxu0 %v2482
    %v2559 = vpop.f32.mrb[0].mxu0
    %v2560 = vadd.f32 0.0, %v2559
    %v2561 = vpop.f32.mrb[0].mxu0
    %v2562 = vpop.f32.mrb[0].mxu0
    %v2563 = vadd.f32 0.0, %v2562
    %v2564 = vpop.f32.mrb[0].mxu0
    %2565 = vmatprep.mubr.bf16.mxu0 0
    %2566 = vmatmul.mubr.bf16.gmra.mrb[0].mxu0 %v2483
    %v2567 = vpop.f32.mrb[0].mxu0
    %v2568 = vadd.f32 0.0, %v2567
    %v2569 = vpop.f32.mrb[0].mxu0
    %v2570 = vpop.f32.mrb[0].mxu0
    %v2571 = vadd.f32 0.0, %v2570
    %v2572 = vpop.f32.mrb[0].mxu0
    %2573 = vmatprep.mubr.bf16.mxu0 0
    %2574 = vmatmul.mubr.bf16.gmra.mrb[0].mxu0 %v2484
    %v2575 = vpop.f32.mrb[0].mxu0
    %v2576 = vadd.f32 0.0, %v2575
    %v2577 = vpop.f32.mrb[0].mxu0
    %v2578 = vpop.f32.mrb[0].mxu0
    %v2579 = vadd.f32 0.0, %v2578
    %v2580 = vpop.f32.mrb[0].mxu0
    %2581 = vdwg.mxu0
    %v2582 = vmul.f32 %v2520, %v1635
    %v2583 = vmul.f32 %v2523, %v1636
    %v2584 = vmul.f32 %v2528, %v1637
    %v2585 = vmul.f32 %v2531, %v1638
    %v2586 = vmul.f32 %v2536, %v1639
    %v2587 = vmul.f32 %v2539, %v1640
    %v2588 = vmul.f32 %v2544, %v1641
    %v2589 = vmul.f32 %v2547, %v1642
    %v2590 = vmul.f32 %v2552, %v1643
    %v2591 = vmul.f32 %v2555, %v1644
    %v2592 = vmul.f32 %v2560, %v1645
    %v2593 = vmul.f32 %v2563, %v1646
    %v2594 = vmul.f32 %v2568, %v1647
    %v2595 = vmul.f32 %v2571, %v1648
    %v2596 = vmul.f32 %v2576, %v1649
    %v2597 = vmul.f32 %v2579, %v1650
    %v2598 = vpack.c.bf16 %v2462, %v2461
    %v2599 = vpack.c.bf16 %v2464, %v2463
    %v2600 = vpack.c.bf16 %v2466, %v2465
    %v2601 = vpack.c.bf16 %v2468, %v2467
    %v2602 = vpack.c.bf16 %v2470, %v2469
    %v2603 = vpack.c.bf16 %v2472, %v2471
    %v2604 = vpack.c.bf16 %v2474, %v2473
    %v2605 = vpack.c.bf16 %v2476, %v2475
    %v2606 = vsub.f32 %v1511, %v2461
    %v2607 = vsub.f32 %v1512, %v2462
    %v2608 = vsub.f32 %v1513, %v2463
    %v2609 = vsub.f32 %v1514, %v2464
    %v2610 = vsub.f32 %v1515, %v2465
    %v2611 = vsub.f32 %v1516, %v2466
    %v2612 = vsub.f32 %v1517, %v2467
    %v2613 = vsub.f32 %v1518, %v2468
    %v2614 = vsub.f32 %v1519, %v2469
    %v2615 = vsub.f32 %v1520, %v2470
    %v2616 = vsub.f32 %v1521, %v2471
    %v2617 = vsub.f32 %v1522, %v2472
    %v2618 = vsub.f32 %v1523, %v2473
    %v2619 = vsub.f32 %v1524, %v2474
    %v2620 = vsub.f32 %v1525, %v2475
    %v2621 = vsub.f32 %v1526, %v2476
    %v2622 = vpack.c.bf16 %v2607, %v2606
    %v2623 = vpack.c.bf16 %v2609, %v2608
    %v2624 = vpack.c.bf16 %v2611, %v2610
    %v2625 = vpack.c.bf16 %v2613, %v2612
    %v2626 = vpack.c.bf16 %v2615, %v2614
    %v2627 = vpack.c.bf16 %v2617, %v2616
    %v2628 = vpack.c.bf16 %v2619, %v2618
    %v2629 = vpack.c.bf16 %v2621, %v2620
    %v2630 = vmul.f32 %v1511, %v2461
    %v2631 = vmul.f32 %v1512, %v2462
    %v2632 = vmul.f32 %v1513, %v2463
    %v2633 = vmul.f32 %v1514, %v2464
    %v2634 = vmul.f32 %v1515, %v2465
    %v2635 = vmul.f32 %v1516, %v2466
    %v2636 = vmul.f32 %v1517, %v2467
    %v2637 = vmul.f32 %v1518, %v2468
    %v2638 = vmul.f32 %v1519, %v2469
    %v2639 = vmul.f32 %v1520, %v2470
    %v2640 = vmul.f32 %v1521, %v2471
    %v2641 = vmul.f32 %v1522, %v2472
    %v2642 = vmul.f32 %v1523, %v2473
    %v2643 = vmul.f32 %v1524, %v2474
    %v2644 = vmul.f32 %v1525, %v2475
    %v2645 = vmul.f32 %v1526, %v2476
    %v2646 = vpack.c.bf16 %v2631, %v2630
    %v2647 = vpack.c.bf16 %v2633, %v2632
    %v2648 = vpack.c.bf16 %v2635, %v2634
    %v2649 = vpack.c.bf16 %v2637, %v2636
    %v2650 = vpack.c.bf16 %v2639, %v2638
    %v2651 = vpack.c.bf16 %v2641, %v2640
    %v2652 = vpack.c.bf16 %v2643, %v2642
    %v2653 = vpack.c.bf16 %v2645, %v2644
    %2662 = vrot.lane.b32.xlu0 %v2598, 32
    %v2663 = vpop.permute.xlu0 %2662
    %2664 = vrot.lane.b32.xlu0 %v2599, 32
    %v2665 = vpop.permute.xlu0 %2664
    %2666 = vrot.lane.b32.xlu0 %v2600, 32
    %v2667 = vpop.permute.xlu0 %2666
    %2668 = vrot.lane.b32.xlu0 %v2601, 32
    %v2669 = vpop.permute.xlu0 %2668
    %2670 = vrot.lane.b32.xlu0 %v2602, 32
    %v2671 = vpop.permute.xlu0 %2670
    %2672 = vrot.lane.b32.xlu0 %v2603, 32
    %v2673 = vpop.permute.xlu0 %2672
    %2674 = vrot.lane.b32.xlu0 %v2604, 32
    %v2675 = vpop.permute.xlu0 %2674
    %2676 = vrot.lane.b32.xlu0 %v2605, 32
    %v2677 = vpop.permute.xlu0 %2676
    %2686 = vrot.lane.b32.xlu0 %v2622, 64
    %v2687 = vpop.permute.xlu0 %2686
    %2688 = vrot.lane.b32.xlu0 %v2623, 64
    %v2689 = vpop.permute.xlu0 %2688
    %2690 = vrot.lane.b32.xlu0 %v2624, 64
    %v2691 = vpop.permute.xlu0 %2690
    %2692 = vrot.lane.b32.xlu0 %v2625, 64
    %v2693 = vpop.permute.xlu0 %2692
    %2694 = vrot.lane.b32.xlu0 %v2626, 64
    %v2695 = vpop.permute.xlu0 %2694
    %2696 = vrot.lane.b32.xlu0 %v2627, 64
    %v2697 = vpop.permute.xlu0 %2696
    %2698 = vrot.lane.b32.xlu0 %v2628, 64
    %v2699 = vpop.permute.xlu0 %2698
    %2700 = vrot.lane.b32.xlu0 %v2629, 64
    %v2701 = vpop.permute.xlu0 %2700
    %2710 = vrot.lane.b32.xlu0 %v2646, 96
    %v2711 = vpop.permute.xlu0 %2710
    %2712 = vrot.lane.b32.xlu0 %v2647, 96
    %v2713 = vpop.permute.xlu0 %2712
    %2714 = vrot.lane.b32.xlu0 %v2648, 96
    %v2715 = vpop.permute.xlu0 %2714
    %2716 = vrot.lane.b32.xlu0 %v2649, 96
    %v2717 = vpop.permute.xlu0 %2716
    %2718 = vrot.lane.b32.xlu0 %v2650, 96
    %v2719 = vpop.permute.xlu0 %2718
    %2720 = vrot.lane.b32.xlu0 %v2651, 96
    %v2721 = vpop.permute.xlu0 %2720
    %2722 = vrot.lane.b32.xlu0 %v2652, 96
    %v2723 = vpop.permute.xlu0 %2722
    %2724 = vrot.lane.b32.xlu0 %v2653, 96
    %v2725 = vpop.permute.xlu0 %2724
    %v2727 = vsel %vm208, %v1651, %v2663
    %v2729 = vsel %vm208, %v1652, %v2665
    %v2731 = vsel %vm208, %v1653, %v2667
    %v2733 = vsel %vm208, %v1654, %v2669
    %v2735 = vsel %vm208, %v1655, %v2671
    %v2737 = vsel %vm208, %v1656, %v2673
    %v2739 = vsel %vm208, %v1657, %v2675
    %v2741 = vsel %vm208, %v1658, %v2677
    %v2743 = vsel %vm1284, %v2727, %v2687
    %v2745 = vsel %vm1284, %v2729, %v2689
    %v2747 = vsel %vm1284, %v2731, %v2691
    %v2749 = vsel %vm1284, %v2733, %v2693
    %v2751 = vsel %vm1284, %v2735, %v2695
    %v2753 = vsel %vm1284, %v2737, %v2697
    %v2755 = vsel %vm1284, %v2739, %v2699
    %v2757 = vsel %vm1284, %v2741, %v2701
    %v2759 = vsel %vm1301, %v2743, %v2711
    %v2762 = vsel %vm1301, %v2745, %v2713
    %v2765 = vsel %vm1301, %v2747, %v2715
    %v2768 = vsel %vm1301, %v2749, %v2717
    %v2771 = vsel %vm1301, %v2751, %v2719
    %v2774 = vsel %vm1301, %v2753, %v2721
    %v2777 = vsel %vm1301, %v2755, %v2723
    %v2780 = vsel %vm1301, %v2757, %v2725
    %v2782 = vpack.c.bf16 %v2583, %v2582
    %v2783 = vpack.c.bf16 %v2585, %v2584
    %v2784 = vpack.c.bf16 %v2587, %v2586
    %v2785 = vpack.c.bf16 %v2589, %v2588
    %v2786 = vpack.c.bf16 %v2591, %v2590
    %v2787 = vpack.c.bf16 %v2593, %v2592
    %v2788 = vpack.c.bf16 %v2595, %v2594
    %v2789 = vpack.c.bf16 %v2597, %v2596
    %v2790 = vsub.f32 %v1528, %v2582
    %v2791 = vsub.f32 %v1529, %v2583
    %v2792 = vsub.f32 %v1530, %v2584
    %v2793 = vsub.f32 %v1531, %v2585
    %v2794 = vsub.f32 %v1532, %v2586
    %v2795 = vsub.f32 %v1533, %v2587
    %v2796 = vsub.f32 %v1534, %v2588
    %v2797 = vsub.f32 %v1535, %v2589
    %v2798 = vsub.f32 %v1536, %v2590
    %v2799 = vsub.f32 %v1537, %v2591
    %v2800 = vsub.f32 %v1538, %v2592
    %v2801 = vsub.f32 %v1539, %v2593
    %v2802 = vsub.f32 %v1540, %v2594
    %v2803 = vsub.f32 %v1541, %v2595
    %v2804 = vsub.f32 %v1542, %v2596
    %v2805 = vsub.f32 %v1543, %v2597
    %v2806 = vpack.c.bf16 %v2791, %v2790
    %v2807 = vpack.c.bf16 %v2793, %v2792
    %v2808 = vpack.c.bf16 %v2795, %v2794
    %v2809 = vpack.c.bf16 %v2797, %v2796
    %v2810 = vpack.c.bf16 %v2799, %v2798
    %v2811 = vpack.c.bf16 %v2801, %v2800
    %v2812 = vpack.c.bf16 %v2803, %v2802
    %v2813 = vpack.c.bf16 %v2805, %v2804
    %v2814 = vmul.f32 %v1528, %v2582
    %v2815 = vmul.f32 %v1529, %v2583
    %v2816 = vmul.f32 %v1530, %v2584
    %v2817 = vmul.f32 %v1531, %v2585
    %v2818 = vmul.f32 %v1532, %v2586
    %v2819 = vmul.f32 %v1533, %v2587
    %v2820 = vmul.f32 %v1534, %v2588
    %v2821 = vmul.f32 %v1535, %v2589
    %v2822 = vmul.f32 %v1536, %v2590
    %v2823 = vmul.f32 %v1537, %v2591
    %v2824 = vmul.f32 %v1538, %v2592
    %v2825 = vmul.f32 %v1539, %v2593
    %v2826 = vmul.f32 %v1540, %v2594
    %v2827 = vmul.f32 %v1541, %v2595
    %v2828 = vmul.f32 %v1542, %v2596
    %v2829 = vmul.f32 %v1543, %v2597
    %v2830 = vpack.c.bf16 %v2815, %v2814
    %v2831 = vpack.c.bf16 %v2817, %v2816
    %v2832 = vpack.c.bf16 %v2819, %v2818
    %v2833 = vpack.c.bf16 %v2821, %v2820
    %v2834 = vpack.c.bf16 %v2823, %v2822
    %v2835 = vpack.c.bf16 %v2825, %v2824
    %v2836 = vpack.c.bf16 %v2827, %v2826
    %v2837 = vpack.c.bf16 %v2829, %v2828
    %2846 = vrot.lane.b32.xlu0 %v2782, 32
    %v2847 = vpop.permute.xlu0 %2846
    %2848 = vrot.lane.b32.xlu0 %v2783, 32
    %v2849 = vpop.permute.xlu0 %2848
    %2850 = vrot.lane.b32.xlu0 %v2784, 32
    %v2851 = vpop.permute.xlu0 %2850
    %2852 = vrot.lane.b32.xlu0 %v2785, 32
    %v2853 = vpop.permute.xlu0 %2852
    %2854 = vrot.lane.b32.xlu0 %v2786, 32
    %v2855 = vpop.permute.xlu0 %2854
    %2856 = vrot.lane.b32.xlu0 %v2787, 32
    %v2857 = vpop.permute.xlu0 %2856
    %2858 = vrot.lane.b32.xlu0 %v2788, 32
    %v2859 = vpop.permute.xlu0 %2858
    %2860 = vrot.lane.b32.xlu0 %v2789, 32
    %v2861 = vpop.permute.xlu0 %2860
    %2870 = vrot.lane.b32.xlu0 %v2806, 64
    %v2871 = vpop.permute.xlu0 %2870
    %2872 = vrot.lane.b32.xlu0 %v2807, 64
    %v2873 = vpop.permute.xlu0 %2872
    %2874 = vrot.lane.b32.xlu0 %v2808, 64
    %v2875 = vpop.permute.xlu0 %2874
    %2876 = vrot.lane.b32.xlu0 %v2809, 64
    %v2877 = vpop.permute.xlu0 %2876
    %2878 = vrot.lane.b32.xlu0 %v2810, 64
    %v2879 = vpop.permute.xlu0 %2878
    %2880 = vrot.lane.b32.xlu0 %v2811, 64
    %v2881 = vpop.permute.xlu0 %2880
    %2882 = vrot.lane.b32.xlu0 %v2812, 64
    %v2883 = vpop.permute.xlu0 %2882
    %2884 = vrot.lane.b32.xlu0 %v2813, 64
    %v2885 = vpop.permute.xlu0 %2884
    %2894 = vrot.lane.b32.xlu0 %v2830, 96
    %v2895 = vpop.permute.xlu0 %2894
    %2896 = vrot.lane.b32.xlu0 %v2831, 96
    %v2897 = vpop.permute.xlu0 %2896
    %2898 = vrot.lane.b32.xlu0 %v2832, 96
    %v2899 = vpop.permute.xlu0 %2898
    %2900 = vrot.lane.b32.xlu0 %v2833, 96
    %v2901 = vpop.permute.xlu0 %2900
    %2902 = vrot.lane.b32.xlu0 %v2834, 96
    %v2903 = vpop.permute.xlu0 %2902
    %2904 = vrot.lane.b32.xlu0 %v2835, 96
    %v2905 = vpop.permute.xlu0 %2904
    %2906 = vrot.lane.b32.xlu0 %v2836, 96
    %v2907 = vpop.permute.xlu0 %2906
    %2908 = vrot.lane.b32.xlu0 %v2837, 96
    %v2909 = vpop.permute.xlu0 %2908
    %v2911 = vsel %vm208, %v1659, %v2847
    %v2913 = vsel %vm208, %v1660, %v2849
    %v2915 = vsel %vm208, %v1661, %v2851
    %v2917 = vsel %vm208, %v1662, %v2853
    %v2919 = vsel %vm208, %v1663, %v2855
    %v2921 = vsel %vm208, %v1664, %v2857
    %v2923 = vsel %vm208, %v1665, %v2859
    %v2925 = vsel %vm208, %v1666, %v2861
    %v2927 = vsel %vm1284, %v2911, %v2871
    %v2929 = vsel %vm1284, %v2913, %v2873
    %v2931 = vsel %vm1284, %v2915, %v2875
    %v2933 = vsel %vm1284, %v2917, %v2877
    %v2935 = vsel %vm1284, %v2919, %v2879
    %v2937 = vsel %vm1284, %v2921, %v2881
    %v2939 = vsel %vm1284, %v2923, %v2883
    %v2941 = vsel %vm1284, %v2925, %v2885
    %v2943 = vsel %vm1301, %v2927, %v2895
    %v2946 = vsel %vm1301, %v2929, %v2897
    %v2949 = vsel %vm1301, %v2931, %v2899
    %v2952 = vsel %vm1301, %v2933, %v2901
    %v2955 = vsel %vm1301, %v2935, %v2903
    %v2958 = vsel %vm1301, %v2937, %v2905
    %v2961 = vsel %vm1301, %v2939, %v2907
    %v2964 = vsel %vm1301, %v2941, %v2909
    %v2966 = vld [vmem:[%s4] sm:$0xff]
    %v2967 = vld [vmem:[%s4 + $0x8] sm:$0xff]
    %v2968 = vld [vmem:[%s4 + $0x10] sm:$0xff]
    %v2969 = vld [vmem:[%s4 + $0x18] sm:$0xff]
    %v2970 = vld [vmem:[%s4 + $0x20] sm:$0xff]
    %v2971 = vld [vmem:[%s4 + $0x28] sm:$0xff]
    %v2972 = vld [vmem:[%s4 + $0x30] sm:$0xff]
    %v2973 = vld [vmem:[%s4 + $0x38] sm:$0xff]
    %v2974 = vld [vmem:[%s4 + $0x40] sm:$0xff]
    %v2975 = vld [vmem:[%s4 + $0x48] sm:$0xff]
    %v2976 = vld [vmem:[%s4 + $0x50] sm:$0xff]
    %v2977 = vld [vmem:[%s4 + $0x58] sm:$0xff]
    %v2978 = vld [vmem:[%s4 + $0x60] sm:$0xff]
    %v2979 = vld [vmem:[%s4 + $0x68] sm:$0xff]
    %v2980 = vld [vmem:[%s4 + $0x70] sm:$0xff]
    %v2981 = vld [vmem:[%s4 + $0x78] sm:$0xff]
    %v2982 = vpack.c.bf16 %v2967, %v2966
    %v2983 = vpack.c.bf16 %v2969, %v2968
    %v2984 = vpack.c.bf16 %v2971, %v2970
    %v2985 = vpack.c.bf16 %v2973, %v2972
    %v2986 = vpack.c.bf16 %v2975, %v2974
    %v2987 = vpack.c.bf16 %v2977, %v2976
    %v2988 = vpack.c.bf16 %v2979, %v2978
    %v2989 = vpack.c.bf16 %v2981, %v2980
    %s2990 = scalar_lea.vmem %s4, 128
    %v2991 = vld [vmem:[%s2990] sm:$0xff]
    %v2992 = vld [vmem:[%s2990 + $0x8] sm:$0xff]
    %v2993 = vld [vmem:[%s2990 + $0x10] sm:$0xff]
    %v2994 = vld [vmem:[%s2990 + $0x18] sm:$0xff]
    %v2995 = vld [vmem:[%s2990 + $0x20] sm:$0xff]
    %v2996 = vld [vmem:[%s2990 + $0x28] sm:$0xff]
    %v2997 = vld [vmem:[%s2990 + $0x30] sm:$0xff]
    %v2998 = vld [vmem:[%s2990 + $0x38] sm:$0xff]
    %v2999 = vld [vmem:[%s2990 + $0x40] sm:$0xff]
    %v3000 = vld [vmem:[%s2990 + $0x48] sm:$0xff]
    %v3001 = vld [vmem:[%s2990 + $0x50] sm:$0xff]
    %v3002 = vld [vmem:[%s2990 + $0x58] sm:$0xff]
    %v3003 = vld [vmem:[%s2990 + $0x60] sm:$0xff]
    %v3004 = vld [vmem:[%s2990 + $0x68] sm:$0xff]
    %v3005 = vld [vmem:[%s2990 + $0x70] sm:$0xff]
    %v3006 = vld [vmem:[%s2990 + $0x78] sm:$0xff]
    %v3007 = vpack.c.bf16 %v2992, %v2991
    %v3008 = vpack.c.bf16 %v2994, %v2993
    %v3009 = vpack.c.bf16 %v2996, %v2995
    %v3010 = vpack.c.bf16 %v2998, %v2997
    %v3011 = vpack.c.bf16 %v3000, %v2999
    %v3012 = vpack.c.bf16 %v3002, %v3001
    %v3013 = vpack.c.bf16 %v3004, %v3003
    %v3014 = vpack.c.bf16 %v3006, %v3005
    %v3015 = vld [vmem:[%s6] sm:$0x1]
    %v3016 = vld [vmem:[%s6 + $0x1] sm:$0x1]
    %v3017 = vlaneseq
    %v3018 = vshrl.u32 %v3017, 7
    %v3019 = vsub.s32 0, %v3018
    %v3020 = vrot.slane %v3015, %v3019
    %3021 = vmatprep.subr.bf16.mxu0 0
    %3022 = vmatpush1.bf16.msra.mxu0 %v2982
    %3023 = vmatprep.subr.bf16.mxu0 0
    %3024 = vmatpush1.bf16.msra.mxu0 %v2983
    %3025 = vmatprep.subr.bf16.mxu0 0
    %3026 = vmatpush1.bf16.msra.mxu0 %v2984
    %3027 = vmatprep.subr.bf16.mxu0 0
    %3028 = vmatpush1.bf16.msra.mxu0 %v2985
    %3029 = vmatprep.subr.bf16.mxu0 0
    %3030 = vmatpush1.bf16.msra.mxu0 %v2986
    %3031 = vmatprep.subr.bf16.mxu0 0
    %3032 = vmatpush1.bf16.msra.mxu0 %v2987
    %3033 = vmatprep.subr.bf16.mxu0 0
    %3034 = vmatpush1.bf16.msra.mxu0 %v2988
    %3035 = vmatprep.subr.bf16.mxu0 0
    %3036 = vmatpush1.bf16.msra.mxu0 %v2989
    %3037 = vmatprep.subr.bf16.mxu0 0
    %3038 = vmatpush1.bf16.msra.mxu0 0
    %3039 = vmatprep.subr.bf16.mxu0 0
    %3040 = vmatpush1.bf16.msra.mxu0 0
    %3041 = vmatprep.subr.bf16.mxu0 0
    %3042 = vmatpush1.bf16.msra.mxu0 0
    %3043 = vmatprep.subr.bf16.mxu0 0
    %3044 = vmatpush1.bf16.msra.mxu0 0
    %3045 = vmatprep.subr.bf16.mxu0 0
    %3046 = vmatpush1.bf16.msra.mxu0 0
    %3047 = vmatprep.subr.bf16.mxu0 0
    %3048 = vmatpush1.bf16.msra.mxu0 0
    %3049 = vmatprep.subr.bf16.mxu0 0
    %3050 = vmatpush1.bf16.msra.mxu0 0
    %3051 = vmatprep.subr.bf16.mxu0 0
    %3052 = vmatpush1.bf16.msra.mxu0 0
    %3053 = vmatprep.mubr.bf16.mxu0 0
    %3054 = vmatmul.mubr.bf16.gmra.mrb[0].mxu0 %v1303
    %v3055 = vpop.f32.mrb[0].mxu0
    %v3056 = vadd.f32 %v3020, %v3055
    %v3057 = vpop.f32.mrb[0].mxu0
    %v3058 = vpop.f32.mrb[0].mxu0
    %v3059 = vadd.f32 %v3020, %v3058
    %v3060 = vpop.f32.mrb[0].mxu0
    %3061 = vmatprep.mubr.bf16.mxu0 0
    %3062 = vmatmul.mubr.bf16.gmra.mrb[0].mxu0 %v1306
    %v3063 = vpop.f32.mrb[0].mxu0
    %v3064 = vadd.f32 %v3020, %v3063
    %v3065 = vpop.f32.mrb[0].mxu0
    %v3066 = vpop.f32.mrb[0].mxu0
    %v3067 = vadd.f32 %v3020, %v3066
    %v3068 = vpop.f32.mrb[0].mxu0
    %3069 = vmatprep.mubr.bf16.mxu0 0
    %3070 = vmatmul.mubr.bf16.gmra.mrb[0].mxu0 %v1309
    %v3071 = vpop.f32.mrb[0].mxu0
    %v3072 = vadd.f32 %v3020, %v3071
    %v3073 = vpop.f32.mrb[0].mxu0
    %v3074 = vpop.f32.mrb[0].mxu0
    %v3075 = vadd.f32 %v3020, %v3074
    %v3076 = vpop.f32.mrb[0].mxu0
    %3077 = vmatprep.mubr.bf16.mxu0 0
    %3078 = vmatmul.mubr.bf16.gmra.mrb[0].mxu0 %v1312
    %v3079 = vpop.f32.mrb[0].mxu0
    %v3080 = vadd.f32 %v3020, %v3079
    %v3081 = vpop.f32.mrb[0].mxu0
    %v3082 = vpop.f32.mrb[0].mxu0
    %v3083 = vadd.f32 %v3020, %v3082
    %v3084 = vpop.f32.mrb[0].mxu0
    %3085 = vmatprep.mubr.bf16.mxu0 0
    %3086 = vmatmul.mubr.bf16.gmra.mrb[0].mxu0 %v1315
    %v3087 = vpop.f32.mrb[0].mxu0
    %v3088 = vadd.f32 %v3020, %v3087
    %v3089 = vpop.f32.mrb[0].mxu0
    %v3090 = vpop.f32.mrb[0].mxu0
    %v3091 = vadd.f32 %v3020, %v3090
    %v3092 = vpop.f32.mrb[0].mxu0
    %3093 = vmatprep.mubr.bf16.mxu0 0
    %3094 = vmatmul.mubr.bf16.gmra.mrb[0].mxu0 %v1318
    %v3095 = vpop.f32.mrb[0].mxu0
    %v3096 = vadd.f32 %v3020, %v3095
    %v3097 = vpop.f32.mrb[0].mxu0
    %v3098 = vpop.f32.mrb[0].mxu0
    %v3099 = vadd.f32 %v3020, %v3098
    %v3100 = vpop.f32.mrb[0].mxu0
    %3101 = vmatprep.mubr.bf16.mxu0 0
    %3102 = vmatmul.mubr.bf16.gmra.mrb[0].mxu0 %v1321
    %v3103 = vpop.f32.mrb[0].mxu0
    %v3104 = vadd.f32 %v3020, %v3103
    %v3105 = vpop.f32.mrb[0].mxu0
    %v3106 = vpop.f32.mrb[0].mxu0
    %v3107 = vadd.f32 %v3020, %v3106
    %v3108 = vpop.f32.mrb[0].mxu0
    %3109 = vmatprep.mubr.bf16.mxu0 0
    %3110 = vmatmul.mubr.bf16.gmra.mrb[0].mxu0 %v1324
    %v3111 = vpop.f32.mrb[0].mxu0
    %v3112 = vadd.f32 %v3020, %v3111
    %v3113 = vpop.f32.mrb[0].mxu0
    %v3114 = vpop.f32.mrb[0].mxu0
    %v3115 = vadd.f32 %v3020, %v3114
    %v3116 = vpop.f32.mrb[0].mxu0
    %3117 = vmatprep.mubr.bf16.mxu0 0
    %3118 = vmatmul.mubr.bf16.gmra.mrb[0].mxu0 %v2759
    %v3119 = vpop.f32.mrb[0].mxu0
    %v3120 = vadd.f32 %v3020, %v3119
    %v3121 = vpop.f32.mrb[0].mxu0
    %v3122 = vpop.f32.mrb[0].mxu0
    %v3123 = vadd.f32 %v3020, %v3122
    %v3124 = vpop.f32.mrb[0].mxu0
    %3125 = vmatprep.mubr.bf16.mxu0 0
    %3126 = vmatmul.mubr.bf16.gmra.mrb[0].mxu0 %v2762
    %v3127 = vpop.f32.mrb[0].mxu0
    %v3128 = vadd.f32 %v3020, %v3127
    %v3129 = vpop.f32.mrb[0].mxu0
    %v3130 = vpop.f32.mrb[0].mxu0
    %v3131 = vadd.f32 %v3020, %v3130
    %v3132 = vpop.f32.mrb[0].mxu0
    %3133 = vmatprep.mubr.bf16.mxu0 0
    %3134 = vmatmul.mubr.bf16.gmra.mrb[0].mxu0 %v2765
    %v3135 = vpop.f32.mrb[0].mxu0
    %v3136 = vadd.f32 %v3020, %v3135
    %v3137 = vpop.f32.mrb[0].mxu0
    %v3138 = vpop.f32.mrb[0].mxu0
    %v3139 = vadd.f32 %v3020, %v3138
    %v3140 = vpop.f32.mrb[0].mxu0
    %3141 = vmatprep.mubr.bf16.mxu0 0
    %3142 = vmatmul.mubr.bf16.gmra.mrb[0].mxu0 %v2768
    %v3143 = vpop.f32.mrb[0].mxu0
    %v3144 = vadd.f32 %v3020, %v3143
    %v3145 = vpop.f32.mrb[0].mxu0
    %v3146 = vpop.f32.mrb[0].mxu0
    %v3147 = vadd.f32 %v3020, %v3146
    %v3148 = vpop.f32.mrb[0].mxu0
    %3149 = vmatprep.mubr.bf16.mxu0 0
    %3150 = vmatmul.mubr.bf16.gmra.mrb[0].mxu0 %v2771
    %v3151 = vpop.f32.mrb[0].mxu0
    %v3152 = vadd.f32 %v3020, %v3151
    %v3153 = vpop.f32.mrb[0].mxu0
    %v3154 = vpop.f32.mrb[0].mxu0
    %v3155 = vadd.f32 %v3020, %v3154
    %v3156 = vpop.f32.mrb[0].mxu0
    %3157 = vmatprep.mubr.bf16.mxu0 0
    %3158 = vmatmul.mubr.bf16.gmra.mrb[0].mxu0 %v2774
    %v3159 = vpop.f32.mrb[0].mxu0
    %v3160 = vadd.f32 %v3020, %v3159
    %v3161 = vpop.f32.mrb[0].mxu0
    %v3162 = vpop.f32.mrb[0].mxu0
    %v3163 = vadd.f32 %v3020, %v3162
    %v3164 = vpop.f32.mrb[0].mxu0
    %3165 = vmatprep.mubr.bf16.mxu0 0
    %3166 = vmatmul.mubr.bf16.gmra.mrb[0].mxu0 %v2777
    %v3167 = vpop.f32.mrb[0].mxu0
    %v3168 = vadd.f32 %v3020, %v3167
    %v3169 = vpop.f32.mrb[0].mxu0
    %v3170 = vpop.f32.mrb[0].mxu0
    %v3171 = vadd.f32 %v3020, %v3170
    %v3172 = vpop.f32.mrb[0].mxu0
    %3173 = vmatprep.mubr.bf16.mxu0 0
    %3174 = vmatmul.mubr.bf16.gmra.mrb[0].mxu0 %v2780
    %v3175 = vpop.f32.mrb[0].mxu0
    %v3176 = vadd.f32 %v3020, %v3175
    %v3177 = vpop.f32.mrb[0].mxu0
    %v3178 = vpop.f32.mrb[0].mxu0
    %v3179 = vadd.f32 %v3020, %v3178
    %v3180 = vpop.f32.mrb[0].mxu0
    %3181 = vdwg.mxu0
    %vm3182 = vcmp.ge.f32.partialorder %v3056, 0.0
    %vm3183 = vcmp.ge.f32.partialorder %v3059, 0.0
    %vm3184 = vcmp.ge.f32.partialorder %v3064, 0.0
    %vm3185 = vcmp.ge.f32.partialorder %v3067, 0.0
    %vm3186 = vcmp.ge.f32.partialorder %v3072, 0.0
    %vm3187 = vcmp.ge.f32.partialorder %v3075, 0.0
    %vm3188 = vcmp.ge.f32.partialorder %v3080, 0.0
    %vm3189 = vcmp.ge.f32.partialorder %v3083, 0.0
    %vm3190 = vcmp.ge.f32.partialorder %v3088, 0.0
    %vm3191 = vcmp.ge.f32.partialorder %v3091, 0.0
    %vm3192 = vcmp.ge.f32.partialorder %v3096, 0.0
    %vm3193 = vcmp.ge.f32.partialorder %v3099, 0.0
    %vm3194 = vcmp.ge.f32.partialorder %v3104, 0.0
    %vm3195 = vcmp.ge.f32.partialorder %v3107, 0.0
    %vm3196 = vcmp.ge.f32.partialorder %v3112, 0.0
    %vm3197 = vcmp.ge.f32.partialorder %v3115, 0.0
    %vm3198 = vcmp.ge.f32.partialorder %v3120, 0.0
    %vm3199 = vcmp.ge.f32.partialorder %v3123, 0.0
    %vm3200 = vcmp.ge.f32.partialorder %v3128, 0.0
    %vm3201 = vcmp.ge.f32.partialorder %v3131, 0.0
    %vm3202 = vcmp.ge.f32.partialorder %v3136, 0.0
    %vm3203 = vcmp.ge.f32.partialorder %v3139, 0.0
    %vm3204 = vcmp.ge.f32.partialorder %v3144, 0.0
    %vm3205 = vcmp.ge.f32.partialorder %v3147, 0.0
    %vm3206 = vcmp.ge.f32.partialorder %v3152, 0.0
    %vm3207 = vcmp.ge.f32.partialorder %v3155, 0.0
    %vm3208 = vcmp.ge.f32.partialorder %v3160, 0.0
    %vm3209 = vcmp.ge.f32.partialorder %v3163, 0.0
    %vm3210 = vcmp.ge.f32.partialorder %v3168, 0.0
    %vm3211 = vcmp.ge.f32.partialorder %v3171, 0.0
    %vm3212 = vcmp.ge.f32.partialorder %v3176, 0.0
    %vm3213 = vcmp.ge.f32.partialorder %v3179, 0.0
    %v3214 = vmul.f32 %v3056, 0.01
    %v3215 = vmul.f32 %v3059, 0.01
    %v3216 = vmul.f32 %v3064, 0.01
    %v3217 = vmul.f32 %v3067, 0.01
    %v3218 = vmul.f32 %v3072, 0.01
    %v3219 = vmul.f32 %v3075, 0.01
    %v3220 = vmul.f32 %v3080, 0.01
    %v3221 = vmul.f32 %v3083, 0.01
    %v3222 = vmul.f32 %v3088, 0.01
    %v3223 = vmul.f32 %v3091, 0.01
    %v3224 = vmul.f32 %v3096, 0.01
    %v3225 = vmul.f32 %v3099, 0.01
    %v3226 = vmul.f32 %v3104, 0.01
    %v3227 = vmul.f32 %v3107, 0.01
    %v3228 = vmul.f32 %v3112, 0.01
    %v3229 = vmul.f32 %v3115, 0.01
    %v3230 = vmul.f32 %v3120, 0.01
    %v3231 = vmul.f32 %v3123, 0.01
    %v3232 = vmul.f32 %v3128, 0.01
    %v3233 = vmul.f32 %v3131, 0.01
    %v3234 = vmul.f32 %v3136, 0.01
    %v3235 = vmul.f32 %v3139, 0.01
    %v3236 = vmul.f32 %v3144, 0.01
    %v3237 = vmul.f32 %v3147, 0.01
    %v3238 = vmul.f32 %v3152, 0.01
    %v3239 = vmul.f32 %v3155, 0.01
    %v3240 = vmul.f32 %v3160, 0.01
    %v3241 = vmul.f32 %v3163, 0.01
    %v3242 = vmul.f32 %v3168, 0.01
    %v3243 = vmul.f32 %v3171, 0.01
    %v3244 = vmul.f32 %v3176, 0.01
    %v3245 = vmul.f32 %v3179, 0.01
    %v3246 = vsel %vm3182, %v3056, %v3214
    %v3247 = vsel %vm3183, %v3059, %v3215
    %v3248 = vsel %vm3184, %v3064, %v3216
    %v3249 = vsel %vm3185, %v3067, %v3217
    %v3250 = vsel %vm3186, %v3072, %v3218
    %v3251 = vsel %vm3187, %v3075, %v3219
    %v3252 = vsel %vm3188, %v3080, %v3220
    %v3253 = vsel %vm3189, %v3083, %v3221
    %v3254 = vsel %vm3190, %v3088, %v3222
    %v3255 = vsel %vm3191, %v3091, %v3223
    %v3256 = vsel %vm3192, %v3096, %v3224
    %v3257 = vsel %vm3193, %v3099, %v3225
    %v3258 = vsel %vm3194, %v3104, %v3226
    %v3259 = vsel %vm3195, %v3107, %v3227
    %v3260 = vsel %vm3196, %v3112, %v3228
    %v3261 = vsel %vm3197, %v3115, %v3229
    %v3262 = vsel %vm3198, %v3120, %v3230
    %v3263 = vsel %vm3199, %v3123, %v3231
    %v3264 = vsel %vm3200, %v3128, %v3232
    %v3265 = vsel %vm3201, %v3131, %v3233
    %v3266 = vsel %vm3202, %v3136, %v3234
    %v3267 = vsel %vm3203, %v3139, %v3235
    %v3268 = vsel %vm3204, %v3144, %v3236
    %v3269 = vsel %vm3205, %v3147, %v3237
    %v3270 = vsel %vm3206, %v3152, %v3238
    %v3271 = vsel %vm3207, %v3155, %v3239
    %v3272 = vsel %vm3208, %v3160, %v3240
    %v3273 = vsel %vm3209, %v3163, %v3241
    %v3274 = vsel %vm3210, %v3168, %v3242
    %v3275 = vsel %vm3211, %v3171, %v3243
    %v3276 = vsel %vm3212, %v3176, %v3244
    %v3277 = vsel %vm3213, %v3179, %v3245
    %v3278 = vlaneseq
    %v3279 = vshrl.u32 %v3278, 7
    %v3280 = vsub.s32 0, %v3279
    %v3281 = vrot.slane %v3016, %v3280
    %3282 = vmatprep.subr.bf16.mxu0 0
    %3283 = vmatpush1.bf16.msra.mxu0 %v3007
    %3284 = vmatprep.subr.bf16.mxu0 0
    %3285 = vmatpush1.bf16.msra.mxu0 %v3008
    %3286 = vmatprep.subr.bf16.mxu0 0
    %3287 = vmatpush1.bf16.msra.mxu0 %v3009
    %3288 = vmatprep.subr.bf16.mxu0 0
    %3289 = vmatpush1.bf16.msra.mxu0 %v3010
    %3290 = vmatprep.subr.bf16.mxu0 0
    %3291 = vmatpush1.bf16.msra.mxu0 %v3011
    %3292 = vmatprep.subr.bf16.mxu0 0
    %3293 = vmatpush1.bf16.msra.mxu0 %v3012
    %3294 = vmatprep.subr.bf16.mxu0 0
    %3295 = vmatpush1.bf16.msra.mxu0 %v3013
    %3296 = vmatprep.subr.bf16.mxu0 0
    %3297 = vmatpush1.bf16.msra.mxu0 %v3014
    %3298 = vmatprep.subr.bf16.mxu0 0
    %3299 = vmatpush1.bf16.msra.mxu0 0
    %3300 = vmatprep.subr.bf16.mxu0 0
    %3301 = vmatpush1.bf16.msra.mxu0 0
    %3302 = vmatprep.subr.bf16.mxu0 0
    %3303 = vmatpush1.bf16.msra.mxu0 0
    %3304 = vmatprep.subr.bf16.mxu0 0
    %3305 = vmatpush1.bf16.msra.mxu0 0
    %3306 = vmatprep.subr.bf16.mxu0 0
    %3307 = vmatpush1.bf16.msra.mxu0 0
    %3308 = vmatprep.subr.bf16.mxu0 0
    %3309 = vmatpush1.bf16.msra.mxu0 0
    %3310 = vmatprep.subr.bf16.mxu0 0
    %3311 = vmatpush1.bf16.msra.mxu0 0
    %3312 = vmatprep.subr.bf16.mxu0 0
    %3313 = vmatpush1.bf16.msra.mxu0 0
    %3314 = vmatprep.mubr.bf16.mxu0 0
    %3315 = vmatmul.mubr.bf16.gmra.mrb[0].mxu0 %v1487
    %v3316 = vpop.f32.mrb[0].mxu0
    %v3317 = vadd.f32 %v3281, %v3316
    %v3318 = vpop.f32.mrb[0].mxu0
    %v3319 = vpop.f32.mrb[0].mxu0
    %v3320 = vadd.f32 %v3281, %v3319
    %v3321 = vpop.f32.mrb[0].mxu0
    %3322 = vmatprep.mubr.bf16.mxu0 0
    %3323 = vmatmul.mubr.bf16.gmra.mrb[0].mxu0 %v1490
    %v3324 = vpop.f32.mrb[0].mxu0
    %v3325 = vadd.f32 %v3281, %v3324
    %v3326 = vpop.f32.mrb[0].mxu0
    %v3327 = vpop.f32.mrb[0].mxu0
    %v3328 = vadd.f32 %v3281, %v3327
    %v3329 = vpop.f32.mrb[0].mxu0
    %3330 = vmatprep.mubr.bf16.mxu0 0
    %3331 = vmatmul.mubr.bf16.gmra.mrb[0].mxu0 %v1493
    %v3332 = vpop.f32.mrb[0].mxu0
    %v3333 = vadd.f32 %v3281, %v3332
    %v3334 = vpop.f32.mrb[0].mxu0
    %v3335 = vpop.f32.mrb[0].mxu0
    %v3336 = vadd.f32 %v3281, %v3335
    %v3337 = vpop.f32.mrb[0].mxu0
    %3338 = vmatprep.mubr.bf16.mxu0 0
    %3339 = vmatmul.mubr.bf16.gmra.mrb[0].mxu0 %v1496
    %v3340 = vpop.f32.mrb[0].mxu0
    %v3341 = vadd.f32 %v3281, %v3340
    %v3342 = vpop.f32.mrb[0].mxu0
    %v3343 = vpop.f32.mrb[0].mxu0
    %v3344 = vadd.f32 %v3281, %v3343
    %v3345 = vpop.f32.mrb[0].mxu0
    %3346 = vmatprep.mubr.bf16.mxu0 0
    %3347 = vmatmul.mubr.bf16.gmra.mrb[0].mxu0 %v1499
    %v3348 = vpop.f32.mrb[0].mxu0
    %v3349 = vadd.f32 %v3281, %v3348
    %v3350 = vpop.f32.mrb[0].mxu0
    %v3351 = vpop.f32.mrb[0].mxu0
    %v3352 = vadd.f32 %v3281, %v3351
    %v3353 = vpop.f32.mrb[0].mxu0
    %3354 = vmatprep.mubr.bf16.mxu0 0
    %3355 = vmatmul.mubr.bf16.gmra.mrb[0].mxu0 %v1502
    %v3356 = vpop.f32.mrb[0].mxu0
    %v3357 = vadd.f32 %v3281, %v3356
    %v3358 = vpop.f32.mrb[0].mxu0
    %v3359 = vpop.f32.mrb[0].mxu0
    %v3360 = vadd.f32 %v3281, %v3359
    %v3361 = vpop.f32.mrb[0].mxu0
    %3362 = vmatprep.mubr.bf16.mxu0 0
    %3363 = vmatmul.mubr.bf16.gmra.mrb[0].mxu0 %v1505
    %v3364 = vpop.f32.mrb[0].mxu0
    %v3365 = vadd.f32 %v3281, %v3364
    %v3366 = vpop.f32.mrb[0].mxu0
    %v3367 = vpop.f32.mrb[0].mxu0
    %v3368 = vadd.f32 %v3281, %v3367
    %v3369 = vpop.f32.mrb[0].mxu0
    %3370 = vmatprep.mubr.bf16.mxu0 0
    %3371 = vmatmul.mubr.bf16.gmra.mrb[0].mxu0 %v1508
    %v3372 = vpop.f32.mrb[0].mxu0
    %v3373 = vadd.f32 %v3281, %v3372
    %v3374 = vpop.f32.mrb[0].mxu0
    %v3375 = vpop.f32.mrb[0].mxu0
    %v3376 = vadd.f32 %v3281, %v3375
    %v3377 = vpop.f32.mrb[0].mxu0
    %3378 = vmatprep.mubr.bf16.mxu0 0
    %3379 = vmatmul.mubr.bf16.gmra.mrb[0].mxu0 %v2943
    %v3380 = vpop.f32.mrb[0].mxu0
    %v3381 = vadd.f32 %v3281, %v3380
    %v3382 = vpop.f32.mrb[0].mxu0
    %v3383 = vpop.f32.mrb[0].mxu0
    %v3384 = vadd.f32 %v3281, %v3383
    %v3385 = vpop.f32.mrb[0].mxu0
    %3386 = vmatprep.mubr.bf16.mxu0 0
    %3387 = vmatmul.mubr.bf16.gmra.mrb[0].mxu0 %v2946
    %v3388 = vpop.f32.mrb[0].mxu0
    %v3389 = vadd.f32 %v3281, %v3388
    %v3390 = vpop.f32.mrb[0].mxu0
    %v3391 = vpop.f32.mrb[0].mxu0
    %v3392 = vadd.f32 %v3281, %v3391
    %v3393 = vpop.f32.mrb[0].mxu0
    %3394 = vmatprep.mubr.bf16.mxu0 0
    %3395 = vmatmul.mubr.bf16.gmra.mrb[0].mxu0 %v2949
    %v3396 = vpop.f32.mrb[0].mxu0
    %v3397 = vadd.f32 %v3281, %v3396
    %v3398 = vpop.f32.mrb[0].mxu0
    %v3399 = vpop.f32.mrb[0].mxu0
    %v3400 = vadd.f32 %v3281, %v3399
    %v3401 = vpop.f32.mrb[0].mxu0
    %3402 = vmatprep.mubr.bf16.mxu0 0
    %3403 = vmatmul.mubr.bf16.gmra.mrb[0].mxu0 %v2952
    %v3404 = vpop.f32.mrb[0].mxu0
    %v3405 = vadd.f32 %v3281, %v3404
    %v3406 = vpop.f32.mrb[0].mxu0
    %v3407 = vpop.f32.mrb[0].mxu0
    %v3408 = vadd.f32 %v3281, %v3407
    %v3409 = vpop.f32.mrb[0].mxu0
    %3410 = vmatprep.mubr.bf16.mxu0 0
    %3411 = vmatmul.mubr.bf16.gmra.mrb[0].mxu0 %v2955
    %v3412 = vpop.f32.mrb[0].mxu0
    %v3413 = vadd.f32 %v3281, %v3412
    %v3414 = vpop.f32.mrb[0].mxu0
    %v3415 = vpop.f32.mrb[0].mxu0
    %v3416 = vadd.f32 %v3281, %v3415
    %v3417 = vpop.f32.mrb[0].mxu0
    %3418 = vmatprep.mubr.bf16.mxu0 0
    %3419 = vmatmul.mubr.bf16.gmra.mrb[0].mxu0 %v2958
    %v3420 = vpop.f32.mrb[0].mxu0
    %v3421 = vadd.f32 %v3281, %v3420
    %v3422 = vpop.f32.mrb[0].mxu0
    %v3423 = vpop.f32.mrb[0].mxu0
    %v3424 = vadd.f32 %v3281, %v3423
    %v3425 = vpop.f32.mrb[0].mxu0
    %3426 = vmatprep.mubr.bf16.mxu0 0
    %3427 = vmatmul.mubr.bf16.gmra.mrb[0].mxu0 %v2961
    %v3428 = vpop.f32.mrb[0].mxu0
    %v3429 = vadd.f32 %v3281, %v3428
    %v3430 = vpop.f32.mrb[0].mxu0
    %v3431 = vpop.f32.mrb[0].mxu0
    %v3432 = vadd.f32 %v3281, %v3431
    %v3433 = vpop.f32.mrb[0].mxu0
    %3434 = vmatprep.mubr.bf16.mxu0 0
    %3435 = vmatmul.mubr.bf16.gmra.mrb[0].mxu0 %v2964
    %v3436 = vpop.f32.mrb[0].mxu0
    %v3437 = vadd.f32 %v3281, %v3436
    %v3438 = vpop.f32.mrb[0].mxu0
    %v3439 = vpop.f32.mrb[0].mxu0
    %v3440 = vadd.f32 %v3281, %v3439
    %v3441 = vpop.f32.mrb[0].mxu0
    %3442 = vdwg.mxu0
    %vm3443 = vcmp.ge.f32.partialorder %v3317, 0.0
    %vm3444 = vcmp.ge.f32.partialorder %v3320, 0.0
    %vm3445 = vcmp.ge.f32.partialorder %v3325, 0.0
    %vm3446 = vcmp.ge.f32.partialorder %v3328, 0.0
    %vm3447 = vcmp.ge.f32.partialorder %v3333, 0.0
    %vm3448 = vcmp.ge.f32.partialorder %v3336, 0.0
    %vm3449 = vcmp.ge.f32.partialorder %v3341, 0.0
    %vm3450 = vcmp.ge.f32.partialorder %v3344, 0.0
    %vm3451 = vcmp.ge.f32.partialorder %v3349, 0.0
    %vm3452 = vcmp.ge.f32.partialorder %v3352, 0.0
    %vm3453 = vcmp.ge.f32.partialorder %v3357, 0.0
    %vm3454 = vcmp.ge.f32.partialorder %v3360, 0.0
    %vm3455 = vcmp.ge.f32.partialorder %v3365, 0.0
    %vm3456 = vcmp.ge.f32.partialorder %v3368, 0.0
    %vm3457 = vcmp.ge.f32.partialorder %v3373, 0.0
    %vm3458 = vcmp.ge.f32.partialorder %v3376, 0.0
    %vm3459 = vcmp.ge.f32.partialorder %v3381, 0.0
    %vm3460 = vcmp.ge.f32.partialorder %v3384, 0.0
    %vm3461 = vcmp.ge.f32.partialorder %v3389, 0.0
    %vm3462 = vcmp.ge.f32.partialorder %v3392, 0.0
    %vm3463 = vcmp.ge.f32.partialorder %v3397, 0.0
    %vm3464 = vcmp.ge.f32.partialorder %v3400, 0.0
    %vm3465 = vcmp.ge.f32.partialorder %v3405, 0.0
    %vm3466 = vcmp.ge.f32.partialorder %v3408, 0.0
    %vm3467 = vcmp.ge.f32.partialorder %v3413, 0.0
    %vm3468 = vcmp.ge.f32.partialorder %v3416, 0.0
    %vm3469 = vcmp.ge.f32.partialorder %v3421, 0.0
    %vm3470 = vcmp.ge.f32.partialorder %v3424, 0.0
    %vm3471 = vcmp.ge.f32.partialorder %v3429, 0.0
    %vm3472 = vcmp.ge.f32.partialorder %v3432, 0.0
    %vm3473 = vcmp.ge.f32.partialorder %v3437, 0.0
    %vm3474 = vcmp.ge.f32.partialorder %v3440, 0.0
    %v3475 = vmul.f32 %v3317, 0.01
    %v3476 = vmul.f32 %v3320, 0.01
    %v3477 = vmul.f32 %v3325, 0.01
    %v3478 = vmul.f32 %v3328, 0.01
    %v3479 = vmul.f32 %v3333, 0.01
    %v3480 = vmul.f32 %v3336, 0.01
    %v3481 = vmul.f32 %v3341, 0.01
    %v3482 = vmul.f32 %v3344, 0.01
    %v3483 = vmul.f32 %v3349, 0.01
    %v3484 = vmul.f32 %v3352, 0.01
    %v3485 = vmul.f32 %v3357, 0.01
    %v3486 = vmul.f32 %v3360, 0.01
    %v3487 = vmul.f32 %v3365, 0.01
    %v3488 = vmul.f32 %v3368, 0.01
    %v3489 = vmul.f32 %v3373, 0.01
    %v3490 = vmul.f32 %v3376, 0.01
    %v3491 = vmul.f32 %v3381, 0.01
    %v3492 = vmul.f32 %v3384, 0.01
    %v3493 = vmul.f32 %v3389, 0.01
    %v3494 = vmul.f32 %v3392, 0.01
    %v3495 = vmul.f32 %v3397, 0.01
    %v3496 = vmul.f32 %v3400, 0.01
    %v3497 = vmul.f32 %v3405, 0.01
    %v3498 = vmul.f32 %v3408, 0.01
    %v3499 = vmul.f32 %v3413, 0.01
    %v3500 = vmul.f32 %v3416, 0.01
    %v3501 = vmul.f32 %v3421, 0.01
    %v3502 = vmul.f32 %v3424, 0.01
    %v3503 = vmul.f32 %v3429, 0.01
    %v3504 = vmul.f32 %v3432, 0.01
    %v3505 = vmul.f32 %v3437, 0.01
    %v3506 = vmul.f32 %v3440, 0.01
    %v3507 = vsel %vm3443, %v3317, %v3475
    %v3508 = vsel %vm3444, %v3320, %v3476
    %v3509 = vsel %vm3445, %v3325, %v3477
    %v3510 = vsel %vm3446, %v3328, %v3478
    %v3511 = vsel %vm3447, %v3333, %v3479
    %v3512 = vsel %vm3448, %v3336, %v3480
    %v3513 = vsel %vm3449, %v3341, %v3481
    %v3514 = vsel %vm3450, %v3344, %v3482
    %v3515 = vsel %vm3451, %v3349, %v3483
    %v3516 = vsel %vm3452, %v3352, %v3484
    %v3517 = vsel %vm3453, %v3357, %v3485
    %v3518 = vsel %vm3454, %v3360, %v3486
    %v3519 = vsel %vm3455, %v3365, %v3487
    %v3520 = vsel %vm3456, %v3368, %v3488
    %v3521 = vsel %vm3457, %v3373, %v3489
    %v3522 = vsel %vm3458, %v3376, %v3490
    %v3523 = vsel %vm3459, %v3381, %v3491
    %v3524 = vsel %vm3460, %v3384, %v3492
    %v3525 = vsel %vm3461, %v3389, %v3493
    %v3526 = vsel %vm3462, %v3392, %v3494
    %v3527 = vsel %vm3463, %v3397, %v3495
    %v3528 = vsel %vm3464, %v3400, %v3496
    %v3529 = vsel %vm3465, %v3405, %v3497
    %v3530 = vsel %vm3466, %v3408, %v3498
    %v3531 = vsel %vm3467, %v3413, %v3499
    %v3532 = vsel %vm3468, %v3416, %v3500
    %v3533 = vsel %vm3469, %v3421, %v3501
    %v3534 = vsel %vm3470, %v3424, %v3502
    %v3535 = vsel %vm3471, %v3429, %v3503
    %v3536 = vsel %vm3472, %v3432, %v3504
    %v3537 = vsel %vm3473, %v3437, %v3505
    %v3538 = vsel %vm3474, %v3440, %v3506
    %v3539 = vsub.f32 %v3507, %v3246
    %v3540 = vsub.f32 %v3508, %v3247
    %v3541 = vsub.f32 %v3509, %v3248
    %v3542 = vsub.f32 %v3510, %v3249
    %v3543 = vsub.f32 %v3511, %v3250
    %v3544 = vsub.f32 %v3512, %v3251
    %v3545 = vsub.f32 %v3513, %v3252
    %v3546 = vsub.f32 %v3514, %v3253
    %v3547 = vsub.f32 %v3515, %v3254
    %v3548 = vsub.f32 %v3516, %v3255
    %v3549 = vsub.f32 %v3517, %v3256
    %v3550 = vsub.f32 %v3518, %v3257
    %v3551 = vsub.f32 %v3519, %v3258
    %v3552 = vsub.f32 %v3520, %v3259
    %v3553 = vsub.f32 %v3521, %v3260
    %v3554 = vsub.f32 %v3522, %v3261
    %v3555 = vmul.f32 %v3507, %v3246
    %v3556 = vmul.f32 %v3508, %v3247
    %v3557 = vmul.f32 %v3509, %v3248
    %v3558 = vmul.f32 %v3510, %v3249
    %v3559 = vmul.f32 %v3511, %v3250
    %v3560 = vmul.f32 %v3512, %v3251
    %v3561 = vmul.f32 %v3513, %v3252
    %v3562 = vmul.f32 %v3514, %v3253
    %v3563 = vmul.f32 %v3515, %v3254
    %v3564 = vmul.f32 %v3516, %v3255
    %v3565 = vmul.f32 %v3517, %v3256
    %v3566 = vmul.f32 %v3518, %v3257
    %v3567 = vmul.f32 %v3519, %v3258
    %v3568 = vmul.f32 %v3520, %v3259
    %v3569 = vmul.f32 %v3521, %v3260
    %v3570 = vmul.f32 %v3522, %v3261
    %3587 = vrot.lane.b32.xlu0 %v3246, 32
    %v3588 = vpop.permute.xlu0 %3587
    %3589 = vrot.lane.b32.xlu0 %v3247, 32
    %v3590 = vpop.permute.xlu0 %3589
    %3591 = vrot.lane.b32.xlu0 %v3248, 32
    %v3592 = vpop.permute.xlu0 %3591
    %3593 = vrot.lane.b32.xlu0 %v3249, 32
    %v3594 = vpop.permute.xlu0 %3593
    %3595 = vrot.lane.b32.xlu0 %v3250, 32
    %v3596 = vpop.permute.xlu0 %3595
    %3597 = vrot.lane.b32.xlu0 %v3251, 32
    %v3598 = vpop.permute.xlu0 %3597
    %3599 = vrot.lane.b32.xlu0 %v3252, 32
    %v3600 = vpop.permute.xlu0 %3599
    %3601 = vrot.lane.b32.xlu0 %v3253, 32
    %v3602 = vpop.permute.xlu0 %3601
    %3603 = vrot.lane.b32.xlu0 %v3254, 32
    %v3604 = vpop.permute.xlu0 %3603
    %3605 = vrot.lane.b32.xlu0 %v3255, 32
    %v3606 = vpop.permute.xlu0 %3605
    %3607 = vrot.lane.b32.xlu0 %v3256, 32
    %v3608 = vpop.permute.xlu0 %3607
    %3609 = vrot.lane.b32.xlu0 %v3257, 32
    %v3610 = vpop.permute.xlu0 %3609
    %3611 = vrot.lane.b32.xlu0 %v3258, 32
    %v3612 = vpop.permute.xlu0 %3611
    %3613 = vrot.lane.b32.xlu0 %v3259, 32
    %v3614 = vpop.permute.xlu0 %3613
    %3615 = vrot.lane.b32.xlu0 %v3260, 32
    %v3616 = vpop.permute.xlu0 %3615
    %3617 = vrot.lane.b32.xlu0 %v3261, 32
    %v3618 = vpop.permute.xlu0 %3617
    %3651 = vrot.lane.b32.xlu0 %v3539, 64
    %v3652 = vpop.permute.xlu0 %3651
    %3653 = vrot.lane.b32.xlu0 %v3540, 64
    %v3654 = vpop.permute.xlu0 %3653
    %3655 = vrot.lane.b32.xlu0 %v3541, 64
    %v3656 = vpop.permute.xlu0 %3655
    %3657 = vrot.lane.b32.xlu0 %v3542, 64
    %v3658 = vpop.permute.xlu0 %3657
    %3659 = vrot.lane.b32.xlu0 %v3543, 64
    %v3660 = vpop.permute.xlu0 %3659
    %3661 = vrot.lane.b32.xlu0 %v3544, 64
    %v3662 = vpop.permute.xlu0 %3661
    %3663 = vrot.lane.b32.xlu0 %v3545, 64
    %v3664 = vpop.permute.xlu0 %3663
    %3665 = vrot.lane.b32.xlu0 %v3546, 64
    %v3666 = vpop.permute.xlu0 %3665
    %3667 = vrot.lane.b32.xlu0 %v3547, 64
    %v3668 = vpop.permute.xlu0 %3667
    %3669 = vrot.lane.b32.xlu0 %v3548, 64
    %v3670 = vpop.permute.xlu0 %3669
    %3671 = vrot.lane.b32.xlu0 %v3549, 64
    %v3672 = vpop.permute.xlu0 %3671
    %3673 = vrot.lane.b32.xlu0 %v3550, 64
    %v3674 = vpop.permute.xlu0 %3673
    %3675 = vrot.lane.b32.xlu0 %v3551, 64
    %v3676 = vpop.permute.xlu0 %3675
    %3677 = vrot.lane.b32.xlu0 %v3552, 64
    %v3678 = vpop.permute.xlu0 %3677
    %3679 = vrot.lane.b32.xlu0 %v3553, 64
    %v3680 = vpop.permute.xlu0 %3679
    %3681 = vrot.lane.b32.xlu0 %v3554, 64
    %v3682 = vpop.permute.xlu0 %3681
    %3715 = vrot.lane.b32.xlu0 %v3555, 96
    %v3716 = vpop.permute.xlu0 %3715
    %3717 = vrot.lane.b32.xlu0 %v3556, 96
    %v3718 = vpop.permute.xlu0 %3717
    %3719 = vrot.lane.b32.xlu0 %v3557, 96
    %v3720 = vpop.permute.xlu0 %3719
    %3721 = vrot.lane.b32.xlu0 %v3558, 96
    %v3722 = vpop.permute.xlu0 %3721
    %3723 = vrot.lane.b32.xlu0 %v3559, 96
    %v3724 = vpop.permute.xlu0 %3723
    %3725 = vrot.lane.b32.xlu0 %v3560, 96
    %v3726 = vpop.permute.xlu0 %3725
    %3727 = vrot.lane.b32.xlu0 %v3561, 96
    %v3728 = vpop.permute.xlu0 %3727
    %3729 = vrot.lane.b32.xlu0 %v3562, 96
    %v3730 = vpop.permute.xlu0 %3729
    %3731 = vrot.lane.b32.xlu0 %v3563, 96
    %v3732 = vpop.permute.xlu0 %3731
    %3733 = vrot.lane.b32.xlu0 %v3564, 96
    %v3734 = vpop.permute.xlu0 %3733
    %3735 = vrot.lane.b32.xlu0 %v3565, 96
    %v3736 = vpop.permute.xlu0 %3735
    %3737 = vrot.lane.b32.xlu0 %v3566, 96
    %v3738 = vpop.permute.xlu0 %3737
    %3739 = vrot.lane.b32.xlu0 %v3567, 96
    %v3740 = vpop.permute.xlu0 %3739
    %3741 = vrot.lane.b32.xlu0 %v3568, 96
    %v3742 = vpop.permute.xlu0 %3741
    %3743 = vrot.lane.b32.xlu0 %v3569, 96
    %v3744 = vpop.permute.xlu0 %3743
    %3745 = vrot.lane.b32.xlu0 %v3570, 96
    %v3746 = vpop.permute.xlu0 %3745
    %v3763 = vsel %vm208, %v3507, %v3588
    %v3764 = vsel %vm208, %v3508, %v3590
    %v3765 = vsel %vm208, %v3509, %v3592
    %v3766 = vsel %vm208, %v3510, %v3594
    %v3767 = vsel %vm208, %v3511, %v3596
    %v3768 = vsel %vm208, %v3512, %v3598
    %v3769 = vsel %vm208, %v3513, %v3600
    %v3770 = vsel %vm208, %v3514, %v3602
    %v3771 = vsel %vm208, %v3515, %v3604
    %v3772 = vsel %vm208, %v3516, %v3606
    %v3773 = vsel %vm208, %v3517, %v3608
    %v3774 = vsel %vm208, %v3518, %v3610
    %v3775 = vsel %vm208, %v3519, %v3612
    %v3776 = vsel %vm208, %v3520, %v3614
    %v3777 = vsel %vm208, %v3521, %v3616
    %v3778 = vsel %vm208, %v3522, %v3618
    %v3779 = vsel %vm1284, %v3763, %v3652
    %v3780 = vsel %vm1284, %v3764, %v3654
    %v3781 = vsel %vm1284, %v3765, %v3656
    %v3782 = vsel %vm1284, %v3766, %v3658
    %v3783 = vsel %vm1284, %v3767, %v3660
    %v3784 = vsel %vm1284, %v3768, %v3662
    %v3785 = vsel %vm1284, %v3769, %v3664
    %v3786 = vsel %vm1284, %v3770, %v3666
    %v3787 = vsel %vm1284, %v3771, %v3668
    %v3788 = vsel %vm1284, %v3772, %v3670
    %v3789 = vsel %vm1284, %v3773, %v3672
    %v3790 = vsel %vm1284, %v3774, %v3674
    %v3791 = vsel %vm1284, %v3775, %v3676
    %v3792 = vsel %vm1284, %v3776, %v3678
    %v3793 = vsel %vm1284, %v3777, %v3680
    %v3794 = vsel %vm1284, %v3778, %v3682
    %v3795 = vsel %vm1301, %v3779, %v3716
    %v3796 = vsel %vm1301, %v3780, %v3718
    %v3797 = vsel %vm1301, %v3781, %v3720
    %v3798 = vsel %vm1301, %v3782, %v3722
    %v3799 = vsel %vm1301, %v3783, %v3724
    %v3800 = vsel %vm1301, %v3784, %v3726
    %v3801 = vsel %vm1301, %v3785, %v3728
    %v3802 = vsel %vm1301, %v3786, %v3730
    %v3803 = vsel %vm1301, %v3787, %v3732
    %v3804 = vsel %vm1301, %v3788, %v3734
    %v3805 = vsel %vm1301, %v3789, %v3736
    %v3806 = vsel %vm1301, %v3790, %v3738
    %v3807 = vsel %vm1301, %v3791, %v3740
    %v3808 = vsel %vm1301, %v3792, %v3742
    %v3809 = vsel %vm1301, %v3793, %v3744
    %v3810 = vsel %vm1301, %v3794, %v3746
    %v3811 = vmax.f32 %v3795, %v3799
    %v3812 = vmax.f32 %v3796, %v3800
    %v3813 = vmax.f32 %v3797, %v3801
    %v3814 = vmax.f32 %v3798, %v3802
    %v3815 = vmax.f32 %v3811, %v3803
    %v3816 = vmax.f32 %v3812, %v3804
    %v3817 = vmax.f32 %v3813, %v3805
    %v3818 = vmax.f32 %v3814, %v3806
    %v3819 = vmax.f32 %v3815, %v3807
    %v3820 = vmax.f32 %v3816, %v3808
    %v3821 = vmax.f32 %v3817, %v3809
    %v3822 = vmax.f32 %v3818, %v3810
    %v3823 = vmax.f32 %v3819, %v3820
    %v3824 = vmax.f32 %v3821, %v3822
    %v3825 = vmax.f32 %v3823, %v3824
    %v3826 = vrot.slane %v3825, 4
    %v3827 = vmax.f32 %v3825, %v3826
    %v3828 = vrot.slane %v3827, 2
    %v3829 = vmax.f32 %v3827, %v3828
    %v3830 = vrot.slane %v3829, 1
    %v3831 = vmax.f32 %v3829, %v3830
    %v3832 = vsub.f32 %v3523, %v3262
    %v3833 = vsub.f32 %v3524, %v3263
    %v3834 = vsub.f32 %v3525, %v3264
    %v3835 = vsub.f32 %v3526, %v3265
    %v3836 = vsub.f32 %v3527, %v3266
    %v3837 = vsub.f32 %v3528, %v3267
    %v3838 = vsub.f32 %v3529, %v3268
    %v3839 = vsub.f32 %v3530, %v3269
    %v3840 = vsub.f32 %v3531, %v3270
    %v3841 = vsub.f32 %v3532, %v3271
    %v3842 = vsub.f32 %v3533, %v3272
    %v3843 = vsub.f32 %v3534, %v3273
    %v3844 = vsub.f32 %v3535, %v3274
    %v3845 = vsub.f32 %v3536, %v3275
    %v3846 = vsub.f32 %v3537, %v3276
    %v3847 = vsub.f32 %v3538, %v3277
    %v3848 = vmul.f32 %v3523, %v3262
    %v3849 = vmul.f32 %v3524, %v3263
    %v3850 = vmul.f32 %v3525, %v3264
    %v3851 = vmul.f32 %v3526, %v3265
    %v3852 = vmul.f32 %v3527, %v3266
    %v3853 = vmul.f32 %v3528, %v3267
    %v3854 = vmul.f32 %v3529, %v3268
    %v3855 = vmul.f32 %v3530, %v3269
    %v3856 = vmul.f32 %v3531, %v3270
    %v3857 = vmul.f32 %v3532, %v3271
    %v3858 = vmul.f32 %v3533, %v3272
    %v3859 = vmul.f32 %v3534, %v3273
    %v3860 = vmul.f32 %v3535, %v3274
    %v3861 = vmul.f32 %v3536, %v3275
    %v3862 = vmul.f32 %v3537, %v3276
    %v3863 = vmul.f32 %v3538, %v3277
    %3880 = vrot.lane.b32.xlu0 %v3262, 32
    %v3881 = vpop.permute.xlu0 %3880
    %3882 = vrot.lane.b32.xlu0 %v3263, 32
    %v3883 = vpop.permute.xlu0 %3882
    %3884 = vrot.lane.b32.xlu0 %v3264, 32
    %v3885 = vpop.permute.xlu0 %3884
    %3886 = vrot.lane.b32.xlu0 %v3265, 32
    %v3887 = vpop.permute.xlu0 %3886
    %3888 = vrot.lane.b32.xlu0 %v3266, 32
    %v3889 = vpop.permute.xlu0 %3888
    %3890 = vrot.lane.b32.xlu0 %v3267, 32
    %v3891 = vpop.permute.xlu0 %3890
    %3892 = vrot.lane.b32.xlu0 %v3268, 32
    %v3893 = vpop.permute.xlu0 %3892
    %3894 = vrot.lane.b32.xlu0 %v3269, 32
    %v3895 = vpop.permute.xlu0 %3894
    %3896 = vrot.lane.b32.xlu0 %v3270, 32
    %v3897 = vpop.permute.xlu0 %3896
    %3898 = vrot.lane.b32.xlu0 %v3271, 32
    %v3899 = vpop.permute.xlu0 %3898
    %3900 = vrot.lane.b32.xlu0 %v3272, 32
    %v3901 = vpop.permute.xlu0 %3900
    %3902 = vrot.lane.b32.xlu0 %v3273, 32
    %v3903 = vpop.permute.xlu0 %3902
    %3904 = vrot.lane.b32.xlu0 %v3274, 32
    %v3905 = vpop.permute.xlu0 %3904
    %3906 = vrot.lane.b32.xlu0 %v3275, 32
    %v3907 = vpop.permute.xlu0 %3906
    %3908 = vrot.lane.b32.xlu0 %v3276, 32
    %v3909 = vpop.permute.xlu0 %3908
    %3910 = vrot.lane.b32.xlu0 %v3277, 32
    %v3911 = vpop.permute.xlu0 %3910
    %3944 = vrot.lane.b32.xlu0 %v3832, 64
    %v3945 = vpop.permute.xlu0 %3944
    %3946 = vrot.lane.b32.xlu0 %v3833, 64
    %v3947 = vpop.permute.xlu0 %3946
    %3948 = vrot.lane.b32.xlu0 %v3834, 64
    %v3949 = vpop.permute.xlu0 %3948
    %3950 = vrot.lane.b32.xlu0 %v3835, 64
    %v3951 = vpop.permute.xlu0 %3950
    %3952 = vrot.lane.b32.xlu0 %v3836, 64
    %v3953 = vpop.permute.xlu0 %3952
    %3954 = vrot.lane.b32.xlu0 %v3837, 64
    %v3955 = vpop.permute.xlu0 %3954
    %3956 = vrot.lane.b32.xlu0 %v3838, 64
    %v3957 = vpop.permute.xlu0 %3956
    %3958 = vrot.lane.b32.xlu0 %v3839, 64
    %v3959 = vpop.permute.xlu0 %3958
    %3960 = vrot.lane.b32.xlu0 %v3840, 64
    %v3961 = vpop.permute.xlu0 %3960
    %3962 = vrot.lane.b32.xlu0 %v3841, 64
    %v3963 = vpop.permute.xlu0 %3962
    %3964 = vrot.lane.b32.xlu0 %v3842, 64
    %v3965 = vpop.permute.xlu0 %3964
    %3966 = vrot.lane.b32.xlu0 %v3843, 64
    %v3967 = vpop.permute.xlu0 %3966
    %3968 = vrot.lane.b32.xlu0 %v3844, 64
    %v3969 = vpop.permute.xlu0 %3968
    %3970 = vrot.lane.b32.xlu0 %v3845, 64
    %v3971 = vpop.permute.xlu0 %3970
    %3972 = vrot.lane.b32.xlu0 %v3846, 64
    %v3973 = vpop.permute.xlu0 %3972
    %3974 = vrot.lane.b32.xlu0 %v3847, 64
    %v3975 = vpop.permute.xlu0 %3974
    %4008 = vrot.lane.b32.xlu0 %v3848, 96
    %v4009 = vpop.permute.xlu0 %4008
    %4010 = vrot.lane.b32.xlu0 %v3849, 96
    %v4011 = vpop.permute.xlu0 %4010
    %4012 = vrot.lane.b32.xlu0 %v3850, 96
    %v4013 = vpop.permute.xlu0 %4012
    %4014 = vrot.lane.b32.xlu0 %v3851, 96
    %v4015 = vpop.permute.xlu0 %4014
    %4016 = vrot.lane.b32.xlu0 %v3852, 96
    %v4017 = vpop.permute.xlu0 %4016
    %4018 = vrot.lane.b32.xlu0 %v3853, 96
    %v4019 = vpop.permute.xlu0 %4018
    %4020 = vrot.lane.b32.xlu0 %v3854, 96
    %v4021 = vpop.permute.xlu0 %4020
    %4022 = vrot.lane.b32.xlu0 %v3855, 96
    %v4023 = vpop.permute.xlu0 %4022
    %4024 = vrot.lane.b32.xlu0 %v3856, 96
    %v4025 = vpop.permute.xlu0 %4024
    %4026 = vrot.lane.b32.xlu0 %v3857, 96
    %v4027 = vpop.permute.xlu0 %4026
    %4028 = vrot.lane.b32.xlu0 %v3858, 96
    %v4029 = vpop.permute.xlu0 %4028
    %4030 = vrot.lane.b32.xlu0 %v3859, 96
    %v4031 = vpop.permute.xlu0 %4030
    %4032 = vrot.lane.b32.xlu0 %v3860, 96
    %v4033 = vpop.permute.xlu0 %4032
    %4034 = vrot.lane.b32.xlu0 %v3861, 96
    %v4035 = vpop.permute.xlu0 %4034
    %4036 = vrot.lane.b32.xlu0 %v3862, 96
    %v4037 = vpop.permute.xlu0 %4036
    %4038 = vrot.lane.b32.xlu0 %v3863, 96
    %v4039 = vpop.permute.xlu0 %4038
    %v4056 = vsel %vm208, %v3523, %v3881
    %v4057 = vsel %vm208, %v3524, %v3883
    %v4058 = vsel %vm208, %v3525, %v3885
    %v4059 = vsel %vm208, %v3526, %v3887
    %v4060 = vsel %vm208, %v3527, %v3889
    %v4061 = vsel %vm208, %v3528, %v3891
    %v4062 = vsel %vm208, %v3529, %v3893
    %v4063 = vsel %vm208, %v3530, %v3895
    %v4064 = vsel %vm208, %v3531, %v3897
    %v4065 = vsel %vm208, %v3532, %v3899
    %v4066 = vsel %vm208, %v3533, %v3901
    %v4067 = vsel %vm208, %v3534, %v3903
    %v4068 = vsel %vm208, %v3535, %v3905
    %v4069 = vsel %vm208, %v3536, %v3907
    %v4070 = vsel %vm208, %v3537, %v3909
    %v4071 = vsel %vm208, %v3538, %v3911
    %v4072 = vsel %vm1284, %v4056, %v3945
    %v4073 = vsel %vm1284, %v4057, %v3947
    %v4074 = vsel %vm1284, %v4058, %v3949
    %v4075 = vsel %vm1284, %v4059, %v3951
    %v4076 = vsel %vm1284, %v4060, %v3953
    %v4077 = vsel %vm1284, %v4061, %v3955
    %v4078 = vsel %vm1284, %v4062, %v3957
    %v4079 = vsel %vm1284, %v4063, %v3959
    %v4080 = vsel %vm1284, %v4064, %v3961
    %v4081 = vsel %vm1284, %v4065, %v3963
    %v4082 = vsel %vm1284, %v4066, %v3965
    %v4083 = vsel %vm1284, %v4067, %v3967
    %v4084 = vsel %vm1284, %v4068, %v3969
    %v4085 = vsel %vm1284, %v4069, %v3971
    %v4086 = vsel %vm1284, %v4070, %v3973
    %v4087 = vsel %vm1284, %v4071, %v3975
    %v4088 = vsel %vm1301, %v4072, %v4009
    %v4089 = vsel %vm1301, %v4073, %v4011
    %v4090 = vsel %vm1301, %v4074, %v4013
    %v4091 = vsel %vm1301, %v4075, %v4015
    %v4092 = vsel %vm1301, %v4076, %v4017
    %v4093 = vsel %vm1301, %v4077, %v4019
    %v4094 = vsel %vm1301, %v4078, %v4021
    %v4095 = vsel %vm1301, %v4079, %v4023
    %v4096 = vsel %vm1301, %v4080, %v4025
    %v4097 = vsel %vm1301, %v4081, %v4027
    %v4098 = vsel %vm1301, %v4082, %v4029
    %v4099 = vsel %vm1301, %v4083, %v4031
    %v4100 = vsel %vm1301, %v4084, %v4033
    %v4101 = vsel %vm1301, %v4085, %v4035
    %v4102 = vsel %vm1301, %v4086, %v4037
    %v4103 = vsel %vm1301, %v4087, %v4039
    %v4104 = vmax.f32 %v4088, %v4092
    %v4105 = vmax.f32 %v4089, %v4093
    %v4106 = vmax.f32 %v4090, %v4094
    %v4107 = vmax.f32 %v4091, %v4095
    %v4108 = vmax.f32 %v4104, %v4096
    %v4109 = vmax.f32 %v4105, %v4097
    %v4110 = vmax.f32 %v4106, %v4098
    %v4111 = vmax.f32 %v4107, %v4099
    %v4112 = vmax.f32 %v4108, %v4100
    %v4113 = vmax.f32 %v4109, %v4101
    %v4114 = vmax.f32 %v4110, %v4102
    %v4115 = vmax.f32 %v4111, %v4103
    %v4116 = vmax.f32 %v4112, %v4113
    %v4117 = vmax.f32 %v4114, %v4115
    %v4118 = vmax.f32 %v4116, %v4117
    %v4119 = vrot.slane %v4118, 4
    %v4120 = vmax.f32 %v4118, %v4119
    %v4121 = vrot.slane %v4120, 2
    %v4122 = vmax.f32 %v4120, %v4121
    %v4123 = vrot.slane %v4122, 1
    %v4124 = vmax.f32 %v4122, %v4123
    %vm4125 = vcmask 1040384
    %v4126 = vsel %vm4125, %v3831, %v4124
    %v4127 = vld [vmem:[%s5] sm:$0xff]
    %v4128 = vld [vmem:[%s5 + $0x8] sm:$0xff]
    %v4129 = vld [vmem:[%s5 + $0x10] sm:$0xff]
    %v4130 = vld [vmem:[%s5 + $0x18] sm:$0xff]
    %v4131 = vld [vmem:[%s5 + $0x20] sm:$0xff]
    %v4132 = vld [vmem:[%s5 + $0x28] sm:$0xff]
    %v4133 = vld [vmem:[%s5 + $0x30] sm:$0xff]
    %v4134 = vld [vmem:[%s5 + $0x38] sm:$0xff]
    %v4135 = vld [vmem:[%s5 + $0x40] sm:$0xff]
    %v4136 = vld [vmem:[%s5 + $0x48] sm:$0xff]
    %v4137 = vld [vmem:[%s5 + $0x50] sm:$0xff]
    %v4138 = vld [vmem:[%s5 + $0x58] sm:$0xff]
    %v4139 = vld [vmem:[%s5 + $0x60] sm:$0xff]
    %v4140 = vld [vmem:[%s5 + $0x68] sm:$0xff]
    %v4141 = vld [vmem:[%s5 + $0x70] sm:$0xff]
    %v4142 = vld [vmem:[%s5 + $0x78] sm:$0xff]
    %v4143 = vpack.c.bf16 %v4128, %v4127
    %v4144 = vpack.c.bf16 %v4130, %v4129
    %v4145 = vpack.c.bf16 %v4132, %v4131
    %v4146 = vpack.c.bf16 %v4134, %v4133
    %v4147 = vpack.c.bf16 %v4136, %v4135
    %v4148 = vpack.c.bf16 %v4138, %v4137
    %v4149 = vpack.c.bf16 %v4140, %v4139
    %v4150 = vpack.c.bf16 %v4142, %v4141
    %v4151 = vld [vmem:[%s6 + $0x2] sm:$0x1]
    %v4152 = vpack.c.bf16 %v4126, %v4126
    %v4153 = vlaneseq
    %v4154 = vshrl.u32 %v4153, 7
    %v4155 = vsub.s32 0, %v4154
    %v4156 = vrot.slane %v4151, %v4155
    %4157 = vmatprep.subr.bf16.mxu0 0
    %4158 = vmatpush1.bf16.msra.mxu0 %v4143
    %4159 = vmatprep.subr.bf16.mxu0 0
    %4160 = vmatpush1.bf16.msra.mxu0 %v4144
    %4161 = vmatprep.subr.bf16.mxu0 0
    %4162 = vmatpush1.bf16.msra.mxu0 %v4145
    %4163 = vmatprep.subr.bf16.mxu0 0
    %4164 = vmatpush1.bf16.msra.mxu0 %v4146
    %4165 = vmatprep.subr.bf16.mxu0 0
    %4166 = vmatpush1.bf16.msra.mxu0 %v4147
    %4167 = vmatprep.subr.bf16.mxu0 0
    %4168 = vmatpush1.bf16.msra.mxu0 %v4148
    %4169 = vmatprep.subr.bf16.mxu0 0
    %4170 = vmatpush1.bf16.msra.mxu0 %v4149
    %4171 = vmatprep.subr.bf16.mxu0 0
    %4172 = vmatpush1.bf16.msra.mxu0 %v4150
    %4173 = vmatprep.subr.bf16.mxu0 0
    %4174 = vmatpush1.bf16.msra.mxu0 0
    %4175 = vmatprep.subr.bf16.mxu0 0
    %4176 = vmatpush1.bf16.msra.mxu0 0
    %4177 = vmatprep.subr.bf16.mxu0 0
    %4178 = vmatpush1.bf16.msra.mxu0 0
    %4179 = vmatprep.subr.bf16.mxu0 0
    %4180 = vmatpush1.bf16.msra.mxu0 0
    %4181 = vmatprep.subr.bf16.mxu0 0
    %4182 = vmatpush1.bf16.msra.mxu0 0
    %4183 = vmatprep.subr.bf16.mxu0 0
    %4184 = vmatpush1.bf16.msra.mxu0 0
    %4185 = vmatprep.subr.bf16.mxu0 0
    %4186 = vmatpush1.bf16.msra.mxu0 0
    %4187 = vmatprep.subr.bf16.mxu0 0
    %4188 = vmatpush1.bf16.msra.mxu0 0
    %4189 = vmatprep.mubr.bf16.mxu0 0
    %4190 = vmatmul.mubr.bf16.gmra.mrb[0].mxu0 %v4152
    %v4191 = vpop.f32.mrb[0].mxu0
    %v4192 = vadd.f32 %v4156, %v4191
    %v4193 = vpop.f32.mrb[0].mxu0
    %v4194 = vpop.f32.mrb[0].mxu0
    %v4195 = vpop.f32.mrb[0].mxu0
    %4196 = vdwg.mxu0
    %vm4197 = vcmp.ge.f32.partialorder %v4192, 0.0
    %v4198 = vmul.f32 %v4192, 0.01
    %v4199 = vsel %vm4197, %v4192, %v4198
    %s4200 = scalar_lea.vmem %s5, 128
    %v4201 = vld [vmem:[%s4200] sm:$0xff]
    %v4202 = vld [vmem:[%s4200 + $0x8] sm:$0xff]
    %v4203 = vld [vmem:[%s4200 + $0x10] sm:$0xff]
    %v4204 = vld [vmem:[%s4200 + $0x18] sm:$0xff]
    %v4205 = vld [vmem:[%s4200 + $0x20] sm:$0xff]
    %v4206 = vld [vmem:[%s4200 + $0x28] sm:$0xff]
    %v4207 = vld [vmem:[%s4200 + $0x30] sm:$0xff]
    %v4208 = vld [vmem:[%s4200 + $0x38] sm:$0xff]
    %v4209 = vld [vmem:[%s4200 + $0x40] sm:$0xff]
    %v4210 = vld [vmem:[%s4200 + $0x48] sm:$0xff]
    %v4211 = vld [vmem:[%s4200 + $0x50] sm:$0xff]
    %v4212 = vld [vmem:[%s4200 + $0x58] sm:$0xff]
    %v4213 = vld [vmem:[%s4200 + $0x60] sm:$0xff]
    %v4214 = vld [vmem:[%s4200 + $0x68] sm:$0xff]
    %v4215 = vld [vmem:[%s4200 + $0x70] sm:$0xff]
    %v4216 = vld [vmem:[%s4200 + $0x78] sm:$0xff]
    %v4217 = vpack.c.bf16 %v4202, %v4201
    %v4218 = vpack.c.bf16 %v4204, %v4203
    %v4219 = vpack.c.bf16 %v4206, %v4205
    %v4220 = vpack.c.bf16 %v4208, %v4207
    %v4221 = vpack.c.bf16 %v4210, %v4209
    %v4222 = vpack.c.bf16 %v4212, %v4211
    %v4223 = vpack.c.bf16 %v4214, %v4213
    %v4224 = vpack.c.bf16 %v4216, %v4215
    %v4225 = vld [vmem:[%s6 + $0x3] sm:$0x1]
    %v4226 = vpack.c.bf16 %v4199, %v4199
    %v4227 = vlaneseq
    %v4228 = vshrl.u32 %v4227, 7
    %v4229 = vsub.s32 0, %v4228
    %v4230 = vrot.slane %v4225, %v4229
    %4231 = vmatprep.subr.bf16.mxu0 0
    %4232 = vmatpush1.bf16.msra.mxu0 %v4217
    %4233 = vmatprep.subr.bf16.mxu0 0
    %4234 = vmatpush1.bf16.msra.mxu0 %v4218
    %4235 = vmatprep.subr.bf16.mxu0 0
    %4236 = vmatpush1.bf16.msra.mxu0 %v4219
    %4237 = vmatprep.subr.bf16.mxu0 0
    %4238 = vmatpush1.bf16.msra.mxu0 %v4220
    %4239 = vmatprep.subr.bf16.mxu0 0
    %4240 = vmatpush1.bf16.msra.mxu0 %v4221
    %4241 = vmatprep.subr.bf16.mxu0 0
    %4242 = vmatpush1.bf16.msra.mxu0 %v4222
    %4243 = vmatprep.subr.bf16.mxu0 0
    %4244 = vmatpush1.bf16.msra.mxu0 %v4223
    %4245 = vmatprep.subr.bf16.mxu0 0
    %4246 = vmatpush1.bf16.msra.mxu0 %v4224
    %4247 = vmatprep.subr.bf16.mxu0 0
    %4248 = vmatpush1.bf16.msra.mxu0 0
    %4249 = vmatprep.subr.bf16.mxu0 0
    %4250 = vmatpush1.bf16.msra.mxu0 0
    %4251 = vmatprep.subr.bf16.mxu0 0
    %4252 = vmatpush1.bf16.msra.mxu0 0
    %4253 = vmatprep.subr.bf16.mxu0 0
    %4254 = vmatpush1.bf16.msra.mxu0 0
    %4255 = vmatprep.subr.bf16.mxu0 0
    %4256 = vmatpush1.bf16.msra.mxu0 0
    %4257 = vmatprep.subr.bf16.mxu0 0
    %4258 = vmatpush1.bf16.msra.mxu0 0
    %4259 = vmatprep.subr.bf16.mxu0 0
    %4260 = vmatpush1.bf16.msra.mxu0 0
    %4261 = vmatprep.subr.bf16.mxu0 0
    %4262 = vmatpush1.bf16.msra.mxu0 0
    %4263 = vmatprep.mubr.bf16.mxu0 0
    %4264 = vmatmul.mubr.bf16.gmra.mrb[0].mxu0 %v4226
    %v4265 = vpop.f32.mrb[0].mxu0
    %v4266 = vadd.f32 %v4230, %v4265
    %v4267 = vpop.f32.mrb[0].mxu0
    %v4268 = vpop.f32.mrb[0].mxu0
    %v4269 = vpop.f32.mrb[0].mxu0
    %4270 = vdwg.mxu0
    %vm4271 = vcmp.ge.f32.partialorder %v4266, 0.0
    %v4272 = vmul.f32 %v4266, 0.01
    %v4273 = vsel %vm4271, %v4266, %v4272
    %s4274 = scalar_lea.vmem %s5, 256
    %v4275 = vld [vmem:[%s4274] sm:$0xff]
    %v4276 = vld [vmem:[%s4274 + $0x8] sm:$0xff]
    %v4277 = vld [vmem:[%s4274 + $0x10] sm:$0xff]
    %v4278 = vld [vmem:[%s4274 + $0x18] sm:$0xff]
    %v4279 = vld [vmem:[%s4274 + $0x20] sm:$0xff]
    %v4280 = vld [vmem:[%s4274 + $0x28] sm:$0xff]
    %v4281 = vld [vmem:[%s4274 + $0x30] sm:$0xff]
    %v4282 = vld [vmem:[%s4274 + $0x38] sm:$0xff]
    %v4283 = vld [vmem:[%s4274 + $0x40] sm:$0xff]
    %v4284 = vld [vmem:[%s4274 + $0x48] sm:$0xff]
    %v4285 = vld [vmem:[%s4274 + $0x50] sm:$0xff]
    %v4286 = vld [vmem:[%s4274 + $0x58] sm:$0xff]
    %v4287 = vld [vmem:[%s4274 + $0x60] sm:$0xff]
    %v4288 = vld [vmem:[%s4274 + $0x68] sm:$0xff]
    %v4289 = vld [vmem:[%s4274 + $0x70] sm:$0xff]
    %v4290 = vld [vmem:[%s4274 + $0x78] sm:$0xff]
    %v4291 = vpack.c.bf16 %v4276, %v4275
    %v4292 = vpack.c.bf16 %v4278, %v4277
    %v4293 = vpack.c.bf16 %v4280, %v4279
    %v4294 = vpack.c.bf16 %v4282, %v4281
    %v4295 = vpack.c.bf16 %v4284, %v4283
    %v4296 = vpack.c.bf16 %v4286, %v4285
    %v4297 = vpack.c.bf16 %v4288, %v4287
    %v4298 = vpack.c.bf16 %v4290, %v4289
    %v4299 = vld [vmem:[%s6 + $0x4] sm:$0x1]
    %v4300 = vpack.c.bf16 %v4273, %v4273
    %v4301 = vlaneseq
    %v4302 = vshrl.u32 %v4301, 7
    %v4303 = vsub.s32 0, %v4302
    %v4304 = vrot.slane %v4299, %v4303
    %4305 = vmatprep.subr.bf16.mxu0 0
    %4306 = vmatpush1.bf16.msra.mxu0 %v4291
    %4307 = vmatprep.subr.bf16.mxu0 0
    %4308 = vmatpush1.bf16.msra.mxu0 %v4292
    %4309 = vmatprep.subr.bf16.mxu0 0
    %4310 = vmatpush1.bf16.msra.mxu0 %v4293
    %4311 = vmatprep.subr.bf16.mxu0 0
    %4312 = vmatpush1.bf16.msra.mxu0 %v4294
    %4313 = vmatprep.subr.bf16.mxu0 0
    %4314 = vmatpush1.bf16.msra.mxu0 %v4295
    %4315 = vmatprep.subr.bf16.mxu0 0
    %4316 = vmatpush1.bf16.msra.mxu0 %v4296
    %4317 = vmatprep.subr.bf16.mxu0 0
    %4318 = vmatpush1.bf16.msra.mxu0 %v4297
    %4319 = vmatprep.subr.bf16.mxu0 0
    %4320 = vmatpush1.bf16.msra.mxu0 %v4298
    %4321 = vmatprep.subr.bf16.mxu0 0
    %4322 = vmatpush1.bf16.msra.mxu0 0
    %4323 = vmatprep.subr.bf16.mxu0 0
    %4324 = vmatpush1.bf16.msra.mxu0 0
    %4325 = vmatprep.subr.bf16.mxu0 0
    %4326 = vmatpush1.bf16.msra.mxu0 0
    %4327 = vmatprep.subr.bf16.mxu0 0
    %4328 = vmatpush1.bf16.msra.mxu0 0
    %4329 = vmatprep.subr.bf16.mxu0 0
    %4330 = vmatpush1.bf16.msra.mxu0 0
    %4331 = vmatprep.subr.bf16.mxu0 0
    %4332 = vmatpush1.bf16.msra.mxu0 0
    %4333 = vmatprep.subr.bf16.mxu0 0
    %4334 = vmatpush1.bf16.msra.mxu0 0
    %4335 = vmatprep.subr.bf16.mxu0 0
    %4336 = vmatpush1.bf16.msra.mxu0 0
    %4337 = vmatprep.mubr.bf16.mxu0 0
    %4338 = vmatmul.mubr.bf16.gmra.mrb[0].mxu0 %v4300
    %v4339 = vpop.f32.mrb[0].mxu0
    %v4340 = vadd.f32 %v4304, %v4339
    %v4341 = vpop.f32.mrb[0].mxu0
    %v4342 = vpop.f32.mrb[0].mxu0
    %v4343 = vpop.f32.mrb[0].mxu0
    %4344 = vdwg.mxu0
    %vm4345 = vcmp.ge.f32.partialorder %v4340, 0.0
    %v4346 = vmul.f32 %v4340, 0.01
    %v4347 = vsel %vm4345, %v4340, %v4346
    %v4350 = vunpack.c.l.s4 1966171168
    %v4351 = vunpack.c.0.s8 %v4350
    %v4352 = vlaneseq
    %v4353 = vshrl.u32 %v4352, 7
    %v4354 = vsub.s32 %v4351, %v4353
    %v4355 = vrot.slane %v4347, %v4354
    %v4356 = vcombine.high %v4355, %v4355
    %v4358 = vunpack.c.l.s4 1966171168
    %v4359 = vunpack.c.0.s8 %v4358
    %v4360 = vlaneseq
    %v4361 = vshrl.u32 %v4360, 7
    %v4362 = vsub.s32 %v4359, %v4361
    %v4363 = vrot.slane %v4355, %v4362
    %v4365 = vunpack.c.l.s4 1966171168
    %v4366 = vunpack.c.0.s8 %v4365
    %v4367 = vlaneseq
    %v4368 = vshrl.u32 %v4367, 7
    %v4369 = vsub.s32 %v4366, %v4368
    %v4370 = vrot.slane %v4356, %v4369
    %4373 = vst [vmem:[#allocation5] sm:$0x1] %v4363
    %4374 = vst [vmem:[#allocation5 + $0x1] sm:$0x1] %v4370
    // Predicated region
    $region22: #{tpu_custom_call.1} parent=1 // pred_check
      _
    $region23: #{tpu_custom_call.1} parent=1 // pred_check_branch
      %4376 = sbr.rel (0) target = $region25
    $region24: #{tpu_custom_call.1} parent=1 // pred_region
      %s4378 = ssub.s32 32, 32
      %4379 = vsyncadd [#allocation6], %s4378
      %s4380 = sshll.u32 [#allocation5], 4
      %s4381 = int_to_ptr.vmem [resolvable:$true] %s4380
      %4386 = dma.vmem_to_hbm [thread:$0]  %s4381, 32, %s7, [#allocation6], 16, 16, 1
    $region25: #{tpu_custom_call.1} parent=1 // pred_fallthru
      _
    // Predicated region
    $region26: #{tpu_custom_call.1} parent=1 // pred_check
      _
    $region27: #{tpu_custom_call.1} parent=1 // pred_check_branch
      %4388 = sbr.rel (0) target = $region29
    $region28: #{tpu_custom_call.1} parent=1 // pred_region
      %4389 = dma.done [#allocation6], 32
    $region29: #{tpu_custom_call.1} parent=1 // pred_fallthru
      _
    %4390 = vsyncpa [#allocation6], 1

</llo_original>
